<compile_context>
chip_gen: v6e
topology: v6e:2x2x1
jax: 0.10.0
libtpu: 0.0.40
codegen_flags: <defaults>
</compile_context>

<pallas_src>
import jax
import jax.numpy as jnp
import numpy as np
from jax import lax
from jax.experimental import pallas as pl
from jax.experimental.pallas import tpu as pltpu

# -------------------------------------------------------------------------
# Text preprocessing (identical semantics to the PyTorch helpers)
# -------------------------------------------------------------------------
maximum_letters = 20
SEQ_LEN = 100  # text_to_line_ord builds a (1, 100, 20) tensor

vocabulary = [' Cock and ball torture (CBT), penis torture or dick torture is a sexual activity involving application of pain or constriction to the penis or testicles. This may involve directly painful activities, such as genital piercing, wax play, genital spanking, squeezing, ball-busting, genital flogging, urethral play, tickle torture, erotic electrostimulation, kneeing or kicking. The recipient of such activities may receive direct physical pleasure via masochism, or emotional pleasure through erotic humiliation, or knowledge that the play is pleasing to a sadistic dominant. Many of these practices carry significant health risks.']


def split_text(text_list):
    new_text = []
    for i in range(len(text_list)):
        new_text.append(text_list[i].split(' '))
    out = []
    for i in range(len(new_text)):
        for w in new_text[i]:
            out.append(w)
    return out


def line_to_tensor(line):
    placeholder = np.zeros(maximum_letters, dtype=np.float32)
    for i in range(len(line)):
        placeholder[i] = ord(line[i])
    return placeholder


def text_to_line_ord(words):
    new_tensor = np.zeros((1, SEQ_LEN, maximum_letters), dtype=np.float32)
    c = 0
    for i in range(len(words)):
        new_tensor[0][c] = line_to_tensor(words[i])
        c += 1
    return new_tensor


# -------------------------------------------------------------------------
# Pallas kernel: wavefront RNN stack + fused output projection
# -------------------------------------------------------------------------
WAVE_UNROLL = 4  # wavefront steps unrolled per fori iteration


def wavefront_rnn_kernel(x_ref, wih_ref, whh_ref, b_ref, wout_ref, bout_ref,
                         o_ref, seq_buf, u0_buf):
    """Single-invocation kernel.

    Wavefront w processes cells (l, t=w-l): each needs only the previous
    wavefront's state, so the L cells of one wavefront are independent and
    their matvecs pipeline on the MXU.  state[l] (carried in vregs) holds
    h_{l, t_l - 1}; the top layer's row is stored to seq_buf, which feeds the
    fused Linear+tanh at the end.
    """
    S, Hp = x_ref.shape
    L = wih_ref.shape[0]

    # Hoisted layer-0 input projection: one full-tile MXU matmul.
    u0_buf[...] = (
        jnp.dot(x_ref[...].astype(jnp.bfloat16), wih_ref[0],
                preferred_element_type=jnp.float32)
        + b_ref[0])

    n_wave = L + S - 1
    n_blocks = (n_wave + WAVE_UNROLL - 1) // WAVE_UNROLL  # trailing waves masked

    def wave_block(i, state):
        # state: tuple of L arrays (1, Hp) f32; state[l] = h_{l, (w-1)-l}
        for j in range(WAVE_UNROLL):                 # static unroll
            w = i * WAVE_UNROLL + j
            new_rows = []
            for l in range(L):                       # L independent cells
                t = w - l
                h_prev = state[l]                    # (1, Hp) f32
                if l == 0:
                    tc = jnp.clip(t, 0, S - 1)
                    u = u0_buf[pl.ds(tc, 1), :]      # precomputed X@Wih0 + b0
                else:
                    x_in = state[l - 1]              # layer below, same timestep
                    u = (jnp.dot(x_in.astype(jnp.bfloat16), wih_ref[l],
                                 preferred_element_type=jnp.float32)
                         + b_ref[l])
                h_new = jnp.tanh(
                    u + jnp.dot(h_prev.astype(jnp.bfloat16), whh_ref[l],
                                preferred_element_type=jnp.float32))
                valid = jnp.logical_and(t >= 0, t < S)
                new_rows.append(jnp.where(valid, h_new, h_prev))

            # Top-layer output row -> seq_buf[t_top], exactly once per timestep.
            t_top = w - (L - 1)
            top_row = new_rows[L - 1]
            t_store = jnp.clip(t_top, 0, S - 1)

            @pl.when(jnp.logical_and(t_top >= 0, t_top < S))
            def _():
                seq_buf[pl.ds(t_store, 1), :] = top_row

            state = tuple(new_rows)
        return state

    init_state = tuple(jnp.zeros((1, Hp), jnp.float32) for _ in range(L))
    lax.fori_loop(0, n_blocks, wave_block, init_state)

    # Fused output projection + tanh (output block written exactly once).
    o_ref[...] = jnp.tanh(
        jnp.dot(seq_buf[...].astype(jnp.bfloat16), wout_ref[...],
                preferred_element_type=jnp.float32)
        + bout_ref[...])


# -------------------------------------------------------------------------
# Wrapper
# -------------------------------------------------------------------------
def rnn_stack_fused(x_pad, w_ih_t, w_hh_t, b_sum, w_out_t, b_out):
    """x_pad: (S, Hp) f32;  w_ih_t/w_hh_t: (L, Hp, Hp) bf16;  b_sum: (L, 1, Hp) f32;
    w_out_t: (Hp, Vp) bf16;  b_out: (1, Vp) f32  ->  (S, Vp) f32."""
    S, Hp = x_pad.shape
    L = w_ih_t.shape[0]
    Vp = w_out_t.shape[1]

    return pl.pallas_call(
        wavefront_rnn_kernel,
        out_shape=jax.ShapeDtypeStruct((S, Vp), jnp.float32),
        grid_spec=pltpu.PrefetchScalarGridSpec(
            num_scalar_prefetch=0,
            grid=(1,),
            in_specs=[
                pl.BlockSpec((S, Hp), lambda i: (0, 0)),
                pl.BlockSpec((L, Hp, Hp), lambda i: (0, 0, 0)),
                pl.BlockSpec((L, Hp, Hp), lambda i: (0, 0, 0)),
                pl.BlockSpec((L, 1, Hp), lambda i: (0, 0, 0)),
                pl.BlockSpec((Hp, Vp), lambda i: (0, 0)),
                pl.BlockSpec((1, Vp), lambda i: (0, 0)),
            ],
            out_specs=pl.BlockSpec((S, Vp), lambda i: (0, 0)),
            scratch_shapes=[
                pltpu.VMEM((S, Hp), jnp.float32),   # top-layer output sequence
                pltpu.VMEM((S, Hp), jnp.float32),   # hoisted layer-0 projection
            ],
        ),
        compiler_params=pltpu.CompilerParams(
            dimension_semantics=("arbitrary",)),
    )(x_pad, w_ih_t, w_hh_t, b_sum, w_out_t, b_out)


def network_forward(x_pad, w_ih_t, w_hh_t, b_sum, w_out_t, b_out, vocab_size):
    """Reproduces network.forward: returns (1, 100, vocab_size) float32."""
    out = rnn_stack_fused(x_pad, w_ih_t, w_hh_t, b_sum, w_out_t, b_out)  # (S, Vp)
    return out[None, :, :vocab_size]                                     # (1, S, V)


# -------------------------------------------------------------------------
# Pure-JAX reference (same dtype path: bf16 at the matmul boundary, f32 acc)
# -------------------------------------------------------------------------
def reference_forward(x_pad, w_ih_t, w_hh_t, b_sum, w_out_t, b_out):
    L = w_ih_t.shape[0]
    Hp = x_pad.shape[1]
    seq = x_pad
    for l in range(L):
        def step(h, x_t):
            u = (jnp.dot(x_t[None, :].astype(jnp.bfloat16), w_ih_t[l],
                         preferred_element_type=jnp.float32) + b_sum[l])
            h_new = jnp.tanh(
                u + jnp.dot(h.astype(jnp.bfloat16), w_hh_t[l],
                            preferred_element_type=jnp.float32))
            return h_new, h_new[0]
        _, seq = lax.scan(step, jnp.zeros((1, Hp), jnp.float32), seq)
    return jnp.tanh(
        jnp.dot(seq.astype(jnp.bfloat16), w_out_t,
                preferred_element_type=jnp.float32) + b_out)


# -------------------------------------------------------------------------
# Parameter construction (deterministic, PyTorch-style uniform init),
# padded once to lane-aligned shapes.  Padded rows/cols are zero, so padded
# hidden components provably stay exactly 0 through tanh(0)=0.
# -------------------------------------------------------------------------
def build_params(key, input_dim, hidden_size, num_layers, vocab_size, h_pad, v_pad):
    H, D, L, V = hidden_size, input_dim, num_layers, vocab_size
    k = 1.0 / np.sqrt(H)
    keys = jax.random.split(key, 4 * L + 2)

    w_ih_t, w_hh_t, b_sum = [], [], []
    for l in range(L):
        in_dim = D if l == 0 else H
        w_ih = jax.random.uniform(keys[4 * l + 0], (H, in_dim), jnp.float32, -k, k)
        w_hh = jax.random.uniform(keys[4 * l + 1], (H, H), jnp.float32, -k, k)
        b_ih = jax.random.uniform(keys[4 * l + 2], (H,), jnp.float32, -k, k)
        b_hh = jax.random.uniform(keys[4 * l + 3], (H,), jnp.float32, -k, k)
        w_ih_t.append(jnp.pad(w_ih.T, ((0, h_pad - in_dim), (0, h_pad - H))))
        w_hh_t.append(jnp.pad(w_hh.T, ((0, h_pad - H), (0, h_pad - H))))
        b_sum.append(jnp.pad((b_ih + b_hh).reshape(1, H), ((0, 0), (0, h_pad - H))))

    w_ih_t = jnp.stack(w_ih_t).astype(jnp.bfloat16)      # (L, Hp, Hp)
    w_hh_t = jnp.stack(w_hh_t).astype(jnp.bfloat16)      # (L, Hp, Hp)
    b_sum = jnp.stack(b_sum)                             # (L, 1, Hp) f32

    w_out = jax.random.uniform(keys[-2], (V, H), jnp.float32, -k, k)
    b_out = jax.random.uniform(keys[-1], (V,), jnp.float32, -k, k)
    w_out_t = jnp.pad(w_out.T, ((0, h_pad - H), (0, v_pad - V))).astype(jnp.bfloat16)
    b_out_p = jnp.pad(b_out.reshape(1, V), ((0, 0), (0, v_pad - V)))
    return w_ih_t, w_hh_t, b_sum, w_out_t, b_out_p


if __name__ == "__main__":
    # --- small, module-consistent shapes (module: hidden=360, layers=500) ---
    HIDDEN_SIZE = 64
    NUM_LAYERS = 4
    INPUT_DIM = maximum_letters      # 20
    H_PAD = 128                      # lane-aligned hidden dim

    vocab = split_text(vocabulary)
    VOCAB_SIZE = len(vocab)
    V_PAD = ((VOCAB_SIZE + 127) // 128) * 128
    assert VOCAB_SIZE <= SEQ_LEN
    assert max(len(w) for w in vocab) <= maximum_letters

    # Input text arg is ignored by the forward (only its length is used).
    text = []

    # Build the actual RNN input exactly like the PyTorch forward does.
    x_np = text_to_line_ord(vocab)                               # (1, 100, 20)
    x = jnp.asarray(x_np)[0]                                     # (100, 20)
    x_pad = jnp.pad(x, ((0, 0), (0, H_PAD - INPUT_DIM)))         # (100, Hp)

    key = jax.random.PRNGKey(0)
    w_ih_t, w_hh_t, b_sum, w_out_t, b_out = build_params(
        key, INPUT_DIM, HIDDEN_SIZE, NUM_LAYERS, VOCAB_SIZE, H_PAD, V_PAD)

    y = network_forward(x_pad, w_ih_t, w_hh_t, b_sum, w_out_t, b_out,
                        vocab_size=VOCAB_SIZE)                   # (1, 100, V)
    y = jax.block_until_ready(y)

    # Correctness: compare against a pure-JAX reference with identical numerics.
    y_ref = jax.jit(reference_forward)(x_pad, w_ih_t, w_hh_t, b_sum, w_out_t, b_out)
    y_ref = jax.block_until_ready(y_ref)[None, :, :VOCAB_SIZE]

    assert y.shape == (1, SEQ_LEN, VOCAB_SIZE)
    assert y.dtype == jnp.float32
    assert bool(jnp.all(jnp.isfinite(y)))
    max_err = float(jnp.max(jnp.abs(y - y_ref)))
    assert max_err < 5e-2, f"kernel/reference mismatch: max_err={max_err}"
    print("KERNEL_OK")
</pallas_src>

<mosaic_0001>
module attributes {stable_mosaic.version = 11 : i64} {
  func.func @wavefront_rnn_kernel(%arg0: i32, %arg1: memref<100x128xf32, #tpu.memory_space<vmem>>, %arg2: memref<4x128x128xbf16, #tpu.memory_space<vmem>>, %arg3: memref<4x128x128xbf16, #tpu.memory_space<vmem>>, %arg4: memref<4x1x128xf32, #tpu.memory_space<vmem>>, %arg5: memref<128x128xbf16, #tpu.memory_space<vmem>>, %arg6: memref<1x128xf32, #tpu.memory_space<vmem>>, %arg7: memref<100x128xf32, #tpu.memory_space<vmem>>, %arg8: memref<100x128xf32, #tpu.memory_space<vmem>>, %arg9: memref<100x128xf32, #tpu.memory_space<vmem>>) attributes {dimension_semantics = [#tpu.dimension_semantics<arbitrary>], iteration_bounds = array<i64: 1>, scalar_prefetch = 0 : i64, scratch_operands = 2 : i64, tpu.core_type = #tpu.core_type<tc>, window_params = [{pipeline_mode = #tpu.pipeline_mode<synchronous>, transform_indices = @transform_0, window_bounds = array<i64: 100, 128>}, {pipeline_mode = #tpu.pipeline_mode<synchronous>, transform_indices = @transform_1, window_bounds = array<i64: 4, 128, 128>}, {pipeline_mode = #tpu.pipeline_mode<synchronous>, transform_indices = @transform_2, window_bounds = array<i64: 4, 128, 128>}, {pipeline_mode = #tpu.pipeline_mode<synchronous>, transform_indices = @transform_3, window_bounds = array<i64: 4, 1, 128>}, {pipeline_mode = #tpu.pipeline_mode<synchronous>, transform_indices = @transform_4, window_bounds = array<i64: 128, 128>}, {pipeline_mode = #tpu.pipeline_mode<synchronous>, transform_indices = @transform_5, window_bounds = array<i64: 1, 128>}, {pipeline_mode = #tpu.pipeline_mode<synchronous>, transform_indices = @transform_6, window_bounds = array<i64: 100, 128>}]} {
    %c0 = arith.constant 0 : index
    %c0_0 = arith.constant 0 : index
    %0 = vector.load %arg1[%c0, %c0_0] : memref<100x128xf32, #tpu.memory_space<vmem>>, vector<100x128xf32>
    %1 = arith.truncf %0 : vector<100x128xf32> to vector<100x128xbf16>
    %c0_1 = arith.constant 0 : index
    %c0_2 = arith.constant 0 : index
    %c0_3 = arith.constant 0 : index
    %2 = vector.load %arg2[%c0_1, %c0_2, %c0_3] : memref<4x128x128xbf16, #tpu.memory_space<vmem>>, vector<1x128x128xbf16>
    %3 = vector.shape_cast %2 : vector<1x128x128xbf16> to vector<128x128xbf16>
    %cst = arith.constant dense<0.000000e+00> : vector<100x128xf32>
    %4 = tpu.matmul %1, %3, %cst {dimension_numbers = #tpu.dot_dimension_numbers<[1], [0], [0], [1], [0, 0, 1, 1], [], []>} : vector<100x128xbf16>, vector<128x128xbf16>, vector<100x128xf32> -> vector<100x128xf32>
    %c0_4 = arith.constant 0 : index
    %c0_5 = arith.constant 0 : index
    %c0_6 = arith.constant 0 : index
    %5 = vector.load %arg4[%c0_4, %c0_5, %c0_6] : memref<4x1x128xf32, #tpu.memory_space<vmem>>, vector<1x1x128xf32>
    %6 = vector.shape_cast %5 : vector<1x1x128xf32> to vector<1x128xf32>
    %7 = vector.broadcast %6 : vector<1x128xf32> to vector<100x128xf32>
    %8 = arith.addf %4, %7 : vector<100x128xf32>
    %c0_7 = arith.constant 0 : index
    %c0_8 = arith.constant 0 : index
    %9 = vector.load %arg9[%c0_7, %c0_8] : memref<100x128xf32, #tpu.memory_space<vmem>>, vector<100x128xf32>
    tpu.vector_store %arg9[%c0_7, %c0_8], %8 {strides = array<i32>} : memref<100x128xf32, #tpu.memory_space<vmem>>, vector<100x128xf32>,
    %cst_9 = arith.constant 0.000000e+00 : f32
    %10 = vector.broadcast %cst_9 : f32 to vector<1x128xf32>
    %cst_10 = arith.constant 0.000000e+00 : f32
    %11 = vector.broadcast %cst_10 : f32 to vector<1x128xf32>
    %cst_11 = arith.constant 0.000000e+00 : f32
    %12 = vector.broadcast %cst_11 : f32 to vector<1x128xf32>
    %cst_12 = arith.constant 0.000000e+00 : f32
    %13 = vector.broadcast %cst_12 : f32 to vector<1x128xf32>
    %c0_i32 = arith.constant 0 : i32
    %c26_i32 = arith.constant 26 : i32
    %14 = arith.addi %c0_i32, %c26_i32 : i32
    %c1_i32 = arith.constant 1 : i32
    %15:4 = scf.for %arg10 = %c0_i32 to %14 step %c1_i32 iter_args(%arg11 = %10, %arg12 = %11, %arg13 = %12, %arg14 = %13) -> (vector<1x128xf32>, vector<1x128xf32>, vector<1x128xf32>, vector<1x128xf32>)  : i32 {
      %c4_i32 = arith.constant 4 : i32
      %25 = arith.muli %arg10, %c4_i32 : i32
      %c0_i32_23 = arith.constant 0 : i32
      %26 = arith.addi %25, %c0_i32_23 : i32
      %c0_i32_24 = arith.constant 0 : i32
      %27 = arith.subi %26, %c0_i32_24 : i32
      %c0_i32_25 = arith.constant 0 : i32
      %c99_i32 = arith.constant 99 : i32
      %28 = arith.maxsi %c0_i32_25, %27 : i32
      %29 = arith.minsi %c99_i32, %28 : i32
      %30 = arith.index_cast %29 : i32 to index
      %c0_26 = arith.constant 0 : index
      %31 = vector.load %arg9[%30, %c0_26] : memref<100x128xf32, #tpu.memory_space<vmem>>, vector<1x128xf32>
      %32 = arith.truncf %arg11 : vector<1x128xf32> to vector<1x128xbf16>
      %c0_27 = arith.constant 0 : index
      %c0_28 = arith.constant 0 : index
      %c0_29 = arith.constant 0 : index
      %33 = vector.load %arg3[%c0_27, %c0_28, %c0_29] : memref<4x128x128xbf16, #tpu.memory_space<vmem>>, vector<1x128x128xbf16>
      %34 = vector.shape_cast %33 : vector<1x128x128xbf16> to vector<128x128xbf16>
      %cst_30 = arith.constant dense<0.000000e+00> : vector<1x128xf32>
      %35 = tpu.matmul %32, %34, %cst_30 {dimension_numbers = #tpu.dot_dimension_numbers<[1], [0], [0], [1], [0, 0, 1, 1], [], []>} : vector<1x128xbf16>, vector<128x128xbf16>, vector<1x128xf32> -> vector<1x128xf32>
      %36 = arith.addf %31, %35 : vector<1x128xf32>
      %37 = math.tanh %36 : vector<1x128xf32>
      %c0_i32_31 = arith.constant 0 : i32
      %38 = arith.cmpi sge, %27, %c0_i32_31 : i32
      %c100_i32 = arith.constant 100 : i32
      %39 = arith.cmpi slt, %27, %c100_i32 : i32
      %40 = arith.andi %38, %39 : i1
      %41 = arith.select %40, %37, %arg11 : vector<1x128xf32>
      %c1_i32_32 = arith.constant 1 : i32
      %42 = arith.subi %26, %c1_i32_32 : i32
      %43 = arith.truncf %arg11 : vector<1x128xf32> to vector<1x128xbf16>
      %c1 = arith.constant 1 : index
      %c0_33 = arith.constant 0 : index
      %c0_34 = arith.constant 0 : index
      %44 = vector.load %arg2[%c1, %c0_33, %c0_34] : memref<4x128x128xbf16, #tpu.memory_space<vmem>>, vector<1x128x128xbf16>
      %45 = vector.shape_cast %44 : vector<1x128x128xbf16> to vector<128x128xbf16>
      %cst_35 = arith.constant dense<0.000000e+00> : vector<1x128xf32>
      %46 = tpu.matmul %43, %45, %cst_35 {dimension_numbers = #tpu.dot_dimension_numbers<[1], [0], [0], [1], [0, 0, 1, 1], [], []>} : vector<1x128xbf16>, vector<128x128xbf16>, vector<1x128xf32> -> vector<1x128xf32>
      %c1_36 = arith.constant 1 : index
      %c0_37 = arith.constant 0 : index
      %c0_38 = arith.constant 0 : index
      %47 = vector.load %arg4[%c1_36, %c0_37, %c0_38] : memref<4x1x128xf32, #tpu.memory_space<vmem>>, vector<1x1x128xf32>
      %48 = vector.shape_cast %47 : vector<1x1x128xf32> to vector<1x128xf32>
      %49 = arith.addf %46, %48 : vector<1x128xf32>
      %50 = arith.truncf %arg12 : vector<1x128xf32> to vector<1x128xbf16>
      %c1_39 = arith.constant 1 : index
      %c0_40 = arith.constant 0 : index
      %c0_41 = arith.constant 0 : index
      %51 = vector.load %arg3[%c1_39, %c0_40, %c0_41] : memref<4x128x128xbf16, #tpu.memory_space<vmem>>, vector<1x128x128xbf16>
      %52 = vector.shape_cast %51 : vector<1x128x128xbf16> to vector<128x128xbf16>
      %cst_42 = arith.constant dense<0.000000e+00> : vector<1x128xf32>
      %53 = tpu.matmul %50, %52, %cst_42 {dimension_numbers = #tpu.dot_dimension_numbers<[1], [0], [0], [1], [0, 0, 1, 1], [], []>} : vector<1x128xbf16>, vector<128x128xbf16>, vector<1x128xf32> -> vector<1x128xf32>
      %54 = arith.addf %49, %53 : vector<1x128xf32>
      %55 = math.tanh %54 : vector<1x128xf32>
      %c0_i32_43 = arith.constant 0 : i32
      %56 = arith.cmpi sge, %42, %c0_i32_43 : i32
      %c100_i32_44 = arith.constant 100 : i32
      %57 = arith.cmpi slt, %42, %c100_i32_44 : i32
      %58 = arith.andi %56, %57 : i1
      %59 = arith.select %58, %55, %arg12 : vector<1x128xf32>
      %c2_i32 = arith.constant 2 : i32
      %60 = arith.subi %26, %c2_i32 : i32
      %61 = arith.truncf %arg12 : vector<1x128xf32> to vector<1x128xbf16>
      %c2 = arith.constant 2 : index
      %c0_45 = arith.constant 0 : index
      %c0_46 = arith.constant 0 : index
      %62 = vector.load %arg2[%c2, %c0_45, %c0_46] : memref<4x128x128xbf16, #tpu.memory_space<vmem>>, vector<1x128x128xbf16>
      %63 = vector.shape_cast %62 : vector<1x128x128xbf16> to vector<128x128xbf16>
      %cst_47 = arith.constant dense<0.000000e+00> : vector<1x128xf32>
      %64 = tpu.matmul %61, %63, %cst_47 {dimension_numbers = #tpu.dot_dimension_numbers<[1], [0], [0], [1], [0, 0, 1, 1], [], []>} : vector<1x128xbf16>, vector<128x128xbf16>, vector<1x128xf32> -> vector<1x128xf32>
      %c2_48 = arith.constant 2 : index
      %c0_49 = arith.constant 0 : index
      %c0_50 = arith.constant 0 : index
      %65 = vector.load %arg4[%c2_48, %c0_49, %c0_50] : memref<4x1x128xf32, #tpu.memory_space<vmem>>, vector<1x1x128xf32>
      %66 = vector.shape_cast %65 : vector<1x1x128xf32> to vector<1x128xf32>
      %67 = arith.addf %64, %66 : vector<1x128xf32>
      %68 = arith.truncf %arg13 : vector<1x128xf32> to vector<1x128xbf16>
      %c2_51 = arith.constant 2 : index
      %c0_52 = arith.constant 0 : index
      %c0_53 = arith.constant 0 : index
      %69 = vector.load %arg3[%c2_51, %c0_52, %c0_53] : memref<4x128x128xbf16, #tpu.memory_space<vmem>>, vector<1x128x128xbf16>
      %70 = vector.shape_cast %69 : vector<1x128x128xbf16> to vector<128x128xbf16>
      %cst_54 = arith.constant dense<0.000000e+00> : vector<1x128xf32>
      %71 = tpu.matmul %68, %70, %cst_54 {dimension_numbers = #tpu.dot_dimension_numbers<[1], [0], [0], [1], [0, 0, 1, 1], [], []>} : vector<1x128xbf16>, vector<128x128xbf16>, vector<1x128xf32> -> vector<1x128xf32>
      %72 = arith.addf %67, %71 : vector<1x128xf32>
      %73 = math.tanh %72 : vector<1x128xf32>
      %c0_i32_55 = arith.constant 0 : i32
      %74 = arith.cmpi sge, %60, %c0_i32_55 : i32
      %c100_i32_56 = arith.constant 100 : i32
      %75 = arith.cmpi slt, %60, %c100_i32_56 : i32
      %76 = arith.andi %74, %75 : i1
      %77 = arith.select %76, %73, %arg13 : vector<1x128xf32>
      %c3_i32 = arith.constant 3 : i32
      %78 = arith.subi %26, %c3_i32 : i32
      %79 = arith.truncf %arg13 : vector<1x128xf32> to vector<1x128xbf16>
      %c3 = arith.constant 3 : index
      %c0_57 = arith.constant 0 : index
      %c0_58 = arith.constant 0 : index
      %80 = vector.load %arg2[%c3, %c0_57, %c0_58] : memref<4x128x128xbf16, #tpu.memory_space<vmem>>, vector<1x128x128xbf16>
      %81 = vector.shape_cast %80 : vector<1x128x128xbf16> to vector<128x128xbf16>
      %cst_59 = arith.constant dense<0.000000e+00> : vector<1x128xf32>
      %82 = tpu.matmul %79, %81, %cst_59 {dimension_numbers = #tpu.dot_dimension_numbers<[1], [0], [0], [1], [0, 0, 1, 1], [], []>} : vector<1x128xbf16>, vector<128x128xbf16>, vector<1x128xf32> -> vector<1x128xf32>
      %c3_60 = arith.constant 3 : index
      %c0_61 = arith.constant 0 : index
      %c0_62 = arith.constant 0 : index
      %83 = vector.load %arg4[%c3_60, %c0_61, %c0_62] : memref<4x1x128xf32, #tpu.memory_space<vmem>>, vector<1x1x128xf32>
      %84 = vector.shape_cast %83 : vector<1x1x128xf32> to vector<1x128xf32>
      %85 = arith.addf %82, %84 : vector<1x128xf32>
      %86 = arith.truncf %arg14 : vector<1x128xf32> to vector<1x128xbf16>
      %c3_63 = arith.constant 3 : index
      %c0_64 = arith.constant 0 : index
      %c0_65 = arith.constant 0 : index
      %87 = vector.load %arg3[%c3_63, %c0_64, %c0_65] : memref<4x128x128xbf16, #tpu.memory_space<vmem>>, vector<1x128x128xbf16>
      %88 = vector.shape_cast %87 : vector<1x128x128xbf16> to vector<128x128xbf16>
      %cst_66 = arith.constant dense<0.000000e+00> : vector<1x128xf32>
      %89 = tpu.matmul %86, %88, %cst_66 {dimension_numbers = #tpu.dot_dimension_numbers<[1], [0], [0], [1], [0, 0, 1, 1], [], []>} : vector<1x128xbf16>, vector<128x128xbf16>, vector<1x128xf32> -> vector<1x128xf32>
      %90 = arith.addf %85, %89 : vector<1x128xf32>
      %91 = math.tanh %90 : vector<1x128xf32>
      %c0_i32_67 = arith.constant 0 : i32
      %92 = arith.cmpi sge, %78, %c0_i32_67 : i32
      %c100_i32_68 = arith.constant 100 : i32
      %93 = arith.cmpi slt, %78, %c100_i32_68 : i32
      %94 = arith.andi %92, %93 : i1
      %95 = arith.select %94, %91, %arg14 : vector<1x128xf32>
      %c3_i32_69 = arith.constant 3 : i32
      %96 = arith.subi %26, %c3_i32_69 : i32
      %c0_i32_70 = arith.constant 0 : i32
      %c99_i32_71 = arith.constant 99 : i32
      %97 = arith.maxsi %c0_i32_70, %96 : i32
      %98 = arith.minsi %c99_i32_71, %97 : i32
      %c0_i32_72 = arith.constant 0 : i32
      %99 = arith.cmpi sge, %96, %c0_i32_72 : i32
      %c100_i32_73 = arith.constant 100 : i32
      %100 = arith.cmpi slt, %96, %c100_i32_73 : i32
      %101 = arith.andi %99, %100 : i1
      %102 = arith.extui %101 : i1 to i32
      %c0_i32_74 = arith.constant 0 : i32
      %103 = arith.cmpi ne, %102, %c0_i32_74 : i32
      scf.if %103 {
        %341 = arith.index_cast %98 : i32 to index
        %c0_255 = arith.constant 0 : index
        %342 = vector.load %arg8[%341, %c0_255] : memref<100x128xf32, #tpu.memory_space<vmem>>, vector<1x128xf32>
        tpu.vector_store %arg8[%341, %c0_255], %95 {strides = array<i32>} : memref<100x128xf32, #tpu.memory_space<vmem>>, vector<1x128xf32>,
      } else {
      }
      %c4_i32_75 = arith.constant 4 : i32
      %104 = arith.muli %arg10, %c4_i32_75 : i32
      %c1_i32_76 = arith.constant 1 : i32
      %105 = arith.addi %104, %c1_i32_76 : i32
      %c0_i32_77 = arith.constant 0 : i32
      %106 = arith.subi %105, %c0_i32_77 : i32
      %c0_i32_78 = arith.constant 0 : i32
      %c99_i32_79 = arith.constant 99 : i32
      %107 = arith.maxsi %c0_i32_78, %106 : i32
      %108 = arith.minsi %c99_i32_79, %107 : i32
      %109 = arith.index_cast %108 : i32 to index
      %c0_80 = arith.constant 0 : index
      %110 = vector.load %arg9[%109, %c0_80] : memref<100x128xf32, #tpu.memory_space<vmem>>, vector<1x128xf32>
      %111 = arith.truncf %41 : vector<1x128xf32> to vector<1x128xbf16>
      %c0_81 = arith.constant 0 : index
      %c0_82 = arith.constant 0 : index
      %c0_83 = arith.constant 0 : index
      %112 = vector.load %arg3[%c0_81, %c0_82, %c0_83] : memref<4x128x128xbf16, #tpu.memory_space<vmem>>, vector<1x128x128xbf16>
      %113 = vector.shape_cast %112 : vector<1x128x128xbf16> to vector<128x128xbf16>
      %cst_84 = arith.constant dense<0.000000e+00> : vector<1x128xf32>
      %114 = tpu.matmul %111, %113, %cst_84 {dimension_numbers = #tpu.dot_dimension_numbers<[1], [0], [0], [1], [0, 0, 1, 1], [], []>} : vector<1x128xbf16>, vector<128x128xbf16>, vector<1x128xf32> -> vector<1x128xf32>
      %115 = arith.addf %110, %114 : vector<1x128xf32>
      %116 = math.tanh %115 : vector<1x128xf32>
      %c0_i32_85 = arith.constant 0 : i32
      %117 = arith.cmpi sge, %106, %c0_i32_85 : i32
      %c100_i32_86 = arith.constant 100 : i32
      %118 = arith.cmpi slt, %106, %c100_i32_86 : i32
      %119 = arith.andi %117, %118 : i1
      %120 = arith.select %119, %116, %41 : vector<1x128xf32>
      %c1_i32_87 = arith.constant 1 : i32
      %121 = arith.subi %105, %c1_i32_87 : i32
      %122 = arith.truncf %41 : vector<1x128xf32> to vector<1x128xbf16>
      %c1_88 = arith.constant 1 : index
      %c0_89 = arith.constant 0 : index
      %c0_90 = arith.constant 0 : index
      %123 = vector.load %arg2[%c1_88, %c0_89, %c0_90] : memref<4x128x128xbf16, #tpu.memory_space<vmem>>, vector<1x128x128xbf16>
      %124 = vector.shape_cast %123 : vector<1x128x128xbf16> to vector<128x128xbf16>
      %cst_91 = arith.constant dense<0.000000e+00> : vector<1x128xf32>
      %125 = tpu.matmul %122, %124, %cst_91 {dimension_numbers = #tpu.dot_dimension_numbers<[1], [0], [0], [1], [0, 0, 1, 1], [], []>} : vector<1x128xbf16>, vector<128x128xbf16>, vector<1x128xf32> -> vector<1x128xf32>
      %c1_92 = arith.constant 1 : index
      %c0_93 = arith.constant 0 : index
      %c0_94 = arith.constant 0 : index
      %126 = vector.load %arg4[%c1_92, %c0_93, %c0_94] : memref<4x1x128xf32, #tpu.memory_space<vmem>>, vector<1x1x128xf32>
      %127 = vector.shape_cast %126 : vector<1x1x128xf32> to vector<1x128xf32>
      %128 = arith.addf %125, %127 : vector<1x128xf32>
      %129 = arith.truncf %59 : vector<1x128xf32> to vector<1x128xbf16>
      %c1_95 = arith.constant 1 : index
      %c0_96 = arith.constant 0 : index
      %c0_97 = arith.constant 0 : index
      %130 = vector.load %arg3[%c1_95, %c0_96, %c0_97] : memref<4x128x128xbf16, #tpu.memory_space<vmem>>, vector<1x128x128xbf16>
      %131 = vector.shape_cast %130 : vector<1x128x128xbf16> to vector<128x128xbf16>
      %cst_98 = arith.constant dense<0.000000e+00> : vector<1x128xf32>
      %132 = tpu.matmul %129, %131, %cst_98 {dimension_numbers = #tpu.dot_dimension_numbers<[1], [0], [0], [1], [0, 0, 1, 1], [], []>} : vector<1x128xbf16>, vector<128x128xbf16>, vector<1x128xf32> -> vector<1x128xf32>
      %133 = arith.addf %128, %132 : vector<1x128xf32>
      %134 = math.tanh %133 : vector<1x128xf32>
      %c0_i32_99 = arith.constant 0 : i32
      %135 = arith.cmpi sge, %121, %c0_i32_99 : i32
      %c100_i32_100 = arith.constant 100 : i32
      %136 = arith.cmpi slt, %121, %c100_i32_100 : i32
      %137 = arith.andi %135, %136 : i1
      %138 = arith.select %137, %134, %59 : vector<1x128xf32>
      %c2_i32_101 = arith.constant 2 : i32
      %139 = arith.subi %105, %c2_i32_101 : i32
      %140 = arith.truncf %59 : vector<1x128xf32> to vector<1x128xbf16>
      %c2_102 = arith.constant 2 : index
      %c0_103 = arith.constant 0 : index
      %c0_104 = arith.constant 0 : index
      %141 = vector.load %arg2[%c2_102, %c0_103, %c0_104] : memref<4x128x128xbf16, #tpu.memory_space<vmem>>, vector<1x128x128xbf16>
      %142 = vector.shape_cast %141 : vector<1x128x128xbf16> to vector<128x128xbf16>
      %cst_105 = arith.constant dense<0.000000e+00> : vector<1x128xf32>
      %143 = tpu.matmul %140, %142, %cst_105 {dimension_numbers = #tpu.dot_dimension_numbers<[1], [0], [0], [1], [0, 0, 1, 1], [], []>} : vector<1x128xbf16>, vector<128x128xbf16>, vector<1x128xf32> -> vector<1x128xf32>
      %c2_106 = arith.constant 2 : index
      %c0_107 = arith.constant 0 : index
      %c0_108 = arith.constant 0 : index
      %144 = vector.load %arg4[%c2_106, %c0_107, %c0_108] : memref<4x1x128xf32, #tpu.memory_space<vmem>>, vector<1x1x128xf32>
      %145 = vector.shape_cast %144 : vector<1x1x128xf32> to vector<1x128xf32>
      %146 = arith.addf %143, %145 : vector<1x128xf32>
      %147 = arith.truncf %77 : vector<1x128xf32> to vector<1x128xbf16>
      %c2_109 = arith.constant 2 : index
      %c0_110 = arith.constant 0 : index
      %c0_111 = arith.constant 0 : index
      %148 = vector.load %arg3[%c2_109, %c0_110, %c0_111] : memref<4x128x128xbf16, #tpu.memory_space<vmem>>, vector<1x128x128xbf16>
      %149 = vector.shape_cast %148 : vector<1x128x128xbf16> to vector<128x128xbf16>
      %cst_112 = arith.constant dense<0.000000e+00> : vector<1x128xf32>
      %150 = tpu.matmul %147, %149, %cst_112 {dimension_numbers = #tpu.dot_dimension_numbers<[1], [0], [0], [1], [0, 0, 1, 1], [], []>} : vector<1x128xbf16>, vector<128x128xbf16>, vector<1x128xf32> -> vector<1x128xf32>
      %151 = arith.addf %146, %150 : vector<1x128xf32>
      %152 = math.tanh %151 : vector<1x128xf32>
      %c0_i32_113 = arith.constant 0 : i32
      %153 = arith.cmpi sge, %139, %c0_i32_113 : i32
      %c100_i32_114 = arith.constant 100 : i32
      %154 = arith.cmpi slt, %139, %c100_i32_114 : i32
      %155 = arith.andi %153, %154 : i1
      %156 = arith.select %155, %152, %77 : vector<1x128xf32>
      %c3_i32_115 = arith.constant 3 : i32
      %157 = arith.subi %105, %c3_i32_115 : i32
      %158 = arith.truncf %77 : vector<1x128xf32> to vector<1x128xbf16>
      %c3_116 = arith.constant 3 : index
      %c0_117 = arith.constant 0 : index
      %c0_118 = arith.constant 0 : index
      %159 = vector.load %arg2[%c3_116, %c0_117, %c0_118] : memref<4x128x128xbf16, #tpu.memory_space<vmem>>, vector<1x128x128xbf16>
      %160 = vector.shape_cast %159 : vector<1x128x128xbf16> to vector<128x128xbf16>
      %cst_119 = arith.constant dense<0.000000e+00> : vector<1x128xf32>
      %161 = tpu.matmul %158, %160, %cst_119 {dimension_numbers = #tpu.dot_dimension_numbers<[1], [0], [0], [1], [0, 0, 1, 1], [], []>} : vector<1x128xbf16>, vector<128x128xbf16>, vector<1x128xf32> -> vector<1x128xf32>
      %c3_120 = arith.constant 3 : index
      %c0_121 = arith.constant 0 : index
      %c0_122 = arith.constant 0 : index
      %162 = vector.load %arg4[%c3_120, %c0_121, %c0_122] : memref<4x1x128xf32, #tpu.memory_space<vmem>>, vector<1x1x128xf32>
      %163 = vector.shape_cast %162 : vector<1x1x128xf32> to vector<1x128xf32>
      %164 = arith.addf %161, %163 : vector<1x128xf32>
      %165 = arith.truncf %95 : vector<1x128xf32> to vector<1x128xbf16>
      %c3_123 = arith.constant 3 : index
      %c0_124 = arith.constant 0 : index
      %c0_125 = arith.constant 0 : index
      %166 = vector.load %arg3[%c3_123, %c0_124, %c0_125] : memref<4x128x128xbf16, #tpu.memory_space<vmem>>, vector<1x128x128xbf16>
      %167 = vector.shape_cast %166 : vector<1x128x128xbf16> to vector<128x128xbf16>
      %cst_126 = arith.constant dense<0.000000e+00> : vector<1x128xf32>
      %168 = tpu.matmul %165, %167, %cst_126 {dimension_numbers = #tpu.dot_dimension_numbers<[1], [0], [0], [1], [0, 0, 1, 1], [], []>} : vector<1x128xbf16>, vector<128x128xbf16>, vector<1x128xf32> -> vector<1x128xf32>
      %169 = arith.addf %164, %168 : vector<1x128xf32>
      %170 = math.tanh %169 : vector<1x128xf32>
      %c0_i32_127 = arith.constant 0 : i32
      %171 = arith.cmpi sge, %157, %c0_i32_127 : i32
      %c100_i32_128 = arith.constant 100 : i32
      %172 = arith.cmpi slt, %157, %c100_i32_128 : i32
      %173 = arith.andi %171, %172 : i1
      %174 = arith.select %173, %170, %95 : vector<1x128xf32>
      %c3_i32_129 = arith.constant 3 : i32
      %175 = arith.subi %105, %c3_i32_129 : i32
      %c0_i32_130 = arith.constant 0 : i32
      %c99_i32_131 = arith.constant 99 : i32
      %176 = arith.maxsi %c0_i32_130, %175 : i32
      %177 = arith.minsi %c99_i32_131, %176 : i32
      %c0_i32_132 = arith.constant 0 : i32
      %178 = arith.cmpi sge, %175, %c0_i32_132 : i32
      %c100_i32_133 = arith.constant 100 : i32
      %179 = arith.cmpi slt, %175, %c100_i32_133 : i32
      %180 = arith.andi %178, %179 : i1
      %181 = arith.extui %180 : i1 to i32
      %c0_i32_134 = arith.constant 0 : i32
      %182 = arith.cmpi ne, %181, %c0_i32_134 : i32
      scf.if %182 {
        %341 = arith.index_cast %177 : i32 to index
        %c0_255 = arith.constant 0 : index
        %342 = vector.load %arg8[%341, %c0_255] : memref<100x128xf32, #tpu.memory_space<vmem>>, vector<1x128xf32>
        tpu.vector_store %arg8[%341, %c0_255], %174 {strides = array<i32>} : memref<100x128xf32, #tpu.memory_space<vmem>>, vector<1x128xf32>,
      } else {
      }
      %c4_i32_135 = arith.constant 4 : i32
      %183 = arith.muli %arg10, %c4_i32_135 : i32
      %c2_i32_136 = arith.constant 2 : i32
      %184 = arith.addi %183, %c2_i32_136 : i32
      %c0_i32_137 = arith.constant 0 : i32
      %185 = arith.subi %184, %c0_i32_137 : i32
      %c0_i32_138 = arith.constant 0 : i32
      %c99_i32_139 = arith.constant 99 : i32
      %186 = arith.maxsi %c0_i32_138, %185 : i32
      %187 = arith.minsi %c99_i32_139, %186 : i32
      %188 = arith.index_cast %187 : i32 to index
      %c0_140 = arith.constant 0 : index
      %189 = vector.load %arg9[%188, %c0_140] : memref<100x128xf32, #tpu.memory_space<vmem>>, vector<1x128xf32>
      %190 = arith.truncf %120 : vector<1x128xf32> to vector<1x128xbf16>
      %c0_141 = arith.constant 0 : index
      %c0_142 = arith.constant 0 : index
      %c0_143 = arith.constant 0 : index
      %191 = vector.load %arg3[%c0_141, %c0_142, %c0_143] : memref<4x128x128xbf16, #tpu.memory_space<vmem>>, vector<1x128x128xbf16>
      %192 = vector.shape_cast %191 : vector<1x128x128xbf16> to vector<128x128xbf16>
      %cst_144 = arith.constant dense<0.000000e+00> : vector<1x128xf32>
      %193 = tpu.matmul %190, %192, %cst_144 {dimension_numbers = #tpu.dot_dimension_numbers<[1], [0], [0], [1], [0, 0, 1, 1], [], []>} : vector<1x128xbf16>, vector<128x128xbf16>, vector<1x128xf32> -> vector<1x128xf32>
      %194 = arith.addf %189, %193 : vector<1x128xf32>
      %195 = math.tanh %194 : vector<1x128xf32>
      %c0_i32_145 = arith.constant 0 : i32
      %196 = arith.cmpi sge, %185, %c0_i32_145 : i32
      %c100_i32_146 = arith.constant 100 : i32
      %197 = arith.cmpi slt, %185, %c100_i32_146 : i32
      %198 = arith.andi %196, %197 : i1
      %199 = arith.select %198, %195, %120 : vector<1x128xf32>
      %c1_i32_147 = arith.constant 1 : i32
      %200 = arith.subi %184, %c1_i32_147 : i32
      %201 = arith.truncf %120 : vector<1x128xf32> to vector<1x128xbf16>
      %c1_148 = arith.constant 1 : index
      %c0_149 = arith.constant 0 : index
      %c0_150 = arith.constant 0 : index
      %202 = vector.load %arg2[%c1_148, %c0_149, %c0_150] : memref<4x128x128xbf16, #tpu.memory_space<vmem>>, vector<1x128x128xbf16>
      %203 = vector.shape_cast %202 : vector<1x128x128xbf16> to vector<128x128xbf16>
      %cst_151 = arith.constant dense<0.000000e+00> : vector<1x128xf32>
      %204 = tpu.matmul %201, %203, %cst_151 {dimension_numbers = #tpu.dot_dimension_numbers<[1], [0], [0], [1], [0, 0, 1, 1], [], []>} : vector<1x128xbf16>, vector<128x128xbf16>, vector<1x128xf32> -> vector<1x128xf32>
      %c1_152 = arith.constant 1 : index
      %c0_153 = arith.constant 0 : index
      %c0_154 = arith.constant 0 : index
      %205 = vector.load %arg4[%c1_152, %c0_153, %c0_154] : memref<4x1x128xf32, #tpu.memory_space<vmem>>, vector<1x1x128xf32>
      %206 = vector.shape_cast %205 : vector<1x1x128xf32> to vector<1x128xf32>
      %207 = arith.addf %204, %206 : vector<1x128xf32>
      %208 = arith.truncf %138 : vector<1x128xf32> to vector<1x128xbf16>
      %c1_155 = arith.constant 1 : index
      %c0_156 = arith.constant 0 : index
      %c0_157 = arith.constant 0 : index
      %209 = vector.load %arg3[%c1_155, %c0_156, %c0_157] : memref<4x128x128xbf16, #tpu.memory_space<vmem>>, vector<1x128x128xbf16>
      %210 = vector.shape_cast %209 : vector<1x128x128xbf16> to vector<128x128xbf16>
      %cst_158 = arith.constant dense<0.000000e+00> : vector<1x128xf32>
      %211 = tpu.matmul %208, %210, %cst_158 {dimension_numbers = #tpu.dot_dimension_numbers<[1], [0], [0], [1], [0, 0, 1, 1], [], []>} : vector<1x128xbf16>, vector<128x128xbf16>, vector<1x128xf32> -> vector<1x128xf32>
      %212 = arith.addf %207, %211 : vector<1x128xf32>
      %213 = math.tanh %212 : vector<1x128xf32>
      %c0_i32_159 = arith.constant 0 : i32
      %214 = arith.cmpi sge, %200, %c0_i32_159 : i32
      %c100_i32_160 = arith.constant 100 : i32
      %215 = arith.cmpi slt, %200, %c100_i32_160 : i32
      %216 = arith.andi %214, %215 : i1
      %217 = arith.select %216, %213, %138 : vector<1x128xf32>
      %c2_i32_161 = arith.constant 2 : i32
      %218 = arith.subi %184, %c2_i32_161 : i32
      %219 = arith.truncf %138 : vector<1x128xf32> to vector<1x128xbf16>
      %c2_162 = arith.constant 2 : index
      %c0_163 = arith.constant 0 : index
      %c0_164 = arith.constant 0 : index
      %220 = vector.load %arg2[%c2_162, %c0_163, %c0_164] : memref<4x128x128xbf16, #tpu.memory_space<vmem>>, vector<1x128x128xbf16>
      %221 = vector.shape_cast %220 : vector<1x128x128xbf16> to vector<128x128xbf16>
      %cst_165 = arith.constant dense<0.000000e+00> : vector<1x128xf32>
      %222 = tpu.matmul %219, %221, %cst_165 {dimension_numbers = #tpu.dot_dimension_numbers<[1], [0], [0], [1], [0, 0, 1, 1], [], []>} : vector<1x128xbf16>, vector<128x128xbf16>, vector<1x128xf32> -> vector<1x128xf32>
      %c2_166 = arith.constant 2 : index
      %c0_167 = arith.constant 0 : index
      %c0_168 = arith.constant 0 : index
      %223 = vector.load %arg4[%c2_166, %c0_167, %c0_168] : memref<4x1x128xf32, #tpu.memory_space<vmem>>, vector<1x1x128xf32>
      %224 = vector.shape_cast %223 : vector<1x1x128xf32> to vector<1x128xf32>
      %225 = arith.addf %222, %224 : vector<1x128xf32>
      %226 = arith.truncf %156 : vector<1x128xf32> to vector<1x128xbf16>
      %c2_169 = arith.constant 2 : index
      %c0_170 = arith.constant 0 : index
      %c0_171 = arith.constant 0 : index
      %227 = vector.load %arg3[%c2_169, %c0_170, %c0_171] : memref<4x128x128xbf16, #tpu.memory_space<vmem>>, vector<1x128x128xbf16>
      %228 = vector.shape_cast %227 : vector<1x128x128xbf16> to vector<128x128xbf16>
      %cst_172 = arith.constant dense<0.000000e+00> : vector<1x128xf32>
      %229 = tpu.matmul %226, %228, %cst_172 {dimension_numbers = #tpu.dot_dimension_numbers<[1], [0], [0], [1], [0, 0, 1, 1], [], []>} : vector<1x128xbf16>, vector<128x128xbf16>, vector<1x128xf32> -> vector<1x128xf32>
      %230 = arith.addf %225, %229 : vector<1x128xf32>
      %231 = math.tanh %230 : vector<1x128xf32>
      %c0_i32_173 = arith.constant 0 : i32
      %232 = arith.cmpi sge, %218, %c0_i32_173 : i32
      %c100_i32_174 = arith.constant 100 : i32
      %233 = arith.cmpi slt, %218, %c100_i32_174 : i32
      %234 = arith.andi %232, %233 : i1
      %235 = arith.select %234, %231, %156 : vector<1x128xf32>
      %c3_i32_175 = arith.constant 3 : i32
      %236 = arith.subi %184, %c3_i32_175 : i32
      %237 = arith.truncf %156 : vector<1x128xf32> to vector<1x128xbf16>
      %c3_176 = arith.constant 3 : index
      %c0_177 = arith.constant 0 : index
      %c0_178 = arith.constant 0 : index
      %238 = vector.load %arg2[%c3_176, %c0_177, %c0_178] : memref<4x128x128xbf16, #tpu.memory_space<vmem>>, vector<1x128x128xbf16>
      %239 = vector.shape_cast %238 : vector<1x128x128xbf16> to vector<128x128xbf16>
      %cst_179 = arith.constant dense<0.000000e+00> : vector<1x128xf32>
      %240 = tpu.matmul %237, %239, %cst_179 {dimension_numbers = #tpu.dot_dimension_numbers<[1], [0], [0], [1], [0, 0, 1, 1], [], []>} : vector<1x128xbf16>, vector<128x128xbf16>, vector<1x128xf32> -> vector<1x128xf32>
      %c3_180 = arith.constant 3 : index
      %c0_181 = arith.constant 0 : index
      %c0_182 = arith.constant 0 : index
      %241 = vector.load %arg4[%c3_180, %c0_181, %c0_182] : memref<4x1x128xf32, #tpu.memory_space<vmem>>, vector<1x1x128xf32>
      %242 = vector.shape_cast %241 : vector<1x1x128xf32> to vector<1x128xf32>
      %243 = arith.addf %240, %242 : vector<1x128xf32>
      %244 = arith.truncf %174 : vector<1x128xf32> to vector<1x128xbf16>
      %c3_183 = arith.constant 3 : index
      %c0_184 = arith.constant 0 : index
      %c0_185 = arith.constant 0 : index
      %245 = vector.load %arg3[%c3_183, %c0_184, %c0_185] : memref<4x128x128xbf16, #tpu.memory_space<vmem>>, vector<1x128x128xbf16>
      %246 = vector.shape_cast %245 : vector<1x128x128xbf16> to vector<128x128xbf16>
      %cst_186 = arith.constant dense<0.000000e+00> : vector<1x128xf32>
      %247 = tpu.matmul %244, %246, %cst_186 {dimension_numbers = #tpu.dot_dimension_numbers<[1], [0], [0], [1], [0, 0, 1, 1], [], []>} : vector<1x128xbf16>, vector<128x128xbf16>, vector<1x128xf32> -> vector<1x128xf32>
      %248 = arith.addf %243, %247 : vector<1x128xf32>
      %249 = math.tanh %248 : vector<1x128xf32>
      %c0_i32_187 = arith.constant 0 : i32
      %250 = arith.cmpi sge, %236, %c0_i32_187 : i32
      %c100_i32_188 = arith.constant 100 : i32
      %251 = arith.cmpi slt, %236, %c100_i32_188 : i32
      %252 = arith.andi %250, %251 : i1
      %253 = arith.select %252, %249, %174 : vector<1x128xf32>
      %c3_i32_189 = arith.constant 3 : i32
      %254 = arith.subi %184, %c3_i32_189 : i32
      %c0_i32_190 = arith.constant 0 : i32
      %c99_i32_191 = arith.constant 99 : i32
      %255 = arith.maxsi %c0_i32_190, %254 : i32
      %256 = arith.minsi %c99_i32_191, %255 : i32
      %c0_i32_192 = arith.constant 0 : i32
      %257 = arith.cmpi sge, %254, %c0_i32_192 : i32
      %c100_i32_193 = arith.constant 100 : i32
      %258 = arith.cmpi slt, %254, %c100_i32_193 : i32
      %259 = arith.andi %257, %258 : i1
      %260 = arith.extui %259 : i1 to i32
      %c0_i32_194 = arith.constant 0 : i32
      %261 = arith.cmpi ne, %260, %c0_i32_194 : i32
      scf.if %261 {
        %341 = arith.index_cast %256 : i32 to index
        %c0_255 = arith.constant 0 : index
        %342 = vector.load %arg8[%341, %c0_255] : memref<100x128xf32, #tpu.memory_space<vmem>>, vector<1x128xf32>
        tpu.vector_store %arg8[%341, %c0_255], %253 {strides = array<i32>} : memref<100x128xf32, #tpu.memory_space<vmem>>, vector<1x128xf32>,
      } else {
      }
      %c4_i32_195 = arith.constant 4 : i32
      %262 = arith.muli %arg10, %c4_i32_195 : i32
      %c3_i32_196 = arith.constant 3 : i32
      %263 = arith.addi %262, %c3_i32_196 : i32
      %c0_i32_197 = arith.constant 0 : i32
      %264 = arith.subi %263, %c0_i32_197 : i32
      %c0_i32_198 = arith.constant 0 : i32
      %c99_i32_199 = arith.constant 99 : i32
      %265 = arith.maxsi %c0_i32_198, %264 : i32
      %266 = arith.minsi %c99_i32_199, %265 : i32
      %267 = arith.index_cast %266 : i32 to index
      %c0_200 = arith.constant 0 : index
      %268 = vector.load %arg9[%267, %c0_200] : memref<100x128xf32, #tpu.memory_space<vmem>>, vector<1x128xf32>
      %269 = arith.truncf %199 : vector<1x128xf32> to vector<1x128xbf16>
      %c0_201 = arith.constant 0 : index
      %c0_202 = arith.constant 0 : index
      %c0_203 = arith.constant 0 : index
      %270 = vector.load %arg3[%c0_201, %c0_202, %c0_203] : memref<4x128x128xbf16, #tpu.memory_space<vmem>>, vector<1x128x128xbf16>
      %271 = vector.shape_cast %270 : vector<1x128x128xbf16> to vector<128x128xbf16>
      %cst_204 = arith.constant dense<0.000000e+00> : vector<1x128xf32>
      %272 = tpu.matmul %269, %271, %cst_204 {dimension_numbers = #tpu.dot_dimension_numbers<[1], [0], [0], [1], [0, 0, 1, 1], [], []>} : vector<1x128xbf16>, vector<128x128xbf16>, vector<1x128xf32> -> vector<1x128xf32>
      %273 = arith.addf %268, %272 : vector<1x128xf32>
      %274 = math.tanh %273 : vector<1x128xf32>
      %c0_i32_205 = arith.constant 0 : i32
      %275 = arith.cmpi sge, %264, %c0_i32_205 : i32
      %c100_i32_206 = arith.constant 100 : i32
      %276 = arith.cmpi slt, %264, %c100_i32_206 : i32
      %277 = arith.andi %275, %276 : i1
      %278 = arith.select %277, %274, %199 : vector<1x128xf32>
      %c1_i32_207 = arith.constant 1 : i32
      %279 = arith.subi %263, %c1_i32_207 : i32
      %280 = arith.truncf %199 : vector<1x128xf32> to vector<1x128xbf16>
      %c1_208 = arith.constant 1 : index
      %c0_209 = arith.constant 0 : index
      %c0_210 = arith.constant 0 : index
      %281 = vector.load %arg2[%c1_208, %c0_209, %c0_210] : memref<4x128x128xbf16, #tpu.memory_space<vmem>>, vector<1x128x128xbf16>
      %282 = vector.shape_cast %281 : vector<1x128x128xbf16> to vector<128x128xbf16>
      %cst_211 = arith.constant dense<0.000000e+00> : vector<1x128xf32>
      %283 = tpu.matmul %280, %282, %cst_211 {dimension_numbers = #tpu.dot_dimension_numbers<[1], [0], [0], [1], [0, 0, 1, 1], [], []>} : vector<1x128xbf16>, vector<128x128xbf16>, vector<1x128xf32> -> vector<1x128xf32>
      %c1_212 = arith.constant 1 : index
      %c0_213 = arith.constant 0 : index
      %c0_214 = arith.constant 0 : index
      %284 = vector.load %arg4[%c1_212, %c0_213, %c0_214] : memref<4x1x128xf32, #tpu.memory_space<vmem>>, vector<1x1x128xf32>
      %285 = vector.shape_cast %284 : vector<1x1x128xf32> to vector<1x128xf32>
      %286 = arith.addf %283, %285 : vector<1x128xf32>
      %287 = arith.truncf %217 : vector<1x128xf32> to vector<1x128xbf16>
      %c1_215 = arith.constant 1 : index
      %c0_216 = arith.constant 0 : index
      %c0_217 = arith.constant 0 : index
      %288 = vector.load %arg3[%c1_215, %c0_216, %c0_217] : memref<4x128x128xbf16, #tpu.memory_space<vmem>>, vector<1x128x128xbf16>
      %289 = vector.shape_cast %288 : vector<1x128x128xbf16> to vector<128x128xbf16>
      %cst_218 = arith.constant dense<0.000000e+00> : vector<1x128xf32>
      %290 = tpu.matmul %287, %289, %cst_218 {dimension_numbers = #tpu.dot_dimension_numbers<[1], [0], [0], [1], [0, 0, 1, 1], [], []>} : vector<1x128xbf16>, vector<128x128xbf16>, vector<1x128xf32> -> vector<1x128xf32>
      %291 = arith.addf %286, %290 : vector<1x128xf32>
      %292 = math.tanh %291 : vector<1x128xf32>
      %c0_i32_219 = arith.constant 0 : i32
      %293 = arith.cmpi sge, %279, %c0_i32_219 : i32
      %c100_i32_220 = arith.constant 100 : i32
      %294 = arith.cmpi slt, %279, %c100_i32_220 : i32
      %295 = arith.andi %293, %294 : i1
      %296 = arith.select %295, %292, %217 : vector<1x128xf32>
      %c2_i32_221 = arith.constant 2 : i32
      %297 = arith.subi %263, %c2_i32_221 : i32
      %298 = arith.truncf %217 : vector<1x128xf32> to vector<1x128xbf16>
      %c2_222 = arith.constant 2 : index
      %c0_223 = arith.constant 0 : index
      %c0_224 = arith.constant 0 : index
      %299 = vector.load %arg2[%c2_222, %c0_223, %c0_224] : memref<4x128x128xbf16, #tpu.memory_space<vmem>>, vector<1x128x128xbf16>
      %300 = vector.shape_cast %299 : vector<1x128x128xbf16> to vector<128x128xbf16>
      %cst_225 = arith.constant dense<0.000000e+00> : vector<1x128xf32>
      %301 = tpu.matmul %298, %300, %cst_225 {dimension_numbers = #tpu.dot_dimension_numbers<[1], [0], [0], [1], [0, 0, 1, 1], [], []>} : vector<1x128xbf16>, vector<128x128xbf16>, vector<1x128xf32> -> vector<1x128xf32>
      %c2_226 = arith.constant 2 : index
      %c0_227 = arith.constant 0 : index
      %c0_228 = arith.constant 0 : index
      %302 = vector.load %arg4[%c2_226, %c0_227, %c0_228] : memref<4x1x128xf32, #tpu.memory_space<vmem>>, vector<1x1x128xf32>
      %303 = vector.shape_cast %302 : vector<1x1x128xf32> to vector<1x128xf32>
      %304 = arith.addf %301, %303 : vector<1x128xf32>
      %305 = arith.truncf %235 : vector<1x128xf32> to vector<1x128xbf16>
      %c2_229 = arith.constant 2 : index
      %c0_230 = arith.constant 0 : index
      %c0_231 = arith.constant 0 : index
      %306 = vector.load %arg3[%c2_229, %c0_230, %c0_231] : memref<4x128x128xbf16, #tpu.memory_space<vmem>>, vector<1x128x128xbf16>
      %307 = vector.shape_cast %306 : vector<1x128x128xbf16> to vector<128x128xbf16>
      %cst_232 = arith.constant dense<0.000000e+00> : vector<1x128xf32>
      %308 = tpu.matmul %305, %307, %cst_232 {dimension_numbers = #tpu.dot_dimension_numbers<[1], [0], [0], [1], [0, 0, 1, 1], [], []>} : vector<1x128xbf16>, vector<128x128xbf16>, vector<1x128xf32> -> vector<1x128xf32>
      %309 = arith.addf %304, %308 : vector<1x128xf32>
      %310 = math.tanh %309 : vector<1x128xf32>
      %c0_i32_233 = arith.constant 0 : i32
      %311 = arith.cmpi sge, %297, %c0_i32_233 : i32
      %c100_i32_234 = arith.constant 100 : i32
      %312 = arith.cmpi slt, %297, %c100_i32_234 : i32
      %313 = arith.andi %311, %312 : i1
      %314 = arith.select %313, %310, %235 : vector<1x128xf32>
      %c3_i32_235 = arith.constant 3 : i32
      %315 = arith.subi %263, %c3_i32_235 : i32
      %316 = arith.truncf %235 : vector<1x128xf32> to vector<1x128xbf16>
      %c3_236 = arith.constant 3 : index
      %c0_237 = arith.constant 0 : index
      %c0_238 = arith.constant 0 : index
      %317 = vector.load %arg2[%c3_236, %c0_237, %c0_238] : memref<4x128x128xbf16, #tpu.memory_space<vmem>>, vector<1x128x128xbf16>
      %318 = vector.shape_cast %317 : vector<1x128x128xbf16> to vector<128x128xbf16>
      %cst_239 = arith.constant dense<0.000000e+00> : vector<1x128xf32>
      %319 = tpu.matmul %316, %318, %cst_239 {dimension_numbers = #tpu.dot_dimension_numbers<[1], [0], [0], [1], [0, 0, 1, 1], [], []>} : vector<1x128xbf16>, vector<128x128xbf16>, vector<1x128xf32> -> vector<1x128xf32>
      %c3_240 = arith.constant 3 : index
      %c0_241 = arith.constant 0 : index
      %c0_242 = arith.constant 0 : index
      %320 = vector.load %arg4[%c3_240, %c0_241, %c0_242] : memref<4x1x128xf32, #tpu.memory_space<vmem>>, vector<1x1x128xf32>
      %321 = vector.shape_cast %320 : vector<1x1x128xf32> to vector<1x128xf32>
      %322 = arith.addf %319, %321 : vector<1x128xf32>
      %323 = arith.truncf %253 : vector<1x128xf32> to vector<1x128xbf16>
      %c3_243 = arith.constant 3 : index
      %c0_244 = arith.constant 0 : index
      %c0_245 = arith.constant 0 : index
      %324 = vector.load %arg3[%c3_243, %c0_244, %c0_245] : memref<4x128x128xbf16, #tpu.memory_space<vmem>>, vector<1x128x128xbf16>
      %325 = vector.shape_cast %324 : vector<1x128x128xbf16> to vector<128x128xbf16>
      %cst_246 = arith.constant dense<0.000000e+00> : vector<1x128xf32>
      %326 = tpu.matmul %323, %325, %cst_246 {dimension_numbers = #tpu.dot_dimension_numbers<[1], [0], [0], [1], [0, 0, 1, 1], [], []>} : vector<1x128xbf16>, vector<128x128xbf16>, vector<1x128xf32> -> vector<1x128xf32>
      %327 = arith.addf %322, %326 : vector<1x128xf32>
      %328 = math.tanh %327 : vector<1x128xf32>
      %c0_i32_247 = arith.constant 0 : i32
      %329 = arith.cmpi sge, %315, %c0_i32_247 : i32
      %c100_i32_248 = arith.constant 100 : i32
      %330 = arith.cmpi slt, %315, %c100_i32_248 : i32
      %331 = arith.andi %329, %330 : i1
      %332 = arith.select %331, %328, %253 : vector<1x128xf32>
      %c3_i32_249 = arith.constant 3 : i32
      %333 = arith.subi %263, %c3_i32_249 : i32
      %c0_i32_250 = arith.constant 0 : i32
      %c99_i32_251 = arith.constant 99 : i32
      %334 = arith.maxsi %c0_i32_250, %333 : i32
      %335 = arith.minsi %c99_i32_251, %334 : i32
      %c0_i32_252 = arith.constant 0 : i32
      %336 = arith.cmpi sge, %333, %c0_i32_252 : i32
      %c100_i32_253 = arith.constant 100 : i32
      %337 = arith.cmpi slt, %333, %c100_i32_253 : i32
      %338 = arith.andi %336, %337 : i1
      %339 = arith.extui %338 : i1 to i32
      %c0_i32_254 = arith.constant 0 : i32
      %340 = arith.cmpi ne, %339, %c0_i32_254 : i32
      scf.if %340 {
        %341 = arith.index_cast %335 : i32 to index
        %c0_255 = arith.constant 0 : index
        %342 = vector.load %arg8[%341, %c0_255] : memref<100x128xf32, #tpu.memory_space<vmem>>, vector<1x128xf32>
        tpu.vector_store %arg8[%341, %c0_255], %332 {strides = array<i32>} : memref<100x128xf32, #tpu.memory_space<vmem>>, vector<1x128xf32>,
      } else {
      }
      scf.yield %278, %296, %314, %332 : vector<1x128xf32>, vector<1x128xf32>, vector<1x128xf32>, vector<1x128xf32>
    }
    %c26_i32_13 = arith.constant 26 : i32
    %c0_14 = arith.constant 0 : index
    %c0_15 = arith.constant 0 : index
    %16 = vector.load %arg8[%c0_14, %c0_15] : memref<100x128xf32, #tpu.memory_space<vmem>>, vector<100x128xf32>
    %17 = arith.truncf %16 : vector<100x128xf32> to vector<100x128xbf16>
    %c0_16 = arith.constant 0 : index
    %c0_17 = arith.constant 0 : index
    %18 = vector.load %arg5[%c0_16, %c0_17] : memref<128x128xbf16, #tpu.memory_space<vmem>>, vector<128x128xbf16>
    %cst_18 = arith.constant dense<0.000000e+00> : vector<100x128xf32>
    %19 = tpu.matmul %17, %18, %cst_18 {dimension_numbers = #tpu.dot_dimension_numbers<[1], [0], [0], [1], [0, 0, 1, 1], [], []>} : vector<100x128xbf16>, vector<128x128xbf16>, vector<100x128xf32> -> vector<100x128xf32>
    %c0_19 = arith.constant 0 : index
    %c0_20 = arith.constant 0 : index
    %20 = vector.load %arg6[%c0_19, %c0_20] : memref<1x128xf32, #tpu.memory_space<vmem>>, vector<1x128xf32>
    %21 = vector.broadcast %20 : vector<1x128xf32> to vector<100x128xf32>
    %22 = arith.addf %19, %21 : vector<100x128xf32>
    %23 = math.tanh %22 : vector<100x128xf32>
    %c0_21 = arith.constant 0 : index
    %c0_22 = arith.constant 0 : index
    %24 = vector.load %arg7[%c0_21, %c0_22] : memref<100x128xf32, #tpu.memory_space<vmem>>, vector<100x128xf32>
    tpu.vector_store %arg7[%c0_21, %c0_22], %23 {strides = array<i32>} : memref<100x128xf32, #tpu.memory_space<vmem>>, vector<100x128xf32>,
    return
  }
  func.func @transform_0(%arg0: i32) -> (i32, i32) {
    %c0_i32 = arith.constant 0 : i32
    %c0_i32_0 = arith.constant 0 : i32
    %c0_i32_1 = arith.constant 0 : i32
    return %c0_i32, %c0_i32_0 : i32, i32
  }
  func.func @transform_1(%arg0: i32) -> (i32, i32, i32) {
    %c0_i32 = arith.constant 0 : i32
    %c0_i32_0 = arith.constant 0 : i32
    %c0_i32_1 = arith.constant 0 : i32
    %c0_i32_2 = arith.constant 0 : i32
    return %c0_i32, %c0_i32_0, %c0_i32_1 : i32, i32, i32
  }
  func.func @transform_2(%arg0: i32) -> (i32, i32, i32) {
    %c0_i32 = arith.constant 0 : i32
    %c0_i32_0 = arith.constant 0 : i32
    %c0_i32_1 = arith.constant 0 : i32
    %c0_i32_2 = arith.constant 0 : i32
    return %c0_i32, %c0_i32_0, %c0_i32_1 : i32, i32, i32
  }
  func.func @transform_3(%arg0: i32) -> (i32, i32, i32) {
    %c0_i32 = arith.constant 0 : i32
    %c0_i32_0 = arith.constant 0 : i32
    %c0_i32_1 = arith.constant 0 : i32
    %c0_i32_2 = arith.constant 0 : i32
    return %c0_i32, %c0_i32_0, %c0_i32_1 : i32, i32, i32
  }
  func.func @transform_4(%arg0: i32) -> (i32, i32) {
    %c0_i32 = arith.constant 0 : i32
    %c0_i32_0 = arith.constant 0 : i32
    %c0_i32_1 = arith.constant 0 : i32
    return %c0_i32, %c0_i32_0 : i32, i32
  }
  func.func @transform_5(%arg0: i32) -> (i32, i32) {
    %c0_i32 = arith.constant 0 : i32
    %c0_i32_0 = arith.constant 0 : i32
    %c0_i32_1 = arith.constant 0 : i32
    return %c0_i32, %c0_i32_0 : i32, i32
  }
  func.func @transform_6(%arg0: i32) -> (i32, i32) {
    %c0_i32 = arith.constant 0 : i32
    %c0_i32_0 = arith.constant 0 : i32
    %c0_i32_1 = arith.constant 0 : i32
    return %c0_i32, %c0_i32_0 : i32, i32
  }
}

</mosaic_0001>

<llo_original>
// kernel: tpu_custom_call.1
$region0: #{tpu_custom_call.1}
  #allocation0 [shape = 'u32[]', space=smem, size = 0x4, offset = 0x4, fixed_abs, tag = 'smem constant byte address 0x4 - core index']
  #allocation1 [shape = 'u32[144,128]{1,0:T(1,128)}', space=vmem, size = 0x12000, scoped, tag = 'internal scratch']
  #allocation2 [shape = 'f32[100,128]{1,0:T(8,128)}', space=vmem, size = 0xd000, scoped, tag = 'scratch operand']
  #allocation3 [shape = 'f32[100,128]{1,0:T(8,128)}', space=vmem, size = 0xd000, scoped, tag = 'scratch operand']
  %s0 = inlined_call_operand.hbm [shape: f32[100,128], index: 0, kind: input, shape index: {}]
  %s1 = inlined_call_operand.hbm [shape: bf16[4,128,128], index: 1, kind: input, shape index: {}]
  %s2 = inlined_call_operand.hbm [shape: bf16[4,128,128], index: 2, kind: input, shape index: {}]
  %s3 = inlined_call_operand.vmem [shape: f32[4,1,128], index: 3, kind: input, shape index: {}]
  %s4 = inlined_call_operand.hbm [shape: bf16[128,128], index: 4, kind: input, shape index: {}]
  %s5 = inlined_call_operand.vmem [shape: f32[1,128], index: 5, kind: input, shape index: {}]
  %s6 = inlined_call_operand.hbm [shape: f32[100,128], index: 6, kind: output, shape index: {}]
  %s7 = sld [smem:[#allocation0]]
  $region73: #{tpu_custom_call.1} parent=0
    _
  %s9 = ssub.s32 1, %s7
  %s10 = scalar_select 0, %s9, %s7
  $region1: #{tpu_custom_call.1} parent=0
    #allocation4 [shape = 'u8[53248]{0}', space=vmem, size = 0xd000, scoped, tag = 'input window, operand 0, single buffered']
    #allocation5 [shape = 's32[1]{0}', space=sflag, size = 0x4, scoped, tag = 'scoped memory for tpu_custom_call.1']
    #allocation6 [shape = 's32[1]{0}', space=sflag, size = 0x4, scoped, tag = 'scoped memory for tpu_custom_call.1']
    #allocation7 [shape = 'u8[131072]{0}', space=vmem, size = 0x20000, scoped, tag = 'input window, operand 1, single buffered']
    #allocation8 [shape = 's32[1]{0}', space=sflag, size = 0x4, scoped, tag = 'scoped memory for tpu_custom_call.1']
    #allocation9 [shape = 'u8[131072]{0}', space=vmem, size = 0x20000, scoped, tag = 'input window, operand 2, single buffered']
    #allocation10 [shape = 'u8[32768]{0}', space=vmem, size = 0x8000, scoped, tag = 'input window, operand 4, single buffered']
    #allocation11 [shape = 's32[1]{0}', space=sflag, size = 0x4, scoped, tag = 'scoped memory for tpu_custom_call.1']
    #allocation12 [shape = 'u8[53248]{0}', space=vmem, size = 0xd000, scoped, tag = 'output window, operand 0, single buffered']
    %11 = vsyncpa [#allocation5], 0
    %12 = vsyncpa [#allocation8], 0
    %13 = vsyncpa [#allocation11], 0
    %14 = vsyncpa [#allocation6], 0
    // Predicated region
    $region2: #{tpu_custom_call.1} parent=1 // pred_check
      _
    $region3: #{tpu_custom_call.1} parent=1 // pred_check_branch
      %16 = sbr.rel (0) target = $region5
    $region4: #{tpu_custom_call.1} parent=1 // pred_region
      %s18 = ssub.s32 1664, 1664
      %19 = vsyncadd [#allocation5], %s18
      %s20 = sshll.u32 [#allocation4], 4
      %s21 = int_to_ptr.vmem [resolvable:$true] %s20
      %26 = dma.hbm_to_vmem [thread:$0]  %s0, 1664, %s21, [#allocation5], 128, 128, 8
    $region5: #{tpu_custom_call.1} parent=1 // pred_fallthru
      _
    // Predicated region
    $region6: #{tpu_custom_call.1} parent=1 // pred_check
      _
    $region7: #{tpu_custom_call.1} parent=1 // pred_check_branch
      %28 = sbr.rel (0) target = $region9
    $region8: #{tpu_custom_call.1} parent=1 // pred_region
      %s30 = ssub.s32 4096, 4096
      %31 = vsyncadd [#allocation8], %s30
      %s32 = sshll.u32 [#allocation7], 4
      %s33 = int_to_ptr.vmem [resolvable:$true] %s32
      %38 = dma.hbm_to_vmem [thread:$0]  %s1, 4096, %s33, [#allocation8], 64, 64, 4
    $region9: #{tpu_custom_call.1} parent=1 // pred_fallthru
      _
    // Predicated region
    $region10: #{tpu_custom_call.1} parent=1 // pred_check
      _
    $region11: #{tpu_custom_call.1} parent=1 // pred_check_branch
      %40 = sbr.rel (0) target = $region13
    $region12: #{tpu_custom_call.1} parent=1 // pred_region
      %s42 = ssub.s32 4096, 4096
      %43 = vsyncadd [#allocation8], %s42
      %s44 = sshll.u32 [#allocation9], 4
      %s45 = int_to_ptr.vmem [resolvable:$true] %s44
      %50 = dma.hbm_to_vmem [thread:$0]  %s2, 4096, %s45, [#allocation8], 64, 64, 4
    $region13: #{tpu_custom_call.1} parent=1 // pred_fallthru
      _
    // Predicated region
    $region14: #{tpu_custom_call.1} parent=1 // pred_check
      _
    $region15: #{tpu_custom_call.1} parent=1 // pred_check_branch
      %52 = sbr.rel (0) target = $region17
    $region16: #{tpu_custom_call.1} parent=1 // pred_region
      _
    $region17: #{tpu_custom_call.1} parent=1 // pred_fallthru
      _
    // Predicated region
    $region18: #{tpu_custom_call.1} parent=1 // pred_check
      _
    $region19: #{tpu_custom_call.1} parent=1 // pred_check_branch
      %54 = sbr.rel (0) target = $region21
    $region20: #{tpu_custom_call.1} parent=1 // pred_region
      %s56 = ssub.s32 1024, 1024
      %57 = vsyncadd [#allocation11], %s56
      %s58 = sshll.u32 [#allocation10], 4
      %s59 = int_to_ptr.vmem [resolvable:$true] %s58
      %64 = dma.hbm_to_vmem [thread:$0]  %s4, 1024, %s59, [#allocation11], 64, 64, 4
    $region21: #{tpu_custom_call.1} parent=1 // pred_fallthru
      _
    // Predicated region
    $region22: #{tpu_custom_call.1} parent=1 // pred_check
      _
    $region23: #{tpu_custom_call.1} parent=1 // pred_check_branch
      %66 = sbr.rel (0) target = $region25
    $region24: #{tpu_custom_call.1} parent=1 // pred_region
      _
    $region25: #{tpu_custom_call.1} parent=1 // pred_fallthru
      _
    // Predicated region
    $region26: #{tpu_custom_call.1} parent=1 // pred_check
      _
    $region27: #{tpu_custom_call.1} parent=1 // pred_check_branch
      %68 = sbr.rel (0) target = $region29
    $region28: #{tpu_custom_call.1} parent=1 // pred_region
      %69 = dma.done [#allocation5], 1664
    $region29: #{tpu_custom_call.1} parent=1 // pred_fallthru
      _
    // Predicated region
    $region30: #{tpu_custom_call.1} parent=1 // pred_check
      _
    $region31: #{tpu_custom_call.1} parent=1 // pred_check_branch
      %71 = sbr.rel (0) target = $region33
    $region32: #{tpu_custom_call.1} parent=1 // pred_region
      %72 = dma.done [#allocation8], 4096
    $region33: #{tpu_custom_call.1} parent=1 // pred_fallthru
      _
    // Predicated region
    $region34: #{tpu_custom_call.1} parent=1 // pred_check
      _
    $region35: #{tpu_custom_call.1} parent=1 // pred_check_branch
      %74 = sbr.rel (0) target = $region37
    $region36: #{tpu_custom_call.1} parent=1 // pred_region
      %75 = dma.done [#allocation8], 4096
    $region37: #{tpu_custom_call.1} parent=1 // pred_fallthru
      _
    // Predicated region
    $region38: #{tpu_custom_call.1} parent=1 // pred_check
      _
    $region39: #{tpu_custom_call.1} parent=1 // pred_check_branch
      %77 = sbr.rel (0) target = $region41
    $region40: #{tpu_custom_call.1} parent=1 // pred_region
      %78 = dma.done [#allocation11], 1024
    $region41: #{tpu_custom_call.1} parent=1 // pred_fallthru
      _
    %v80 = vld [vmem:[#allocation4] sm:$0xff]
    %v81 = vld [vmem:[#allocation4 + $0x8] sm:$0xff]
    %v82 = vld [vmem:[#allocation4 + $0x10] sm:$0xff]
    %v83 = vld [vmem:[#allocation4 + $0x18] sm:$0xff]
    %v84 = vld [vmem:[#allocation4 + $0x20] sm:$0xff]
    %v85 = vld [vmem:[#allocation4 + $0x28] sm:$0xff]
    %v86 = vld [vmem:[#allocation4 + $0x30] sm:$0xff]
    %v87 = vld [vmem:[#allocation4 + $0x38] sm:$0xff]
    %v88 = vld [vmem:[#allocation4 + $0x40] sm:$0xff]
    %v89 = vld [vmem:[#allocation4 + $0x48] sm:$0xff]
    %v90 = vld [vmem:[#allocation4 + $0x50] sm:$0xff]
    %v91 = vld [vmem:[#allocation4 + $0x58] sm:$0xff]
    %v92 = vld [vmem:[#allocation4 + $0x60] sm:$0xf]
    %v93 = vpack.c.bf16 %v81, %v80
    %v94 = vpack.c.bf16 %v83, %v82
    %v95 = vpack.c.bf16 %v85, %v84
    %v96 = vpack.c.bf16 %v87, %v86
    %v97 = vpack.c.bf16 %v89, %v88
    %v98 = vpack.c.bf16 %v91, %v90
    %v99 = vpack.c.bf16 %v92, %v92
    %v100 = vld [vmem:[#allocation7] sm:$0xf]
    %v101 = vld [vmem:[#allocation7 + $0x4] sm:$0xf]
    %v102 = vld [vmem:[#allocation7 + $0x8] sm:$0xf]
    %v103 = vld [vmem:[#allocation7 + $0xc] sm:$0xf]
    %v104 = vld [vmem:[#allocation7 + $0x10] sm:$0xf]
    %v105 = vld [vmem:[#allocation7 + $0x14] sm:$0xf]
    %v106 = vld [vmem:[#allocation7 + $0x18] sm:$0xf]
    %v107 = vld [vmem:[#allocation7 + $0x1c] sm:$0xf]
    %v108 = vld [vmem:[#allocation7 + $0x20] sm:$0xf]
    %v109 = vld [vmem:[#allocation7 + $0x24] sm:$0xf]
    %v110 = vld [vmem:[#allocation7 + $0x28] sm:$0xf]
    %v111 = vld [vmem:[#allocation7 + $0x2c] sm:$0xf]
    %v112 = vld [vmem:[#allocation7 + $0x30] sm:$0xf]
    %v113 = vld [vmem:[#allocation7 + $0x34] sm:$0xf]
    %v114 = vld [vmem:[#allocation7 + $0x38] sm:$0xf]
    %v115 = vld [vmem:[#allocation7 + $0x3c] sm:$0xf]
    %v116 = vld [vmem:[%s3] sm:$0x1]
    %v118 = vlaneseq
    %v119 = vshrl.u32 %v118, 7
    %v120 = vsub.s32 0, %v119
    %v121 = vrot.slane %v116, %v120
    %v139 = vunpack.c.l.b16 %v100
    %v140 = vunpack.c.l.b16 %v101
    %v141 = vunpack.c.l.b16 %v102
    %v142 = vunpack.c.l.b16 %v103
    %v143 = vunpack.c.l.b16 %v104
    %v144 = vunpack.c.l.b16 %v105
    %v145 = vunpack.c.l.b16 %v106
    %v146 = vunpack.c.l.b16 %v107
    %v147 = vunpack.c.l.b16 %v108
    %v148 = vunpack.c.l.b16 %v109
    %v149 = vunpack.c.l.b16 %v110
    %v150 = vunpack.c.l.b16 %v111
    %v151 = vunpack.c.l.b16 %v112
    %v152 = vunpack.c.l.b16 %v113
    %v153 = vunpack.c.l.b16 %v114
    %v154 = vunpack.c.l.b16 %v115
    %v155 = vpack.c.b16 %v140, %v139
    %v156 = vpack.c.b16 %v142, %v141
    %v157 = vpack.c.b16 %v144, %v143
    %v158 = vpack.c.b16 %v146, %v145
    %v159 = vpack.c.b16 %v148, %v147
    %v160 = vpack.c.b16 %v150, %v149
    %v161 = vpack.c.b16 %v152, %v151
    %v162 = vpack.c.b16 %v154, %v153
    %171 = vmatprep.subr.bf16.mxu0 0
    %172 = vmatpush1.bf16.msra.mxu0 %v162
    %173 = vmatprep.subr.bf16.mxu0 0
    %174 = vmatpush1.bf16.msra.mxu0 %v161
    %175 = vmatprep.subr.bf16.mxu0 0
    %176 = vmatpush1.bf16.msra.mxu0 %v160
    %177 = vmatprep.subr.bf16.mxu0 0
    %178 = vmatpush1.bf16.msra.mxu0 %v159
    %179 = vmatprep.subr.bf16.mxu0 0
    %180 = vmatpush1.bf16.msra.mxu0 %v158
    %181 = vmatprep.subr.bf16.mxu0 0
    %182 = vmatpush1.bf16.msra.mxu0 %v157
    %183 = vmatprep.subr.bf16.mxu0 0
    %184 = vmatpush1.bf16.msra.mxu0 %v156
    %185 = vmatprep.subr.bf16.mxu0 0
    %186 = vmatpush1.bf16.msra.mxu0 %v155
    %187 = vmatprep.subr.bf16.mxu0 0
    %188 = vmatpush2.bf16.msra.mxu0 0
    %189 = vmatprep.subr.bf16.mxu0 0
    %190 = vmatpush2.bf16.msra.mxu0 0
    %191 = vmatprep.subr.bf16.mxu0 0
    %192 = vmatpush2.bf16.msra.mxu0 0
    %193 = vmatprep.subr.bf16.mxu0 0
    %194 = vmatpush2.bf16.msra.mxu0 0
    %195 = vmatprep.subr.bf16.mxu0 0
    %196 = vmatpush2.bf16.msra.mxu0 0
    %197 = vmatprep.subr.bf16.mxu0 0
    %198 = vmatpush2.bf16.msra.mxu0 0
    %199 = vmatprep.subr.bf16.mxu0 0
    %200 = vmatpush2.bf16.msra.mxu0 0
    %201 = vmatprep.subr.bf16.mxu0 0
    %202 = vmatpush2.bf16.msra.mxu0 0
    %203 = vmatprep.mubr.bf16.mxu0 0
    %204 = vmatmul.mubr.bf16.gmra.mxu0 %v93
    %v205 = vpop.f32.mrf.mxu0
    %v206 = vadd.f32 %v121, %v205
    %v207 = vpop.f32.mrf.mxu0
    %v208 = vpop.f32.mrf.mxu0
    %v209 = vadd.f32 %v121, %v208
    %v210 = vpop.f32.mrf.mxu0
    %211 = vmatprep.mubr.bf16.mxu0 0
    %212 = vmatmul.mubr.bf16.gmra.mxu0 %v94
    %v213 = vpop.f32.mrf.mxu0
    %v214 = vadd.f32 %v121, %v213
    %v215 = vpop.f32.mrf.mxu0
    %v216 = vpop.f32.mrf.mxu0
    %v217 = vadd.f32 %v121, %v216
    %v218 = vpop.f32.mrf.mxu0
    %219 = vmatprep.mubr.bf16.mxu0 0
    %220 = vmatmul.mubr.bf16.gmra.mxu0 %v95
    %v221 = vpop.f32.mrf.mxu0
    %v222 = vadd.f32 %v121, %v221
    %v223 = vpop.f32.mrf.mxu0
    %v224 = vpop.f32.mrf.mxu0
    %v225 = vadd.f32 %v121, %v224
    %v226 = vpop.f32.mrf.mxu0
    %227 = vmatprep.mubr.bf16.mxu0 0
    %228 = vmatmul.mubr.bf16.gmra.mxu0 %v96
    %v229 = vpop.f32.mrf.mxu0
    %v230 = vadd.f32 %v121, %v229
    %v231 = vpop.f32.mrf.mxu0
    %v232 = vpop.f32.mrf.mxu0
    %v233 = vadd.f32 %v121, %v232
    %v234 = vpop.f32.mrf.mxu0
    %235 = vmatprep.mubr.bf16.mxu0 0
    %236 = vmatmul.mubr.bf16.gmra.mxu0 %v97
    %v237 = vpop.f32.mrf.mxu0
    %v238 = vadd.f32 %v121, %v237
    %v239 = vpop.f32.mrf.mxu0
    %v240 = vpop.f32.mrf.mxu0
    %v241 = vadd.f32 %v121, %v240
    %v242 = vpop.f32.mrf.mxu0
    %243 = vmatprep.mubr.bf16.mxu0 0
    %244 = vmatmul.mubr.bf16.gmra.mxu0 %v98
    %v245 = vpop.f32.mrf.mxu0
    %v246 = vadd.f32 %v121, %v245
    %v247 = vpop.f32.mrf.mxu0
    %v248 = vpop.f32.mrf.mxu0
    %v249 = vadd.f32 %v121, %v248
    %v250 = vpop.f32.mrf.mxu0
    %251 = vmatprep.mubr.bf16.mxu0 0
    %252 = vmatmul.mubr.bf16.gmra.mxu0 %v99
    %v253 = vpop.f32.mrf.mxu0
    %v254 = vadd.f32 %v121, %v253
    %v255 = vpop.f32.mrf.mxu0
    %v256 = vpop.f32.mrf.mxu0
    %v257 = vpop.f32.mrf.mxu0
    %258 = vdwg.mxu0
    %259 = vst [vmem:[#allocation3] sm:$0xff] %v206
    %260 = vst [vmem:[#allocation3 + $0x8] sm:$0xff] %v209
    %261 = vst [vmem:[#allocation3 + $0x10] sm:$0xff] %v214
    %262 = vst [vmem:[#allocation3 + $0x18] sm:$0xff] %v217
    %263 = vst [vmem:[#allocation3 + $0x20] sm:$0xff] %v222
    %264 = vst [vmem:[#allocation3 + $0x28] sm:$0xff] %v225
    %265 = vst [vmem:[#allocation3 + $0x30] sm:$0xff] %v230
    %266 = vst [vmem:[#allocation3 + $0x38] sm:$0xff] %v233
    %267 = vst [vmem:[#allocation3 + $0x40] sm:$0xff] %v238
    %268 = vst [vmem:[#allocation3 + $0x48] sm:$0xff] %v241
    %269 = vst [vmem:[#allocation3 + $0x50] sm:$0xff] %v246
    %270 = vst [vmem:[#allocation3 + $0x58] sm:$0xff] %v249
    %271 = vst [vmem:[#allocation3 + $0x60] sm:$0xf] %v254
    loop: start=0, step=1, limit=26
    $region42: #{tpu_custom_call.1} parent=1 // loop_pre_header
      _
    $region43: #{tpu_custom_call.1} parent=1 // loop_header
      %s273 = sphi 0, %s277
      %p274 = scmp.ge.s32.totalorder %s273, 26
      %v278 = vphi 0.0, %v2743
      %v279 = vphi 0.0, %v2956
      %v280 = vphi 0.0, %v3169
      %v281 = vphi 0.0, %v3382
    $region44: #{tpu_custom_call.1} parent=1 // loop_header_branch
      %276 = sbr.rel (%p274) target = $region48
    $region45: #{tpu_custom_call.1} parent=1 // loop_body
      %s282 = smul.u32 %s273, 4
      %p283 = scmp.gt.s32.totalorder %s282, 0
      %s284 = scalar_select %p283, %s282, 0
      %p285 = scmp.lt.s32.totalorder %s284, 99
      %s286 = scalar_select %p285, %s284, 99
      %s287 = scalar_lea.vmem [#allocation3], %s286
      %v288 = vld [vmem:[%s287] sm:$0x1]
      %v289 = vpack.c.bf16 %v278, %v278
      %v290 = vld [vmem:[#allocation9] sm:$0xf]
      %v291 = vld [vmem:[#allocation9 + $0x4] sm:$0xf]
      %v292 = vld [vmem:[#allocation9 + $0x8] sm:$0xf]
      %v293 = vld [vmem:[#allocation9 + $0xc] sm:$0xf]
      %v294 = vld [vmem:[#allocation9 + $0x10] sm:$0xf]
      %v295 = vld [vmem:[#allocation9 + $0x14] sm:$0xf]
      %v296 = vld [vmem:[#allocation9 + $0x18] sm:$0xf]
      %v297 = vld [vmem:[#allocation9 + $0x1c] sm:$0xf]
      %v298 = vld [vmem:[#allocation9 + $0x20] sm:$0xf]
      %v299 = vld [vmem:[#allocation9 + $0x24] sm:$0xf]
      %v300 = vld [vmem:[#allocation9 + $0x28] sm:$0xf]
      %v301 = vld [vmem:[#allocation9 + $0x2c] sm:$0xf]
      %v302 = vld [vmem:[#allocation9 + $0x30] sm:$0xf]
      %v303 = vld [vmem:[#allocation9 + $0x34] sm:$0xf]
      %v304 = vld [vmem:[#allocation9 + $0x38] sm:$0xf]
      %v305 = vld [vmem:[#allocation9 + $0x3c] sm:$0xf]
      %v322 = vunpack.c.l.b16 %v290
      %v323 = vunpack.c.l.b16 %v291
      %v324 = vunpack.c.l.b16 %v292
      %v325 = vunpack.c.l.b16 %v293
      %v326 = vunpack.c.l.b16 %v294
      %v327 = vunpack.c.l.b16 %v295
      %v328 = vunpack.c.l.b16 %v296
      %v329 = vunpack.c.l.b16 %v297
      %v330 = vunpack.c.l.b16 %v298
      %v331 = vunpack.c.l.b16 %v299
      %v332 = vunpack.c.l.b16 %v300
      %v333 = vunpack.c.l.b16 %v301
      %v334 = vunpack.c.l.b16 %v302
      %v335 = vunpack.c.l.b16 %v303
      %v336 = vunpack.c.l.b16 %v304
      %v337 = vunpack.c.l.b16 %v305
      %v338 = vpack.c.b16 %v323, %v322
      %v339 = vpack.c.b16 %v325, %v324
      %v340 = vpack.c.b16 %v327, %v326
      %v341 = vpack.c.b16 %v329, %v328
      %v342 = vpack.c.b16 %v331, %v330
      %v343 = vpack.c.b16 %v333, %v332
      %v344 = vpack.c.b16 %v335, %v334
      %v345 = vpack.c.b16 %v337, %v336
      %354 = vmatprep.subr.bf16.mxu0 0
      %355 = vmatpush1.bf16.msra.mxu0 %v345
      %356 = vmatprep.subr.bf16.mxu0 0
      %357 = vmatpush1.bf16.msra.mxu0 %v344
      %358 = vmatprep.subr.bf16.mxu0 0
      %359 = vmatpush1.bf16.msra.mxu0 %v343
      %360 = vmatprep.subr.bf16.mxu0 0
      %361 = vmatpush1.bf16.msra.mxu0 %v342
      %362 = vmatprep.subr.bf16.mxu0 0
      %363 = vmatpush1.bf16.msra.mxu0 %v341
      %364 = vmatprep.subr.bf16.mxu0 0
      %365 = vmatpush1.bf16.msra.mxu0 %v340
      %366 = vmatprep.subr.bf16.mxu0 0
      %367 = vmatpush1.bf16.msra.mxu0 %v339
      %368 = vmatprep.subr.bf16.mxu0 0
      %369 = vmatpush1.bf16.msra.mxu0 %v338
      %370 = vmatprep.subr.bf16.mxu0 0
      %371 = vmatpush2.bf16.msra.mxu0 0
      %372 = vmatprep.subr.bf16.mxu0 0
      %373 = vmatpush2.bf16.msra.mxu0 0
      %374 = vmatprep.subr.bf16.mxu0 0
      %375 = vmatpush2.bf16.msra.mxu0 0
      %376 = vmatprep.subr.bf16.mxu0 0
      %377 = vmatpush2.bf16.msra.mxu0 0
      %378 = vmatprep.subr.bf16.mxu0 0
      %379 = vmatpush2.bf16.msra.mxu0 0
      %380 = vmatprep.subr.bf16.mxu0 0
      %381 = vmatpush2.bf16.msra.mxu0 0
      %382 = vmatprep.subr.bf16.mxu0 0
      %383 = vmatpush2.bf16.msra.mxu0 0
      %384 = vmatprep.subr.bf16.mxu0 0
      %385 = vmatpush2.bf16.msra.mxu0 0
      %386 = vmatprep.mubr.bf16.mxu0 0
      %387 = vmatmul.mubr.bf16.gmra.mxu0 %v289
      %v388 = vpop.f32.mrf.mxu0
      %v389 = vadd.f32 0.0, %v388
      %v390 = vpop.f32.mrf.mxu0
      %v391 = vpop.f32.mrf.mxu0
      %v392 = vpop.f32.mrf.mxu0
      %393 = vdwg.mxu0
      %v394 = vadd.f32 %v288, %v389
      %v395 = vtanh.pop %v394
      %p396 = scmp.ge.s32.totalorder %s282, 0
      %p397 = scmp.lt.s32.totalorder %s282, 100
      %p398 = pnand %p396, %p397
      %p399 = pneg %p398
      %s400 = scalar_select %p399, 1, 0
      %v401 = vstv %s400
      %vm402 = vcmp.eq.s32.totalorder %v401, 1
      %v403 = vsel %vm402, %v395, %v278
      %s404 = sadd.s32 %s282, 4294967295
      %s405 = scalar_lea.vmem [#allocation7], 64
      %v406 = vld [vmem:[%s405] sm:$0xf]
      %v407 = vld [vmem:[%s405 + $0x4] sm:$0xf]
      %v408 = vld [vmem:[%s405 + $0x8] sm:$0xf]
      %v409 = vld [vmem:[%s405 + $0xc] sm:$0xf]
      %v410 = vld [vmem:[%s405 + $0x10] sm:$0xf]
      %v411 = vld [vmem:[%s405 + $0x14] sm:$0xf]
      %v412 = vld [vmem:[%s405 + $0x18] sm:$0xf]
      %v413 = vld [vmem:[%s405 + $0x1c] sm:$0xf]
      %v414 = vld [vmem:[%s405 + $0x20] sm:$0xf]
      %v415 = vld [vmem:[%s405 + $0x24] sm:$0xf]
      %v416 = vld [vmem:[%s405 + $0x28] sm:$0xf]
      %v417 = vld [vmem:[%s405 + $0x2c] sm:$0xf]
      %v418 = vld [vmem:[%s405 + $0x30] sm:$0xf]
      %v419 = vld [vmem:[%s405 + $0x34] sm:$0xf]
      %v420 = vld [vmem:[%s405 + $0x38] sm:$0xf]
      %v421 = vld [vmem:[%s405 + $0x3c] sm:$0xf]
      %s422 = scalar_lea.vmem %s3, 1
      %v423 = vld [vmem:[%s422] sm:$0x1]
      %v440 = vunpack.c.l.b16 %v406
      %v441 = vunpack.c.l.b16 %v407
      %v442 = vunpack.c.l.b16 %v408
      %v443 = vunpack.c.l.b16 %v409
      %v444 = vunpack.c.l.b16 %v410
      %v445 = vunpack.c.l.b16 %v411
      %v446 = vunpack.c.l.b16 %v412
      %v447 = vunpack.c.l.b16 %v413
      %v448 = vunpack.c.l.b16 %v414
      %v449 = vunpack.c.l.b16 %v415
      %v450 = vunpack.c.l.b16 %v416
      %v451 = vunpack.c.l.b16 %v417
      %v452 = vunpack.c.l.b16 %v418
      %v453 = vunpack.c.l.b16 %v419
      %v454 = vunpack.c.l.b16 %v420
      %v455 = vunpack.c.l.b16 %v421
      %v456 = vpack.c.b16 %v441, %v440
      %v457 = vpack.c.b16 %v443, %v442
      %v458 = vpack.c.b16 %v445, %v444
      %v459 = vpack.c.b16 %v447, %v446
      %v460 = vpack.c.b16 %v449, %v448
      %v461 = vpack.c.b16 %v451, %v450
      %v462 = vpack.c.b16 %v453, %v452
      %v463 = vpack.c.b16 %v455, %v454
      %472 = vmatprep.subr.bf16.mxu0 0
      %473 = vmatpush1.bf16.msra.mxu0 %v463
      %474 = vmatprep.subr.bf16.mxu0 0
      %475 = vmatpush1.bf16.msra.mxu0 %v462
      %476 = vmatprep.subr.bf16.mxu0 0
      %477 = vmatpush1.bf16.msra.mxu0 %v461
      %478 = vmatprep.subr.bf16.mxu0 0
      %479 = vmatpush1.bf16.msra.mxu0 %v460
      %480 = vmatprep.subr.bf16.mxu0 0
      %481 = vmatpush1.bf16.msra.mxu0 %v459
      %482 = vmatprep.subr.bf16.mxu0 0
      %483 = vmatpush1.bf16.msra.mxu0 %v458
      %484 = vmatprep.subr.bf16.mxu0 0
      %485 = vmatpush1.bf16.msra.mxu0 %v457
      %486 = vmatprep.subr.bf16.mxu0 0
      %487 = vmatpush1.bf16.msra.mxu0 %v456
      %488 = vmatprep.subr.bf16.mxu0 0
      %489 = vmatpush2.bf16.msra.mxu0 0
      %490 = vmatprep.subr.bf16.mxu0 0
      %491 = vmatpush2.bf16.msra.mxu0 0
      %492 = vmatprep.subr.bf16.mxu0 0
      %493 = vmatpush2.bf16.msra.mxu0 0
      %494 = vmatprep.subr.bf16.mxu0 0
      %495 = vmatpush2.bf16.msra.mxu0 0
      %496 = vmatprep.subr.bf16.mxu0 0
      %497 = vmatpush2.bf16.msra.mxu0 0
      %498 = vmatprep.subr.bf16.mxu0 0
      %499 = vmatpush2.bf16.msra.mxu0 0
      %500 = vmatprep.subr.bf16.mxu0 0
      %501 = vmatpush2.bf16.msra.mxu0 0
      %502 = vmatprep.subr.bf16.mxu0 0
      %503 = vmatpush2.bf16.msra.mxu0 0
      %504 = vmatprep.mubr.bf16.mxu0 0
      %505 = vmatmul.mubr.bf16.gmra.mxu0 %v289
      %v506 = vpop.f32.mrf.mxu0
      %v507 = vadd.f32 %v423, %v506
      %v508 = vpop.f32.mrf.mxu0
      %v509 = vpop.f32.mrf.mxu0
      %v510 = vpop.f32.mrf.mxu0
      %511 = vdwg.mxu0
      %v512 = vpack.c.bf16 %v279, %v279
      %s513 = scalar_lea.vmem [#allocation9], 64
      %v514 = vld [vmem:[%s513] sm:$0xf]
      %v515 = vld [vmem:[%s513 + $0x4] sm:$0xf]
      %v516 = vld [vmem:[%s513 + $0x8] sm:$0xf]
      %v517 = vld [vmem:[%s513 + $0xc] sm:$0xf]
      %v518 = vld [vmem:[%s513 + $0x10] sm:$0xf]
      %v519 = vld [vmem:[%s513 + $0x14] sm:$0xf]
      %v520 = vld [vmem:[%s513 + $0x18] sm:$0xf]
      %v521 = vld [vmem:[%s513 + $0x1c] sm:$0xf]
      %v522 = vld [vmem:[%s513 + $0x20] sm:$0xf]
      %v523 = vld [vmem:[%s513 + $0x24] sm:$0xf]
      %v524 = vld [vmem:[%s513 + $0x28] sm:$0xf]
      %v525 = vld [vmem:[%s513 + $0x2c] sm:$0xf]
      %v526 = vld [vmem:[%s513 + $0x30] sm:$0xf]
      %v527 = vld [vmem:[%s513 + $0x34] sm:$0xf]
      %v528 = vld [vmem:[%s513 + $0x38] sm:$0xf]
      %v529 = vld [vmem:[%s513 + $0x3c] sm:$0xf]
      %v546 = vunpack.c.l.b16 %v514
      %v547 = vunpack.c.l.b16 %v515
      %v548 = vunpack.c.l.b16 %v516
      %v549 = vunpack.c.l.b16 %v517
      %v550 = vunpack.c.l.b16 %v518
      %v551 = vunpack.c.l.b16 %v519
      %v552 = vunpack.c.l.b16 %v520
      %v553 = vunpack.c.l.b16 %v521
      %v554 = vunpack.c.l.b16 %v522
      %v555 = vunpack.c.l.b16 %v523
      %v556 = vunpack.c.l.b16 %v524
      %v557 = vunpack.c.l.b16 %v525
      %v558 = vunpack.c.l.b16 %v526
      %v559 = vunpack.c.l.b16 %v527
      %v560 = vunpack.c.l.b16 %v528
      %v561 = vunpack.c.l.b16 %v529
      %v562 = vpack.c.b16 %v547, %v546
      %v563 = vpack.c.b16 %v549, %v548
      %v564 = vpack.c.b16 %v551, %v550
      %v565 = vpack.c.b16 %v553, %v552
      %v566 = vpack.c.b16 %v555, %v554
      %v567 = vpack.c.b16 %v557, %v556
      %v568 = vpack.c.b16 %v559, %v558
      %v569 = vpack.c.b16 %v561, %v560
      %578 = vmatprep.subr.bf16.mxu0 0
      %579 = vmatpush1.bf16.msra.mxu0 %v569
      %580 = vmatprep.subr.bf16.mxu0 0
      %581 = vmatpush1.bf16.msra.mxu0 %v568
      %582 = vmatprep.subr.bf16.mxu0 0
      %583 = vmatpush1.bf16.msra.mxu0 %v567
      %584 = vmatprep.subr.bf16.mxu0 0
      %585 = vmatpush1.bf16.msra.mxu0 %v566
      %586 = vmatprep.subr.bf16.mxu0 0
      %587 = vmatpush1.bf16.msra.mxu0 %v565
      %588 = vmatprep.subr.bf16.mxu0 0
      %589 = vmatpush1.bf16.msra.mxu0 %v564
      %590 = vmatprep.subr.bf16.mxu0 0
      %591 = vmatpush1.bf16.msra.mxu0 %v563
      %592 = vmatprep.subr.bf16.mxu0 0
      %593 = vmatpush1.bf16.msra.mxu0 %v562
      %594 = vmatprep.subr.bf16.mxu0 0
      %595 = vmatpush2.bf16.msra.mxu0 0
      %596 = vmatprep.subr.bf16.mxu0 0
      %597 = vmatpush2.bf16.msra.mxu0 0
      %598 = vmatprep.subr.bf16.mxu0 0
      %599 = vmatpush2.bf16.msra.mxu0 0
      %600 = vmatprep.subr.bf16.mxu0 0
      %601 = vmatpush2.bf16.msra.mxu0 0
      %602 = vmatprep.subr.bf16.mxu0 0
      %603 = vmatpush2.bf16.msra.mxu0 0
      %604 = vmatprep.subr.bf16.mxu0 0
      %605 = vmatpush2.bf16.msra.mxu0 0
      %606 = vmatprep.subr.bf16.mxu0 0
      %607 = vmatpush2.bf16.msra.mxu0 0
      %608 = vmatprep.subr.bf16.mxu0 0
      %609 = vmatpush2.bf16.msra.mxu0 0
      %610 = vmatprep.mubr.bf16.mxu0 0
      %611 = vmatmul.mubr.bf16.gmra.mxu0 %v512
      %v612 = vpop.f32.mrf.mxu0
      %v613 = vadd.f32 0.0, %v612
      %v614 = vpop.f32.mrf.mxu0
      %v615 = vpop.f32.mrf.mxu0
      %v616 = vpop.f32.mrf.mxu0
      %617 = vdwg.mxu0
      %v618 = vadd.f32 %v507, %v613
      %v619 = vtanh.pop %v618
      %p620 = scmp.ge.s32.totalorder %s404, 0
      %p621 = scmp.lt.s32.totalorder %s404, 100
      %p622 = pnand %p620, %p621
      %p623 = pneg %p622
      %s624 = scalar_select %p623, 1, 0
      %v625 = vstv %s624
      %vm626 = vcmp.eq.s32.totalorder %v625, 1
      %v627 = vsel %vm626, %v619, %v279
      %s628 = sadd.s32 %s282, 4294967294
      %s629 = scalar_lea.vmem [#allocation7], 128
      %v630 = vld [vmem:[%s629] sm:$0xf]
      %v631 = vld [vmem:[%s629 + $0x4] sm:$0xf]
      %v632 = vld [vmem:[%s629 + $0x8] sm:$0xf]
      %v633 = vld [vmem:[%s629 + $0xc] sm:$0xf]
      %v634 = vld [vmem:[%s629 + $0x10] sm:$0xf]
      %v635 = vld [vmem:[%s629 + $0x14] sm:$0xf]
      %v636 = vld [vmem:[%s629 + $0x18] sm:$0xf]
      %v637 = vld [vmem:[%s629 + $0x1c] sm:$0xf]
      %v638 = vld [vmem:[%s629 + $0x20] sm:$0xf]
      %v639 = vld [vmem:[%s629 + $0x24] sm:$0xf]
      %v640 = vld [vmem:[%s629 + $0x28] sm:$0xf]
      %v641 = vld [vmem:[%s629 + $0x2c] sm:$0xf]
      %v642 = vld [vmem:[%s629 + $0x30] sm:$0xf]
      %v643 = vld [vmem:[%s629 + $0x34] sm:$0xf]
      %v644 = vld [vmem:[%s629 + $0x38] sm:$0xf]
      %v645 = vld [vmem:[%s629 + $0x3c] sm:$0xf]
      %s646 = scalar_lea.vmem %s3, 2
      %v647 = vld [vmem:[%s646] sm:$0x1]
      %v664 = vunpack.c.l.b16 %v630
      %v665 = vunpack.c.l.b16 %v631
      %v666 = vunpack.c.l.b16 %v632
      %v667 = vunpack.c.l.b16 %v633
      %v668 = vunpack.c.l.b16 %v634
      %v669 = vunpack.c.l.b16 %v635
      %v670 = vunpack.c.l.b16 %v636
      %v671 = vunpack.c.l.b16 %v637
      %v672 = vunpack.c.l.b16 %v638
      %v673 = vunpack.c.l.b16 %v639
      %v674 = vunpack.c.l.b16 %v640
      %v675 = vunpack.c.l.b16 %v641
      %v676 = vunpack.c.l.b16 %v642
      %v677 = vunpack.c.l.b16 %v643
      %v678 = vunpack.c.l.b16 %v644
      %v679 = vunpack.c.l.b16 %v645
      %v680 = vpack.c.b16 %v665, %v664
      %v681 = vpack.c.b16 %v667, %v666
      %v682 = vpack.c.b16 %v669, %v668
      %v683 = vpack.c.b16 %v671, %v670
      %v684 = vpack.c.b16 %v673, %v672
      %v685 = vpack.c.b16 %v675, %v674
      %v686 = vpack.c.b16 %v677, %v676
      %v687 = vpack.c.b16 %v679, %v678
      %696 = vmatprep.subr.bf16.mxu0 0
      %697 = vmatpush1.bf16.msra.mxu0 %v687
      %698 = vmatprep.subr.bf16.mxu0 0
      %699 = vmatpush1.bf16.msra.mxu0 %v686
      %700 = vmatprep.subr.bf16.mxu0 0
      %701 = vmatpush1.bf16.msra.mxu0 %v685
      %702 = vmatprep.subr.bf16.mxu0 0
      %703 = vmatpush1.bf16.msra.mxu0 %v684
      %704 = vmatprep.subr.bf16.mxu0 0
      %705 = vmatpush1.bf16.msra.mxu0 %v683
      %706 = vmatprep.subr.bf16.mxu0 0
      %707 = vmatpush1.bf16.msra.mxu0 %v682
      %708 = vmatprep.subr.bf16.mxu0 0
      %709 = vmatpush1.bf16.msra.mxu0 %v681
      %710 = vmatprep.subr.bf16.mxu0 0
      %711 = vmatpush1.bf16.msra.mxu0 %v680
      %712 = vmatprep.subr.bf16.mxu0 0
      %713 = vmatpush2.bf16.msra.mxu0 0
      %714 = vmatprep.subr.bf16.mxu0 0
      %715 = vmatpush2.bf16.msra.mxu0 0
      %716 = vmatprep.subr.bf16.mxu0 0
      %717 = vmatpush2.bf16.msra.mxu0 0
      %718 = vmatprep.subr.bf16.mxu0 0
      %719 = vmatpush2.bf16.msra.mxu0 0
      %720 = vmatprep.subr.bf16.mxu0 0
      %721 = vmatpush2.bf16.msra.mxu0 0
      %722 = vmatprep.subr.bf16.mxu0 0
      %723 = vmatpush2.bf16.msra.mxu0 0
      %724 = vmatprep.subr.bf16.mxu0 0
      %725 = vmatpush2.bf16.msra.mxu0 0
      %726 = vmatprep.subr.bf16.mxu0 0
      %727 = vmatpush2.bf16.msra.mxu0 0
      %728 = vmatprep.mubr.bf16.mxu0 0
      %729 = vmatmul.mubr.bf16.gmra.mxu0 %v512
      %v730 = vpop.f32.mrf.mxu0
      %v731 = vadd.f32 %v647, %v730
      %v732 = vpop.f32.mrf.mxu0
      %v733 = vpop.f32.mrf.mxu0
      %v734 = vpop.f32.mrf.mxu0
      %735 = vdwg.mxu0
      %v736 = vpack.c.bf16 %v280, %v280
      %s737 = scalar_lea.vmem [#allocation9], 128
      %v738 = vld [vmem:[%s737] sm:$0xf]
      %v739 = vld [vmem:[%s737 + $0x4] sm:$0xf]
      %v740 = vld [vmem:[%s737 + $0x8] sm:$0xf]
      %v741 = vld [vmem:[%s737 + $0xc] sm:$0xf]
      %v742 = vld [vmem:[%s737 + $0x10] sm:$0xf]
      %v743 = vld [vmem:[%s737 + $0x14] sm:$0xf]
      %v744 = vld [vmem:[%s737 + $0x18] sm:$0xf]
      %v745 = vld [vmem:[%s737 + $0x1c] sm:$0xf]
      %v746 = vld [vmem:[%s737 + $0x20] sm:$0xf]
      %v747 = vld [vmem:[%s737 + $0x24] sm:$0xf]
      %v748 = vld [vmem:[%s737 + $0x28] sm:$0xf]
      %v749 = vld [vmem:[%s737 + $0x2c] sm:$0xf]
      %v750 = vld [vmem:[%s737 + $0x30] sm:$0xf]
      %v751 = vld [vmem:[%s737 + $0x34] sm:$0xf]
      %v752 = vld [vmem:[%s737 + $0x38] sm:$0xf]
      %v753 = vld [vmem:[%s737 + $0x3c] sm:$0xf]
      %v770 = vunpack.c.l.b16 %v738
      %v771 = vunpack.c.l.b16 %v739
      %v772 = vunpack.c.l.b16 %v740
      %v773 = vunpack.c.l.b16 %v741
      %v774 = vunpack.c.l.b16 %v742
      %v775 = vunpack.c.l.b16 %v743
      %v776 = vunpack.c.l.b16 %v744
      %v777 = vunpack.c.l.b16 %v745
      %v778 = vunpack.c.l.b16 %v746
      %v779 = vunpack.c.l.b16 %v747
      %v780 = vunpack.c.l.b16 %v748
      %v781 = vunpack.c.l.b16 %v749
      %v782 = vunpack.c.l.b16 %v750
      %v783 = vunpack.c.l.b16 %v751
      %v784 = vunpack.c.l.b16 %v752
      %v785 = vunpack.c.l.b16 %v753
      %v786 = vpack.c.b16 %v771, %v770
      %v787 = vpack.c.b16 %v773, %v772
      %v788 = vpack.c.b16 %v775, %v774
      %v789 = vpack.c.b16 %v777, %v776
      %v790 = vpack.c.b16 %v779, %v778
      %v791 = vpack.c.b16 %v781, %v780
      %v792 = vpack.c.b16 %v783, %v782
      %v793 = vpack.c.b16 %v785, %v784
      %802 = vmatprep.subr.bf16.mxu0 0
      %803 = vmatpush1.bf16.msra.mxu0 %v793
      %804 = vmatprep.subr.bf16.mxu0 0
      %805 = vmatpush1.bf16.msra.mxu0 %v792
      %806 = vmatprep.subr.bf16.mxu0 0
      %807 = vmatpush1.bf16.msra.mxu0 %v791
      %808 = vmatprep.subr.bf16.mxu0 0
      %809 = vmatpush1.bf16.msra.mxu0 %v790
      %810 = vmatprep.subr.bf16.mxu0 0
      %811 = vmatpush1.bf16.msra.mxu0 %v789
      %812 = vmatprep.subr.bf16.mxu0 0
      %813 = vmatpush1.bf16.msra.mxu0 %v788
      %814 = vmatprep.subr.bf16.mxu0 0
      %815 = vmatpush1.bf16.msra.mxu0 %v787
      %816 = vmatprep.subr.bf16.mxu0 0
      %817 = vmatpush1.bf16.msra.mxu0 %v786
      %818 = vmatprep.subr.bf16.mxu0 0
      %819 = vmatpush2.bf16.msra.mxu0 0
      %820 = vmatprep.subr.bf16.mxu0 0
      %821 = vmatpush2.bf16.msra.mxu0 0
      %822 = vmatprep.subr.bf16.mxu0 0
      %823 = vmatpush2.bf16.msra.mxu0 0
      %824 = vmatprep.subr.bf16.mxu0 0
      %825 = vmatpush2.bf16.msra.mxu0 0
      %826 = vmatprep.subr.bf16.mxu0 0
      %827 = vmatpush2.bf16.msra.mxu0 0
      %828 = vmatprep.subr.bf16.mxu0 0
      %829 = vmatpush2.bf16.msra.mxu0 0
      %830 = vmatprep.subr.bf16.mxu0 0
      %831 = vmatpush2.bf16.msra.mxu0 0
      %832 = vmatprep.subr.bf16.mxu0 0
      %833 = vmatpush2.bf16.msra.mxu0 0
      %834 = vmatprep.mubr.bf16.mxu0 0
      %835 = vmatmul.mubr.bf16.gmra.mxu0 %v736
      %v836 = vpop.f32.mrf.mxu0
      %v837 = vadd.f32 0.0, %v836
      %v838 = vpop.f32.mrf.mxu0
      %v839 = vpop.f32.mrf.mxu0
      %v840 = vpop.f32.mrf.mxu0
      %841 = vdwg.mxu0
      %v842 = vadd.f32 %v731, %v837
      %v843 = vtanh.pop %v842
      %p844 = scmp.ge.s32.totalorder %s628, 0
      %p845 = scmp.lt.s32.totalorder %s628, 100
      %p846 = pnand %p844, %p845
      %p847 = pneg %p846
      %s848 = scalar_select %p847, 1, 0
      %v849 = vstv %s848
      %vm850 = vcmp.eq.s32.totalorder %v849, 1
      %v851 = vsel %vm850, %v843, %v280
      %s852 = sadd.s32 %s282, 4294967293
      %s853 = scalar_lea.vmem [#allocation7], 192
      %v854 = vld [vmem:[%s853] sm:$0xf]
      %v855 = vld [vmem:[%s853 + $0x4] sm:$0xf]
      %v856 = vld [vmem:[%s853 + $0x8] sm:$0xf]
      %v857 = vld [vmem:[%s853 + $0xc] sm:$0xf]
      %v858 = vld [vmem:[%s853 + $0x10] sm:$0xf]
      %v859 = vld [vmem:[%s853 + $0x14] sm:$0xf]
      %v860 = vld [vmem:[%s853 + $0x18] sm:$0xf]
      %v861 = vld [vmem:[%s853 + $0x1c] sm:$0xf]
      %v862 = vld [vmem:[%s853 + $0x20] sm:$0xf]
      %v863 = vld [vmem:[%s853 + $0x24] sm:$0xf]
      %v864 = vld [vmem:[%s853 + $0x28] sm:$0xf]
      %v865 = vld [vmem:[%s853 + $0x2c] sm:$0xf]
      %v866 = vld [vmem:[%s853 + $0x30] sm:$0xf]
      %v867 = vld [vmem:[%s853 + $0x34] sm:$0xf]
      %v868 = vld [vmem:[%s853 + $0x38] sm:$0xf]
      %v869 = vld [vmem:[%s853 + $0x3c] sm:$0xf]
      %s870 = scalar_lea.vmem %s3, 3
      %v871 = vld [vmem:[%s870] sm:$0x1]
      %v888 = vunpack.c.l.b16 %v854
      %v889 = vunpack.c.l.b16 %v855
      %v890 = vunpack.c.l.b16 %v856
      %v891 = vunpack.c.l.b16 %v857
      %v892 = vunpack.c.l.b16 %v858
      %v893 = vunpack.c.l.b16 %v859
      %v894 = vunpack.c.l.b16 %v860
      %v895 = vunpack.c.l.b16 %v861
      %v896 = vunpack.c.l.b16 %v862
      %v897 = vunpack.c.l.b16 %v863
      %v898 = vunpack.c.l.b16 %v864
      %v899 = vunpack.c.l.b16 %v865
      %v900 = vunpack.c.l.b16 %v866
      %v901 = vunpack.c.l.b16 %v867
      %v902 = vunpack.c.l.b16 %v868
      %v903 = vunpack.c.l.b16 %v869
      %v904 = vpack.c.b16 %v889, %v888
      %v905 = vpack.c.b16 %v891, %v890
      %v906 = vpack.c.b16 %v893, %v892
      %v907 = vpack.c.b16 %v895, %v894
      %v908 = vpack.c.b16 %v897, %v896
      %v909 = vpack.c.b16 %v899, %v898
      %v910 = vpack.c.b16 %v901, %v900
      %v911 = vpack.c.b16 %v903, %v902
      %920 = vmatprep.subr.bf16.mxu0 0
      %921 = vmatpush1.bf16.msra.mxu0 %v911
      %922 = vmatprep.subr.bf16.mxu0 0
      %923 = vmatpush1.bf16.msra.mxu0 %v910
      %924 = vmatprep.subr.bf16.mxu0 0
      %925 = vmatpush1.bf16.msra.mxu0 %v909
      %926 = vmatprep.subr.bf16.mxu0 0
      %927 = vmatpush1.bf16.msra.mxu0 %v908
      %928 = vmatprep.subr.bf16.mxu0 0
      %929 = vmatpush1.bf16.msra.mxu0 %v907
      %930 = vmatprep.subr.bf16.mxu0 0
      %931 = vmatpush1.bf16.msra.mxu0 %v906
      %932 = vmatprep.subr.bf16.mxu0 0
      %933 = vmatpush1.bf16.msra.mxu0 %v905
      %934 = vmatprep.subr.bf16.mxu0 0
      %935 = vmatpush1.bf16.msra.mxu0 %v904
      %936 = vmatprep.subr.bf16.mxu0 0
      %937 = vmatpush2.bf16.msra.mxu0 0
      %938 = vmatprep.subr.bf16.mxu0 0
      %939 = vmatpush2.bf16.msra.mxu0 0
      %940 = vmatprep.subr.bf16.mxu0 0
      %941 = vmatpush2.bf16.msra.mxu0 0
      %942 = vmatprep.subr.bf16.mxu0 0
      %943 = vmatpush2.bf16.msra.mxu0 0
      %944 = vmatprep.subr.bf16.mxu0 0
      %945 = vmatpush2.bf16.msra.mxu0 0
      %946 = vmatprep.subr.bf16.mxu0 0
      %947 = vmatpush2.bf16.msra.mxu0 0
      %948 = vmatprep.subr.bf16.mxu0 0
      %949 = vmatpush2.bf16.msra.mxu0 0
      %950 = vmatprep.subr.bf16.mxu0 0
      %951 = vmatpush2.bf16.msra.mxu0 0
      %952 = vmatprep.mubr.bf16.mxu0 0
      %953 = vmatmul.mubr.bf16.gmra.mxu0 %v736
      %v954 = vpop.f32.mrf.mxu0
      %v955 = vadd.f32 %v871, %v954
      %v956 = vpop.f32.mrf.mxu0
      %v957 = vpop.f32.mrf.mxu0
      %v958 = vpop.f32.mrf.mxu0
      %959 = vdwg.mxu0
      %v960 = vpack.c.bf16 %v281, %v281
      %s961 = scalar_lea.vmem [#allocation9], 192
      %v962 = vld [vmem:[%s961] sm:$0xf]
      %v963 = vld [vmem:[%s961 + $0x4] sm:$0xf]
      %v964 = vld [vmem:[%s961 + $0x8] sm:$0xf]
      %v965 = vld [vmem:[%s961 + $0xc] sm:$0xf]
      %v966 = vld [vmem:[%s961 + $0x10] sm:$0xf]
      %v967 = vld [vmem:[%s961 + $0x14] sm:$0xf]
      %v968 = vld [vmem:[%s961 + $0x18] sm:$0xf]
      %v969 = vld [vmem:[%s961 + $0x1c] sm:$0xf]
      %v970 = vld [vmem:[%s961 + $0x20] sm:$0xf]
      %v971 = vld [vmem:[%s961 + $0x24] sm:$0xf]
      %v972 = vld [vmem:[%s961 + $0x28] sm:$0xf]
      %v973 = vld [vmem:[%s961 + $0x2c] sm:$0xf]
      %v974 = vld [vmem:[%s961 + $0x30] sm:$0xf]
      %v975 = vld [vmem:[%s961 + $0x34] sm:$0xf]
      %v976 = vld [vmem:[%s961 + $0x38] sm:$0xf]
      %v977 = vld [vmem:[%s961 + $0x3c] sm:$0xf]
      %v994 = vunpack.c.l.b16 %v962
      %v995 = vunpack.c.l.b16 %v963
      %v996 = vunpack.c.l.b16 %v964
      %v997 = vunpack.c.l.b16 %v965
      %v998 = vunpack.c.l.b16 %v966
      %v999 = vunpack.c.l.b16 %v967
      %v1000 = vunpack.c.l.b16 %v968
      %v1001 = vunpack.c.l.b16 %v969
      %v1002 = vunpack.c.l.b16 %v970
      %v1003 = vunpack.c.l.b16 %v971
      %v1004 = vunpack.c.l.b16 %v972
      %v1005 = vunpack.c.l.b16 %v973
      %v1006 = vunpack.c.l.b16 %v974
      %v1007 = vunpack.c.l.b16 %v975
      %v1008 = vunpack.c.l.b16 %v976
      %v1009 = vunpack.c.l.b16 %v977
      %v1010 = vpack.c.b16 %v995, %v994
      %v1011 = vpack.c.b16 %v997, %v996
      %v1012 = vpack.c.b16 %v999, %v998
      %v1013 = vpack.c.b16 %v1001, %v1000
      %v1014 = vpack.c.b16 %v1003, %v1002
      %v1015 = vpack.c.b16 %v1005, %v1004
      %v1016 = vpack.c.b16 %v1007, %v1006
      %v1017 = vpack.c.b16 %v1009, %v1008
      %1026 = vmatprep.subr.bf16.mxu0 0
      %1027 = vmatpush1.bf16.msra.mxu0 %v1017
      %1028 = vmatprep.subr.bf16.mxu0 0
      %1029 = vmatpush1.bf16.msra.mxu0 %v1016
      %1030 = vmatprep.subr.bf16.mxu0 0
      %1031 = vmatpush1.bf16.msra.mxu0 %v1015
      %1032 = vmatprep.subr.bf16.mxu0 0
      %1033 = vmatpush1.bf16.msra.mxu0 %v1014
      %1034 = vmatprep.subr.bf16.mxu0 0
      %1035 = vmatpush1.bf16.msra.mxu0 %v1013
      %1036 = vmatprep.subr.bf16.mxu0 0
      %1037 = vmatpush1.bf16.msra.mxu0 %v1012
      %1038 = vmatprep.subr.bf16.mxu0 0
      %1039 = vmatpush1.bf16.msra.mxu0 %v1011
      %1040 = vmatprep.subr.bf16.mxu0 0
      %1041 = vmatpush1.bf16.msra.mxu0 %v1010
      %1042 = vmatprep.subr.bf16.mxu0 0
      %1043 = vmatpush2.bf16.msra.mxu0 0
      %1044 = vmatprep.subr.bf16.mxu0 0
      %1045 = vmatpush2.bf16.msra.mxu0 0
      %1046 = vmatprep.subr.bf16.mxu0 0
      %1047 = vmatpush2.bf16.msra.mxu0 0
      %1048 = vmatprep.subr.bf16.mxu0 0
      %1049 = vmatpush2.bf16.msra.mxu0 0
      %1050 = vmatprep.subr.bf16.mxu0 0
      %1051 = vmatpush2.bf16.msra.mxu0 0
      %1052 = vmatprep.subr.bf16.mxu0 0
      %1053 = vmatpush2.bf16.msra.mxu0 0
      %1054 = vmatprep.subr.bf16.mxu0 0
      %1055 = vmatpush2.bf16.msra.mxu0 0
      %1056 = vmatprep.subr.bf16.mxu0 0
      %1057 = vmatpush2.bf16.msra.mxu0 0
      %1058 = vmatprep.mubr.bf16.mxu0 0
      %1059 = vmatmul.mubr.bf16.gmra.mxu0 %v960
      %v1060 = vpop.f32.mrf.mxu0
      %v1061 = vadd.f32 0.0, %v1060
      %v1062 = vpop.f32.mrf.mxu0
      %v1063 = vpop.f32.mrf.mxu0
      %v1064 = vpop.f32.mrf.mxu0
      %1065 = vdwg.mxu0
      %v1066 = vadd.f32 %v955, %v1061
      %v1067 = vtanh.pop %v1066
      %p1068 = scmp.ge.s32.totalorder %s852, 0
      %p1069 = scmp.lt.s32.totalorder %s852, 100
      %p1070 = pnand %p1068, %p1069
      %p1071 = pneg %p1070
      %s1072 = scalar_select %p1071, 1, 0
      %v1073 = vstv %s1072
      %vm1074 = vcmp.eq.s32.totalorder %v1073, 1
      %v1075 = vsel %vm1074, %v1067, %v281
      %p1076 = scmp.gt.s32.totalorder %s852, 0
      %s1077 = scalar_select %p1076, %s852, 0
      %p1078 = scmp.lt.s32.totalorder %s1077, 99
      %s1079 = scalar_select %p1078, %s1077, 99
      // Predicated region
      $region49: #{tpu_custom_call.1} parent=45 // pred_check
        _
      $region50: #{tpu_custom_call.1} parent=45 // pred_check_branch
        %1081 = sbr.rel (%p1070) target = $region52
      $region51: #{tpu_custom_call.1} parent=45 // pred_region
        %s1082 = scalar_lea.vmem [#allocation2], %s1079
        %1083 = vst [vmem:[%s1082] sm:$0x1] %v1075
      $region52: #{tpu_custom_call.1} parent=45 // pred_fallthru
        _
      %s1084 = sadd.s32 %s282, 1
      %p1085 = scmp.gt.s32.totalorder %s1084, 0
      %s1086 = scalar_select %p1085, %s1084, 0
      %p1087 = scmp.lt.s32.totalorder %s1086, 99
      %s1088 = scalar_select %p1087, %s1086, 99
      %s1089 = scalar_lea.vmem [#allocation3], %s1088
      %v1090 = vld [vmem:[%s1089] sm:$0x1]
      %v1091 = vpack.c.bf16 %v403, %v403
      %v1092 = vld [vmem:[#allocation9] sm:$0xf]
      %v1093 = vld [vmem:[#allocation9 + $0x4] sm:$0xf]
      %v1094 = vld [vmem:[#allocation9 + $0x8] sm:$0xf]
      %v1095 = vld [vmem:[#allocation9 + $0xc] sm:$0xf]
      %v1096 = vld [vmem:[#allocation9 + $0x10] sm:$0xf]
      %v1097 = vld [vmem:[#allocation9 + $0x14] sm:$0xf]
      %v1098 = vld [vmem:[#allocation9 + $0x18] sm:$0xf]
      %v1099 = vld [vmem:[#allocation9 + $0x1c] sm:$0xf]
      %v1100 = vld [vmem:[#allocation9 + $0x20] sm:$0xf]
      %v1101 = vld [vmem:[#allocation9 + $0x24] sm:$0xf]
      %v1102 = vld [vmem:[#allocation9 + $0x28] sm:$0xf]
      %v1103 = vld [vmem:[#allocation9 + $0x2c] sm:$0xf]
      %v1104 = vld [vmem:[#allocation9 + $0x30] sm:$0xf]
      %v1105 = vld [vmem:[#allocation9 + $0x34] sm:$0xf]
      %v1106 = vld [vmem:[#allocation9 + $0x38] sm:$0xf]
      %v1107 = vld [vmem:[#allocation9 + $0x3c] sm:$0xf]
      %v1124 = vunpack.c.l.b16 %v1092
      %v1125 = vunpack.c.l.b16 %v1093
      %v1126 = vunpack.c.l.b16 %v1094
      %v1127 = vunpack.c.l.b16 %v1095
      %v1128 = vunpack.c.l.b16 %v1096
      %v1129 = vunpack.c.l.b16 %v1097
      %v1130 = vunpack.c.l.b16 %v1098
      %v1131 = vunpack.c.l.b16 %v1099
      %v1132 = vunpack.c.l.b16 %v1100
      %v1133 = vunpack.c.l.b16 %v1101
      %v1134 = vunpack.c.l.b16 %v1102
      %v1135 = vunpack.c.l.b16 %v1103
      %v1136 = vunpack.c.l.b16 %v1104
      %v1137 = vunpack.c.l.b16 %v1105
      %v1138 = vunpack.c.l.b16 %v1106
      %v1139 = vunpack.c.l.b16 %v1107
      %v1140 = vpack.c.b16 %v1125, %v1124
      %v1141 = vpack.c.b16 %v1127, %v1126
      %v1142 = vpack.c.b16 %v1129, %v1128
      %v1143 = vpack.c.b16 %v1131, %v1130
      %v1144 = vpack.c.b16 %v1133, %v1132
      %v1145 = vpack.c.b16 %v1135, %v1134
      %v1146 = vpack.c.b16 %v1137, %v1136
      %v1147 = vpack.c.b16 %v1139, %v1138
      %1156 = vmatprep.subr.bf16.mxu0 0
      %1157 = vmatpush1.bf16.msra.mxu0 %v1147
      %1158 = vmatprep.subr.bf16.mxu0 0
      %1159 = vmatpush1.bf16.msra.mxu0 %v1146
      %1160 = vmatprep.subr.bf16.mxu0 0
      %1161 = vmatpush1.bf16.msra.mxu0 %v1145
      %1162 = vmatprep.subr.bf16.mxu0 0
      %1163 = vmatpush1.bf16.msra.mxu0 %v1144
      %1164 = vmatprep.subr.bf16.mxu0 0
      %1165 = vmatpush1.bf16.msra.mxu0 %v1143
      %1166 = vmatprep.subr.bf16.mxu0 0
      %1167 = vmatpush1.bf16.msra.mxu0 %v1142
      %1168 = vmatprep.subr.bf16.mxu0 0
      %1169 = vmatpush1.bf16.msra.mxu0 %v1141
      %1170 = vmatprep.subr.bf16.mxu0 0
      %1171 = vmatpush1.bf16.msra.mxu0 %v1140
      %1172 = vmatprep.subr.bf16.mxu0 0
      %1173 = vmatpush2.bf16.msra.mxu0 0
      %1174 = vmatprep.subr.bf16.mxu0 0
      %1175 = vmatpush2.bf16.msra.mxu0 0
      %1176 = vmatprep.subr.bf16.mxu0 0
      %1177 = vmatpush2.bf16.msra.mxu0 0
      %1178 = vmatprep.subr.bf16.mxu0 0
      %1179 = vmatpush2.bf16.msra.mxu0 0
      %1180 = vmatprep.subr.bf16.mxu0 0
      %1181 = vmatpush2.bf16.msra.mxu0 0
      %1182 = vmatprep.subr.bf16.mxu0 0
      %1183 = vmatpush2.bf16.msra.mxu0 0
      %1184 = vmatprep.subr.bf16.mxu0 0
      %1185 = vmatpush2.bf16.msra.mxu0 0
      %1186 = vmatprep.subr.bf16.mxu0 0
      %1187 = vmatpush2.bf16.msra.mxu0 0
      %1188 = vmatprep.mubr.bf16.mxu0 0
      %1189 = vmatmul.mubr.bf16.gmra.mxu0 %v1091
      %v1190 = vpop.f32.mrf.mxu0
      %v1191 = vadd.f32 0.0, %v1190
      %v1192 = vpop.f32.mrf.mxu0
      %v1193 = vpop.f32.mrf.mxu0
      %v1194 = vpop.f32.mrf.mxu0
      %1195 = vdwg.mxu0
      %v1196 = vadd.f32 %v1090, %v1191
      %v1197 = vtanh.pop %v1196
      %p1198 = scmp.ge.s32.totalorder %s1084, 0
      %p1199 = scmp.lt.s32.totalorder %s1084, 100
      %p1200 = pnand %p1198, %p1199
      %p1201 = pneg %p1200
      %s1202 = scalar_select %p1201, 1, 0
      %v1203 = vstv %s1202
      %vm1204 = vcmp.eq.s32.totalorder %v1203, 1
      %v1205 = vsel %vm1204, %v1197, %v403
      %v1206 = vld [vmem:[%s405] sm:$0xf]
      %v1207 = vld [vmem:[%s405 + $0x4] sm:$0xf]
      %v1208 = vld [vmem:[%s405 + $0x8] sm:$0xf]
      %v1209 = vld [vmem:[%s405 + $0xc] sm:$0xf]
      %v1210 = vld [vmem:[%s405 + $0x10] sm:$0xf]
      %v1211 = vld [vmem:[%s405 + $0x14] sm:$0xf]
      %v1212 = vld [vmem:[%s405 + $0x18] sm:$0xf]
      %v1213 = vld [vmem:[%s405 + $0x1c] sm:$0xf]
      %v1214 = vld [vmem:[%s405 + $0x20] sm:$0xf]
      %v1215 = vld [vmem:[%s405 + $0x24] sm:$0xf]
      %v1216 = vld [vmem:[%s405 + $0x28] sm:$0xf]
      %v1217 = vld [vmem:[%s405 + $0x2c] sm:$0xf]
      %v1218 = vld [vmem:[%s405 + $0x30] sm:$0xf]
      %v1219 = vld [vmem:[%s405 + $0x34] sm:$0xf]
      %v1220 = vld [vmem:[%s405 + $0x38] sm:$0xf]
      %v1221 = vld [vmem:[%s405 + $0x3c] sm:$0xf]
      %v1222 = vld [vmem:[%s422] sm:$0x1]
      %v1239 = vunpack.c.l.b16 %v1206
      %v1240 = vunpack.c.l.b16 %v1207
      %v1241 = vunpack.c.l.b16 %v1208
      %v1242 = vunpack.c.l.b16 %v1209
      %v1243 = vunpack.c.l.b16 %v1210
      %v1244 = vunpack.c.l.b16 %v1211
      %v1245 = vunpack.c.l.b16 %v1212
      %v1246 = vunpack.c.l.b16 %v1213
      %v1247 = vunpack.c.l.b16 %v1214
      %v1248 = vunpack.c.l.b16 %v1215
      %v1249 = vunpack.c.l.b16 %v1216
      %v1250 = vunpack.c.l.b16 %v1217
      %v1251 = vunpack.c.l.b16 %v1218
      %v1252 = vunpack.c.l.b16 %v1219
      %v1253 = vunpack.c.l.b16 %v1220
      %v1254 = vunpack.c.l.b16 %v1221
      %v1255 = vpack.c.b16 %v1240, %v1239
      %v1256 = vpack.c.b16 %v1242, %v1241
      %v1257 = vpack.c.b16 %v1244, %v1243
      %v1258 = vpack.c.b16 %v1246, %v1245
      %v1259 = vpack.c.b16 %v1248, %v1247
      %v1260 = vpack.c.b16 %v1250, %v1249
      %v1261 = vpack.c.b16 %v1252, %v1251
      %v1262 = vpack.c.b16 %v1254, %v1253
      %1271 = vmatprep.subr.bf16.mxu0 0
      %1272 = vmatpush1.bf16.msra.mxu0 %v1262
      %1273 = vmatprep.subr.bf16.mxu0 0
      %1274 = vmatpush1.bf16.msra.mxu0 %v1261
      %1275 = vmatprep.subr.bf16.mxu0 0
      %1276 = vmatpush1.bf16.msra.mxu0 %v1260
      %1277 = vmatprep.subr.bf16.mxu0 0
      %1278 = vmatpush1.bf16.msra.mxu0 %v1259
      %1279 = vmatprep.subr.bf16.mxu0 0
      %1280 = vmatpush1.bf16.msra.mxu0 %v1258
      %1281 = vmatprep.subr.bf16.mxu0 0
      %1282 = vmatpush1.bf16.msra.mxu0 %v1257
      %1283 = vmatprep.subr.bf16.mxu0 0
      %1284 = vmatpush1.bf16.msra.mxu0 %v1256
      %1285 = vmatprep.subr.bf16.mxu0 0
      %1286 = vmatpush1.bf16.msra.mxu0 %v1255
      %1287 = vmatprep.subr.bf16.mxu0 0
      %1288 = vmatpush2.bf16.msra.mxu0 0
      %1289 = vmatprep.subr.bf16.mxu0 0
      %1290 = vmatpush2.bf16.msra.mxu0 0
      %1291 = vmatprep.subr.bf16.mxu0 0
      %1292 = vmatpush2.bf16.msra.mxu0 0
      %1293 = vmatprep.subr.bf16.mxu0 0
      %1294 = vmatpush2.bf16.msra.mxu0 0
      %1295 = vmatprep.subr.bf16.mxu0 0
      %1296 = vmatpush2.bf16.msra.mxu0 0
      %1297 = vmatprep.subr.bf16.mxu0 0
      %1298 = vmatpush2.bf16.msra.mxu0 0
      %1299 = vmatprep.subr.bf16.mxu0 0
      %1300 = vmatpush2.bf16.msra.mxu0 0
      %1301 = vmatprep.subr.bf16.mxu0 0
      %1302 = vmatpush2.bf16.msra.mxu0 0
      %1303 = vmatprep.mubr.bf16.mxu0 0
      %1304 = vmatmul.mubr.bf16.gmra.mxu0 %v1091
      %v1305 = vpop.f32.mrf.mxu0
      %v1306 = vadd.f32 %v1222, %v1305
      %v1307 = vpop.f32.mrf.mxu0
      %v1308 = vpop.f32.mrf.mxu0
      %v1309 = vpop.f32.mrf.mxu0
      %1310 = vdwg.mxu0
      %v1311 = vpack.c.bf16 %v627, %v627
      %v1312 = vld [vmem:[%s513] sm:$0xf]
      %v1313 = vld [vmem:[%s513 + $0x4] sm:$0xf]
      %v1314 = vld [vmem:[%s513 + $0x8] sm:$0xf]
      %v1315 = vld [vmem:[%s513 + $0xc] sm:$0xf]
      %v1316 = vld [vmem:[%s513 + $0x10] sm:$0xf]
      %v1317 = vld [vmem:[%s513 + $0x14] sm:$0xf]
      %v1318 = vld [vmem:[%s513 + $0x18] sm:$0xf]
      %v1319 = vld [vmem:[%s513 + $0x1c] sm:$0xf]
      %v1320 = vld [vmem:[%s513 + $0x20] sm:$0xf]
      %v1321 = vld [vmem:[%s513 + $0x24] sm:$0xf]
      %v1322 = vld [vmem:[%s513 + $0x28] sm:$0xf]
      %v1323 = vld [vmem:[%s513 + $0x2c] sm:$0xf]
      %v1324 = vld [vmem:[%s513 + $0x30] sm:$0xf]
      %v1325 = vld [vmem:[%s513 + $0x34] sm:$0xf]
      %v1326 = vld [vmem:[%s513 + $0x38] sm:$0xf]
      %v1327 = vld [vmem:[%s513 + $0x3c] sm:$0xf]
      %v1344 = vunpack.c.l.b16 %v1312
      %v1345 = vunpack.c.l.b16 %v1313
      %v1346 = vunpack.c.l.b16 %v1314
      %v1347 = vunpack.c.l.b16 %v1315
      %v1348 = vunpack.c.l.b16 %v1316
      %v1349 = vunpack.c.l.b16 %v1317
      %v1350 = vunpack.c.l.b16 %v1318
      %v1351 = vunpack.c.l.b16 %v1319
      %v1352 = vunpack.c.l.b16 %v1320
      %v1353 = vunpack.c.l.b16 %v1321
      %v1354 = vunpack.c.l.b16 %v1322
      %v1355 = vunpack.c.l.b16 %v1323
      %v1356 = vunpack.c.l.b16 %v1324
      %v1357 = vunpack.c.l.b16 %v1325
      %v1358 = vunpack.c.l.b16 %v1326
      %v1359 = vunpack.c.l.b16 %v1327
      %v1360 = vpack.c.b16 %v1345, %v1344
      %v1361 = vpack.c.b16 %v1347, %v1346
      %v1362 = vpack.c.b16 %v1349, %v1348
      %v1363 = vpack.c.b16 %v1351, %v1350
      %v1364 = vpack.c.b16 %v1353, %v1352
      %v1365 = vpack.c.b16 %v1355, %v1354
      %v1366 = vpack.c.b16 %v1357, %v1356
      %v1367 = vpack.c.b16 %v1359, %v1358
      %1376 = vmatprep.subr.bf16.mxu0 0
      %1377 = vmatpush1.bf16.msra.mxu0 %v1367
      %1378 = vmatprep.subr.bf16.mxu0 0
      %1379 = vmatpush1.bf16.msra.mxu0 %v1366
      %1380 = vmatprep.subr.bf16.mxu0 0
      %1381 = vmatpush1.bf16.msra.mxu0 %v1365
      %1382 = vmatprep.subr.bf16.mxu0 0
      %1383 = vmatpush1.bf16.msra.mxu0 %v1364
      %1384 = vmatprep.subr.bf16.mxu0 0
      %1385 = vmatpush1.bf16.msra.mxu0 %v1363
      %1386 = vmatprep.subr.bf16.mxu0 0
      %1387 = vmatpush1.bf16.msra.mxu0 %v1362
      %1388 = vmatprep.subr.bf16.mxu0 0
      %1389 = vmatpush1.bf16.msra.mxu0 %v1361
      %1390 = vmatprep.subr.bf16.mxu0 0
      %1391 = vmatpush1.bf16.msra.mxu0 %v1360
      %1392 = vmatprep.subr.bf16.mxu0 0
      %1393 = vmatpush2.bf16.msra.mxu0 0
      %1394 = vmatprep.subr.bf16.mxu0 0
      %1395 = vmatpush2.bf16.msra.mxu0 0
      %1396 = vmatprep.subr.bf16.mxu0 0
      %1397 = vmatpush2.bf16.msra.mxu0 0
      %1398 = vmatprep.subr.bf16.mxu0 0
      %1399 = vmatpush2.bf16.msra.mxu0 0
      %1400 = vmatprep.subr.bf16.mxu0 0
      %1401 = vmatpush2.bf16.msra.mxu0 0
      %1402 = vmatprep.subr.bf16.mxu0 0
      %1403 = vmatpush2.bf16.msra.mxu0 0
      %1404 = vmatprep.subr.bf16.mxu0 0
      %1405 = vmatpush2.bf16.msra.mxu0 0
      %1406 = vmatprep.subr.bf16.mxu0 0
      %1407 = vmatpush2.bf16.msra.mxu0 0
      %1408 = vmatprep.mubr.bf16.mxu0 0
      %1409 = vmatmul.mubr.bf16.gmra.mxu0 %v1311
      %v1410 = vpop.f32.mrf.mxu0
      %v1411 = vadd.f32 0.0, %v1410
      %v1412 = vpop.f32.mrf.mxu0
      %v1413 = vpop.f32.mrf.mxu0
      %v1414 = vpop.f32.mrf.mxu0
      %1415 = vdwg.mxu0
      %v1416 = vadd.f32 %v1306, %v1411
      %v1417 = vtanh.pop %v1416
      %v1418 = vsel %vm402, %v1417, %v627
      %v1419 = vld [vmem:[%s629] sm:$0xf]
      %v1420 = vld [vmem:[%s629 + $0x4] sm:$0xf]
      %v1421 = vld [vmem:[%s629 + $0x8] sm:$0xf]
      %v1422 = vld [vmem:[%s629 + $0xc] sm:$0xf]
      %v1423 = vld [vmem:[%s629 + $0x10] sm:$0xf]
      %v1424 = vld [vmem:[%s629 + $0x14] sm:$0xf]
      %v1425 = vld [vmem:[%s629 + $0x18] sm:$0xf]
      %v1426 = vld [vmem:[%s629 + $0x1c] sm:$0xf]
      %v1427 = vld [vmem:[%s629 + $0x20] sm:$0xf]
      %v1428 = vld [vmem:[%s629 + $0x24] sm:$0xf]
      %v1429 = vld [vmem:[%s629 + $0x28] sm:$0xf]
      %v1430 = vld [vmem:[%s629 + $0x2c] sm:$0xf]
      %v1431 = vld [vmem:[%s629 + $0x30] sm:$0xf]
      %v1432 = vld [vmem:[%s629 + $0x34] sm:$0xf]
      %v1433 = vld [vmem:[%s629 + $0x38] sm:$0xf]
      %v1434 = vld [vmem:[%s629 + $0x3c] sm:$0xf]
      %v1435 = vld [vmem:[%s646] sm:$0x1]
      %v1452 = vunpack.c.l.b16 %v1419
      %v1453 = vunpack.c.l.b16 %v1420
      %v1454 = vunpack.c.l.b16 %v1421
      %v1455 = vunpack.c.l.b16 %v1422
      %v1456 = vunpack.c.l.b16 %v1423
      %v1457 = vunpack.c.l.b16 %v1424
      %v1458 = vunpack.c.l.b16 %v1425
      %v1459 = vunpack.c.l.b16 %v1426
      %v1460 = vunpack.c.l.b16 %v1427
      %v1461 = vunpack.c.l.b16 %v1428
      %v1462 = vunpack.c.l.b16 %v1429
      %v1463 = vunpack.c.l.b16 %v1430
      %v1464 = vunpack.c.l.b16 %v1431
      %v1465 = vunpack.c.l.b16 %v1432
      %v1466 = vunpack.c.l.b16 %v1433
      %v1467 = vunpack.c.l.b16 %v1434
      %v1468 = vpack.c.b16 %v1453, %v1452
      %v1469 = vpack.c.b16 %v1455, %v1454
      %v1470 = vpack.c.b16 %v1457, %v1456
      %v1471 = vpack.c.b16 %v1459, %v1458
      %v1472 = vpack.c.b16 %v1461, %v1460
      %v1473 = vpack.c.b16 %v1463, %v1462
      %v1474 = vpack.c.b16 %v1465, %v1464
      %v1475 = vpack.c.b16 %v1467, %v1466
      %1484 = vmatprep.subr.bf16.mxu0 0
      %1485 = vmatpush1.bf16.msra.mxu0 %v1475
      %1486 = vmatprep.subr.bf16.mxu0 0
      %1487 = vmatpush1.bf16.msra.mxu0 %v1474
      %1488 = vmatprep.subr.bf16.mxu0 0
      %1489 = vmatpush1.bf16.msra.mxu0 %v1473
      %1490 = vmatprep.subr.bf16.mxu0 0
      %1491 = vmatpush1.bf16.msra.mxu0 %v1472
      %1492 = vmatprep.subr.bf16.mxu0 0
      %1493 = vmatpush1.bf16.msra.mxu0 %v1471
      %1494 = vmatprep.subr.bf16.mxu0 0
      %1495 = vmatpush1.bf16.msra.mxu0 %v1470
      %1496 = vmatprep.subr.bf16.mxu0 0
      %1497 = vmatpush1.bf16.msra.mxu0 %v1469
      %1498 = vmatprep.subr.bf16.mxu0 0
      %1499 = vmatpush1.bf16.msra.mxu0 %v1468
      %1500 = vmatprep.subr.bf16.mxu0 0
      %1501 = vmatpush2.bf16.msra.mxu0 0
      %1502 = vmatprep.subr.bf16.mxu0 0
      %1503 = vmatpush2.bf16.msra.mxu0 0
      %1504 = vmatprep.subr.bf16.mxu0 0
      %1505 = vmatpush2.bf16.msra.mxu0 0
      %1506 = vmatprep.subr.bf16.mxu0 0
      %1507 = vmatpush2.bf16.msra.mxu0 0
      %1508 = vmatprep.subr.bf16.mxu0 0
      %1509 = vmatpush2.bf16.msra.mxu0 0
      %1510 = vmatprep.subr.bf16.mxu0 0
      %1511 = vmatpush2.bf16.msra.mxu0 0
      %1512 = vmatprep.subr.bf16.mxu0 0
      %1513 = vmatpush2.bf16.msra.mxu0 0
      %1514 = vmatprep.subr.bf16.mxu0 0
      %1515 = vmatpush2.bf16.msra.mxu0 0
      %1516 = vmatprep.mubr.bf16.mxu0 0
      %1517 = vmatmul.mubr.bf16.gmra.mxu0 %v1311
      %v1518 = vpop.f32.mrf.mxu0
      %v1519 = vadd.f32 %v1435, %v1518
      %v1520 = vpop.f32.mrf.mxu0
      %v1521 = vpop.f32.mrf.mxu0
      %v1522 = vpop.f32.mrf.mxu0
      %1523 = vdwg.mxu0
      %v1524 = vpack.c.bf16 %v851, %v851
      %v1525 = vld [vmem:[%s737] sm:$0xf]
      %v1526 = vld [vmem:[%s737 + $0x4] sm:$0xf]
      %v1527 = vld [vmem:[%s737 + $0x8] sm:$0xf]
      %v1528 = vld [vmem:[%s737 + $0xc] sm:$0xf]
      %v1529 = vld [vmem:[%s737 + $0x10] sm:$0xf]
      %v1530 = vld [vmem:[%s737 + $0x14] sm:$0xf]
      %v1531 = vld [vmem:[%s737 + $0x18] sm:$0xf]
      %v1532 = vld [vmem:[%s737 + $0x1c] sm:$0xf]
      %v1533 = vld [vmem:[%s737 + $0x20] sm:$0xf]
      %v1534 = vld [vmem:[%s737 + $0x24] sm:$0xf]
      %v1535 = vld [vmem:[%s737 + $0x28] sm:$0xf]
      %v1536 = vld [vmem:[%s737 + $0x2c] sm:$0xf]
      %v1537 = vld [vmem:[%s737 + $0x30] sm:$0xf]
      %v1538 = vld [vmem:[%s737 + $0x34] sm:$0xf]
      %v1539 = vld [vmem:[%s737 + $0x38] sm:$0xf]
      %v1540 = vld [vmem:[%s737 + $0x3c] sm:$0xf]
      %v1557 = vunpack.c.l.b16 %v1525
      %v1558 = vunpack.c.l.b16 %v1526
      %v1559 = vunpack.c.l.b16 %v1527
      %v1560 = vunpack.c.l.b16 %v1528
      %v1561 = vunpack.c.l.b16 %v1529
      %v1562 = vunpack.c.l.b16 %v1530
      %v1563 = vunpack.c.l.b16 %v1531
      %v1564 = vunpack.c.l.b16 %v1532
      %v1565 = vunpack.c.l.b16 %v1533
      %v1566 = vunpack.c.l.b16 %v1534
      %v1567 = vunpack.c.l.b16 %v1535
      %v1568 = vunpack.c.l.b16 %v1536
      %v1569 = vunpack.c.l.b16 %v1537
      %v1570 = vunpack.c.l.b16 %v1538
      %v1571 = vunpack.c.l.b16 %v1539
      %v1572 = vunpack.c.l.b16 %v1540
      %v1573 = vpack.c.b16 %v1558, %v1557
      %v1574 = vpack.c.b16 %v1560, %v1559
      %v1575 = vpack.c.b16 %v1562, %v1561
      %v1576 = vpack.c.b16 %v1564, %v1563
      %v1577 = vpack.c.b16 %v1566, %v1565
      %v1578 = vpack.c.b16 %v1568, %v1567
      %v1579 = vpack.c.b16 %v1570, %v1569
      %v1580 = vpack.c.b16 %v1572, %v1571
      %1589 = vmatprep.subr.bf16.mxu0 0
      %1590 = vmatpush1.bf16.msra.mxu0 %v1580
      %1591 = vmatprep.subr.bf16.mxu0 0
      %1592 = vmatpush1.bf16.msra.mxu0 %v1579
      %1593 = vmatprep.subr.bf16.mxu0 0
      %1594 = vmatpush1.bf16.msra.mxu0 %v1578
      %1595 = vmatprep.subr.bf16.mxu0 0
      %1596 = vmatpush1.bf16.msra.mxu0 %v1577
      %1597 = vmatprep.subr.bf16.mxu0 0
      %1598 = vmatpush1.bf16.msra.mxu0 %v1576
      %1599 = vmatprep.subr.bf16.mxu0 0
      %1600 = vmatpush1.bf16.msra.mxu0 %v1575
      %1601 = vmatprep.subr.bf16.mxu0 0
      %1602 = vmatpush1.bf16.msra.mxu0 %v1574
      %1603 = vmatprep.subr.bf16.mxu0 0
      %1604 = vmatpush1.bf16.msra.mxu0 %v1573
      %1605 = vmatprep.subr.bf16.mxu0 0
      %1606 = vmatpush2.bf16.msra.mxu0 0
      %1607 = vmatprep.subr.bf16.mxu0 0
      %1608 = vmatpush2.bf16.msra.mxu0 0
      %1609 = vmatprep.subr.bf16.mxu0 0
      %1610 = vmatpush2.bf16.msra.mxu0 0
      %1611 = vmatprep.subr.bf16.mxu0 0
      %1612 = vmatpush2.bf16.msra.mxu0 0
      %1613 = vmatprep.subr.bf16.mxu0 0
      %1614 = vmatpush2.bf16.msra.mxu0 0
      %1615 = vmatprep.subr.bf16.mxu0 0
      %1616 = vmatpush2.bf16.msra.mxu0 0
      %1617 = vmatprep.subr.bf16.mxu0 0
      %1618 = vmatpush2.bf16.msra.mxu0 0
      %1619 = vmatprep.subr.bf16.mxu0 0
      %1620 = vmatpush2.bf16.msra.mxu0 0
      %1621 = vmatprep.mubr.bf16.mxu0 0
      %1622 = vmatmul.mubr.bf16.gmra.mxu0 %v1524
      %v1623 = vpop.f32.mrf.mxu0
      %v1624 = vadd.f32 0.0, %v1623
      %v1625 = vpop.f32.mrf.mxu0
      %v1626 = vpop.f32.mrf.mxu0
      %v1627 = vpop.f32.mrf.mxu0
      %1628 = vdwg.mxu0
      %v1629 = vadd.f32 %v1519, %v1624
      %v1630 = vtanh.pop %v1629
      %v1631 = vsel %vm626, %v1630, %v851
      %v1632 = vld [vmem:[%s853] sm:$0xf]
      %v1633 = vld [vmem:[%s853 + $0x4] sm:$0xf]
      %v1634 = vld [vmem:[%s853 + $0x8] sm:$0xf]
      %v1635 = vld [vmem:[%s853 + $0xc] sm:$0xf]
      %v1636 = vld [vmem:[%s853 + $0x10] sm:$0xf]
      %v1637 = vld [vmem:[%s853 + $0x14] sm:$0xf]
      %v1638 = vld [vmem:[%s853 + $0x18] sm:$0xf]
      %v1639 = vld [vmem:[%s853 + $0x1c] sm:$0xf]
      %v1640 = vld [vmem:[%s853 + $0x20] sm:$0xf]
      %v1641 = vld [vmem:[%s853 + $0x24] sm:$0xf]
      %v1642 = vld [vmem:[%s853 + $0x28] sm:$0xf]
      %v1643 = vld [vmem:[%s853 + $0x2c] sm:$0xf]
      %v1644 = vld [vmem:[%s853 + $0x30] sm:$0xf]
      %v1645 = vld [vmem:[%s853 + $0x34] sm:$0xf]
      %v1646 = vld [vmem:[%s853 + $0x38] sm:$0xf]
      %v1647 = vld [vmem:[%s853 + $0x3c] sm:$0xf]
      %v1648 = vld [vmem:[%s870] sm:$0x1]
      %v1665 = vunpack.c.l.b16 %v1632
      %v1666 = vunpack.c.l.b16 %v1633
      %v1667 = vunpack.c.l.b16 %v1634
      %v1668 = vunpack.c.l.b16 %v1635
      %v1669 = vunpack.c.l.b16 %v1636
      %v1670 = vunpack.c.l.b16 %v1637
      %v1671 = vunpack.c.l.b16 %v1638
      %v1672 = vunpack.c.l.b16 %v1639
      %v1673 = vunpack.c.l.b16 %v1640
      %v1674 = vunpack.c.l.b16 %v1641
      %v1675 = vunpack.c.l.b16 %v1642
      %v1676 = vunpack.c.l.b16 %v1643
      %v1677 = vunpack.c.l.b16 %v1644
      %v1678 = vunpack.c.l.b16 %v1645
      %v1679 = vunpack.c.l.b16 %v1646
      %v1680 = vunpack.c.l.b16 %v1647
      %v1681 = vpack.c.b16 %v1666, %v1665
      %v1682 = vpack.c.b16 %v1668, %v1667
      %v1683 = vpack.c.b16 %v1670, %v1669
      %v1684 = vpack.c.b16 %v1672, %v1671
      %v1685 = vpack.c.b16 %v1674, %v1673
      %v1686 = vpack.c.b16 %v1676, %v1675
      %v1687 = vpack.c.b16 %v1678, %v1677
      %v1688 = vpack.c.b16 %v1680, %v1679
      %1697 = vmatprep.subr.bf16.mxu0 0
      %1698 = vmatpush1.bf16.msra.mxu0 %v1688
      %1699 = vmatprep.subr.bf16.mxu0 0
      %1700 = vmatpush1.bf16.msra.mxu0 %v1687
      %1701 = vmatprep.subr.bf16.mxu0 0
      %1702 = vmatpush1.bf16.msra.mxu0 %v1686
      %1703 = vmatprep.subr.bf16.mxu0 0
      %1704 = vmatpush1.bf16.msra.mxu0 %v1685
      %1705 = vmatprep.subr.bf16.mxu0 0
      %1706 = vmatpush1.bf16.msra.mxu0 %v1684
      %1707 = vmatprep.subr.bf16.mxu0 0
      %1708 = vmatpush1.bf16.msra.mxu0 %v1683
      %1709 = vmatprep.subr.bf16.mxu0 0
      %1710 = vmatpush1.bf16.msra.mxu0 %v1682
      %1711 = vmatprep.subr.bf16.mxu0 0
      %1712 = vmatpush1.bf16.msra.mxu0 %v1681
      %1713 = vmatprep.subr.bf16.mxu0 0
      %1714 = vmatpush2.bf16.msra.mxu0 0
      %1715 = vmatprep.subr.bf16.mxu0 0
      %1716 = vmatpush2.bf16.msra.mxu0 0
      %1717 = vmatprep.subr.bf16.mxu0 0
      %1718 = vmatpush2.bf16.msra.mxu0 0
      %1719 = vmatprep.subr.bf16.mxu0 0
      %1720 = vmatpush2.bf16.msra.mxu0 0
      %1721 = vmatprep.subr.bf16.mxu0 0
      %1722 = vmatpush2.bf16.msra.mxu0 0
      %1723 = vmatprep.subr.bf16.mxu0 0
      %1724 = vmatpush2.bf16.msra.mxu0 0
      %1725 = vmatprep.subr.bf16.mxu0 0
      %1726 = vmatpush2.bf16.msra.mxu0 0
      %1727 = vmatprep.subr.bf16.mxu0 0
      %1728 = vmatpush2.bf16.msra.mxu0 0
      %1729 = vmatprep.mubr.bf16.mxu0 0
      %1730 = vmatmul.mubr.bf16.gmra.mxu0 %v1524
      %v1731 = vpop.f32.mrf.mxu0
      %v1732 = vadd.f32 %v1648, %v1731
      %v1733 = vpop.f32.mrf.mxu0
      %v1734 = vpop.f32.mrf.mxu0
      %v1735 = vpop.f32.mrf.mxu0
      %1736 = vdwg.mxu0
      %v1737 = vpack.c.bf16 %v1075, %v1075
      %v1738 = vld [vmem:[%s961] sm:$0xf]
      %v1739 = vld [vmem:[%s961 + $0x4] sm:$0xf]
      %v1740 = vld [vmem:[%s961 + $0x8] sm:$0xf]
      %v1741 = vld [vmem:[%s961 + $0xc] sm:$0xf]
      %v1742 = vld [vmem:[%s961 + $0x10] sm:$0xf]
      %v1743 = vld [vmem:[%s961 + $0x14] sm:$0xf]
      %v1744 = vld [vmem:[%s961 + $0x18] sm:$0xf]
      %v1745 = vld [vmem:[%s961 + $0x1c] sm:$0xf]
      %v1746 = vld [vmem:[%s961 + $0x20] sm:$0xf]
      %v1747 = vld [vmem:[%s961 + $0x24] sm:$0xf]
      %v1748 = vld [vmem:[%s961 + $0x28] sm:$0xf]
      %v1749 = vld [vmem:[%s961 + $0x2c] sm:$0xf]
      %v1750 = vld [vmem:[%s961 + $0x30] sm:$0xf]
      %v1751 = vld [vmem:[%s961 + $0x34] sm:$0xf]
      %v1752 = vld [vmem:[%s961 + $0x38] sm:$0xf]
      %v1753 = vld [vmem:[%s961 + $0x3c] sm:$0xf]
      %v1770 = vunpack.c.l.b16 %v1738
      %v1771 = vunpack.c.l.b16 %v1739
      %v1772 = vunpack.c.l.b16 %v1740
      %v1773 = vunpack.c.l.b16 %v1741
      %v1774 = vunpack.c.l.b16 %v1742
      %v1775 = vunpack.c.l.b16 %v1743
      %v1776 = vunpack.c.l.b16 %v1744
      %v1777 = vunpack.c.l.b16 %v1745
      %v1778 = vunpack.c.l.b16 %v1746
      %v1779 = vunpack.c.l.b16 %v1747
      %v1780 = vunpack.c.l.b16 %v1748
      %v1781 = vunpack.c.l.b16 %v1749
      %v1782 = vunpack.c.l.b16 %v1750
      %v1783 = vunpack.c.l.b16 %v1751
      %v1784 = vunpack.c.l.b16 %v1752
      %v1785 = vunpack.c.l.b16 %v1753
      %v1786 = vpack.c.b16 %v1771, %v1770
      %v1787 = vpack.c.b16 %v1773, %v1772
      %v1788 = vpack.c.b16 %v1775, %v1774
      %v1789 = vpack.c.b16 %v1777, %v1776
      %v1790 = vpack.c.b16 %v1779, %v1778
      %v1791 = vpack.c.b16 %v1781, %v1780
      %v1792 = vpack.c.b16 %v1783, %v1782
      %v1793 = vpack.c.b16 %v1785, %v1784
      %1802 = vmatprep.subr.bf16.mxu0 0
      %1803 = vmatpush1.bf16.msra.mxu0 %v1793
      %1804 = vmatprep.subr.bf16.mxu0 0
      %1805 = vmatpush1.bf16.msra.mxu0 %v1792
      %1806 = vmatprep.subr.bf16.mxu0 0
      %1807 = vmatpush1.bf16.msra.mxu0 %v1791
      %1808 = vmatprep.subr.bf16.mxu0 0
      %1809 = vmatpush1.bf16.msra.mxu0 %v1790
      %1810 = vmatprep.subr.bf16.mxu0 0
      %1811 = vmatpush1.bf16.msra.mxu0 %v1789
      %1812 = vmatprep.subr.bf16.mxu0 0
      %1813 = vmatpush1.bf16.msra.mxu0 %v1788
      %1814 = vmatprep.subr.bf16.mxu0 0
      %1815 = vmatpush1.bf16.msra.mxu0 %v1787
      %1816 = vmatprep.subr.bf16.mxu0 0
      %1817 = vmatpush1.bf16.msra.mxu0 %v1786
      %1818 = vmatprep.subr.bf16.mxu0 0
      %1819 = vmatpush2.bf16.msra.mxu0 0
      %1820 = vmatprep.subr.bf16.mxu0 0
      %1821 = vmatpush2.bf16.msra.mxu0 0
      %1822 = vmatprep.subr.bf16.mxu0 0
      %1823 = vmatpush2.bf16.msra.mxu0 0
      %1824 = vmatprep.subr.bf16.mxu0 0
      %1825 = vmatpush2.bf16.msra.mxu0 0
      %1826 = vmatprep.subr.bf16.mxu0 0
      %1827 = vmatpush2.bf16.msra.mxu0 0
      %1828 = vmatprep.subr.bf16.mxu0 0
      %1829 = vmatpush2.bf16.msra.mxu0 0
      %1830 = vmatprep.subr.bf16.mxu0 0
      %1831 = vmatpush2.bf16.msra.mxu0 0
      %1832 = vmatprep.subr.bf16.mxu0 0
      %1833 = vmatpush2.bf16.msra.mxu0 0
      %1834 = vmatprep.mubr.bf16.mxu0 0
      %1835 = vmatmul.mubr.bf16.gmra.mxu0 %v1737
      %v1836 = vpop.f32.mrf.mxu0
      %v1837 = vadd.f32 0.0, %v1836
      %v1838 = vpop.f32.mrf.mxu0
      %v1839 = vpop.f32.mrf.mxu0
      %v1840 = vpop.f32.mrf.mxu0
      %1841 = vdwg.mxu0
      %v1842 = vadd.f32 %v1732, %v1837
      %v1843 = vtanh.pop %v1842
      %v1844 = vsel %vm850, %v1843, %v1075
      %p1845 = scmp.gt.s32.totalorder %s628, 0
      %s1846 = scalar_select %p1845, %s628, 0
      %p1847 = scmp.lt.s32.totalorder %s1846, 99
      %s1848 = scalar_select %p1847, %s1846, 99
      // Predicated region
      $region53: #{tpu_custom_call.1} parent=45 // pred_check
        _
      $region54: #{tpu_custom_call.1} parent=45 // pred_check_branch
        %1850 = sbr.rel (%p846) target = $region56
      $region55: #{tpu_custom_call.1} parent=45 // pred_region
        %s1851 = scalar_lea.vmem [#allocation2], %s1848
        %1852 = vst [vmem:[%s1851] sm:$0x1] %v1844
      $region56: #{tpu_custom_call.1} parent=45 // pred_fallthru
        _
      %s1853 = sadd.s32 %s282, 2
      %p1854 = scmp.gt.s32.totalorder %s1853, 0
      %s1855 = scalar_select %p1854, %s1853, 0
      %p1856 = scmp.lt.s32.totalorder %s1855, 99
      %s1857 = scalar_select %p1856, %s1855, 99
      %s1858 = scalar_lea.vmem [#allocation3], %s1857
      %v1859 = vld [vmem:[%s1858] sm:$0x1]
      %v1860 = vpack.c.bf16 %v1205, %v1205
      %v1861 = vld [vmem:[#allocation9] sm:$0xf]
      %v1862 = vld [vmem:[#allocation9 + $0x4] sm:$0xf]
      %v1863 = vld [vmem:[#allocation9 + $0x8] sm:$0xf]
      %v1864 = vld [vmem:[#allocation9 + $0xc] sm:$0xf]
      %v1865 = vld [vmem:[#allocation9 + $0x10] sm:$0xf]
      %v1866 = vld [vmem:[#allocation9 + $0x14] sm:$0xf]
      %v1867 = vld [vmem:[#allocation9 + $0x18] sm:$0xf]
      %v1868 = vld [vmem:[#allocation9 + $0x1c] sm:$0xf]
      %v1869 = vld [vmem:[#allocation9 + $0x20] sm:$0xf]
      %v1870 = vld [vmem:[#allocation9 + $0x24] sm:$0xf]
      %v1871 = vld [vmem:[#allocation9 + $0x28] sm:$0xf]
      %v1872 = vld [vmem:[#allocation9 + $0x2c] sm:$0xf]
      %v1873 = vld [vmem:[#allocation9 + $0x30] sm:$0xf]
      %v1874 = vld [vmem:[#allocation9 + $0x34] sm:$0xf]
      %v1875 = vld [vmem:[#allocation9 + $0x38] sm:$0xf]
      %v1876 = vld [vmem:[#allocation9 + $0x3c] sm:$0xf]
      %v1893 = vunpack.c.l.b16 %v1861
      %v1894 = vunpack.c.l.b16 %v1862
      %v1895 = vunpack.c.l.b16 %v1863
      %v1896 = vunpack.c.l.b16 %v1864
      %v1897 = vunpack.c.l.b16 %v1865
      %v1898 = vunpack.c.l.b16 %v1866
      %v1899 = vunpack.c.l.b16 %v1867
      %v1900 = vunpack.c.l.b16 %v1868
      %v1901 = vunpack.c.l.b16 %v1869
      %v1902 = vunpack.c.l.b16 %v1870
      %v1903 = vunpack.c.l.b16 %v1871
      %v1904 = vunpack.c.l.b16 %v1872
      %v1905 = vunpack.c.l.b16 %v1873
      %v1906 = vunpack.c.l.b16 %v1874
      %v1907 = vunpack.c.l.b16 %v1875
      %v1908 = vunpack.c.l.b16 %v1876
      %v1909 = vpack.c.b16 %v1894, %v1893
      %v1910 = vpack.c.b16 %v1896, %v1895
      %v1911 = vpack.c.b16 %v1898, %v1897
      %v1912 = vpack.c.b16 %v1900, %v1899
      %v1913 = vpack.c.b16 %v1902, %v1901
      %v1914 = vpack.c.b16 %v1904, %v1903
      %v1915 = vpack.c.b16 %v1906, %v1905
      %v1916 = vpack.c.b16 %v1908, %v1907
      %1925 = vmatprep.subr.bf16.mxu0 0
      %1926 = vmatpush1.bf16.msra.mxu0 %v1916
      %1927 = vmatprep.subr.bf16.mxu0 0
      %1928 = vmatpush1.bf16.msra.mxu0 %v1915
      %1929 = vmatprep.subr.bf16.mxu0 0
      %1930 = vmatpush1.bf16.msra.mxu0 %v1914
      %1931 = vmatprep.subr.bf16.mxu0 0
      %1932 = vmatpush1.bf16.msra.mxu0 %v1913
      %1933 = vmatprep.subr.bf16.mxu0 0
      %1934 = vmatpush1.bf16.msra.mxu0 %v1912
      %1935 = vmatprep.subr.bf16.mxu0 0
      %1936 = vmatpush1.bf16.msra.mxu0 %v1911
      %1937 = vmatprep.subr.bf16.mxu0 0
      %1938 = vmatpush1.bf16.msra.mxu0 %v1910
      %1939 = vmatprep.subr.bf16.mxu0 0
      %1940 = vmatpush1.bf16.msra.mxu0 %v1909
      %1941 = vmatprep.subr.bf16.mxu0 0
      %1942 = vmatpush2.bf16.msra.mxu0 0
      %1943 = vmatprep.subr.bf16.mxu0 0
      %1944 = vmatpush2.bf16.msra.mxu0 0
      %1945 = vmatprep.subr.bf16.mxu0 0
      %1946 = vmatpush2.bf16.msra.mxu0 0
      %1947 = vmatprep.subr.bf16.mxu0 0
      %1948 = vmatpush2.bf16.msra.mxu0 0
      %1949 = vmatprep.subr.bf16.mxu0 0
      %1950 = vmatpush2.bf16.msra.mxu0 0
      %1951 = vmatprep.subr.bf16.mxu0 0
      %1952 = vmatpush2.bf16.msra.mxu0 0
      %1953 = vmatprep.subr.bf16.mxu0 0
      %1954 = vmatpush2.bf16.msra.mxu0 0
      %1955 = vmatprep.subr.bf16.mxu0 0
      %1956 = vmatpush2.bf16.msra.mxu0 0
      %1957 = vmatprep.mubr.bf16.mxu0 0
      %1958 = vmatmul.mubr.bf16.gmra.mxu0 %v1860
      %v1959 = vpop.f32.mrf.mxu0
      %v1960 = vadd.f32 0.0, %v1959
      %v1961 = vpop.f32.mrf.mxu0
      %v1962 = vpop.f32.mrf.mxu0
      %v1963 = vpop.f32.mrf.mxu0
      %1964 = vdwg.mxu0
      %v1965 = vadd.f32 %v1859, %v1960
      %v1966 = vtanh.pop %v1965
      %p1967 = scmp.ge.s32.totalorder %s1853, 0
      %p1968 = scmp.lt.s32.totalorder %s1853, 100
      %p1969 = pnand %p1967, %p1968
      %p1970 = pneg %p1969
      %s1971 = scalar_select %p1970, 1, 0
      %v1972 = vstv %s1971
      %vm1973 = vcmp.eq.s32.totalorder %v1972, 1
      %v1974 = vsel %vm1973, %v1966, %v1205
      %v1975 = vld [vmem:[%s405] sm:$0xf]
      %v1976 = vld [vmem:[%s405 + $0x4] sm:$0xf]
      %v1977 = vld [vmem:[%s405 + $0x8] sm:$0xf]
      %v1978 = vld [vmem:[%s405 + $0xc] sm:$0xf]
      %v1979 = vld [vmem:[%s405 + $0x10] sm:$0xf]
      %v1980 = vld [vmem:[%s405 + $0x14] sm:$0xf]
      %v1981 = vld [vmem:[%s405 + $0x18] sm:$0xf]
      %v1982 = vld [vmem:[%s405 + $0x1c] sm:$0xf]
      %v1983 = vld [vmem:[%s405 + $0x20] sm:$0xf]
      %v1984 = vld [vmem:[%s405 + $0x24] sm:$0xf]
      %v1985 = vld [vmem:[%s405 + $0x28] sm:$0xf]
      %v1986 = vld [vmem:[%s405 + $0x2c] sm:$0xf]
      %v1987 = vld [vmem:[%s405 + $0x30] sm:$0xf]
      %v1988 = vld [vmem:[%s405 + $0x34] sm:$0xf]
      %v1989 = vld [vmem:[%s405 + $0x38] sm:$0xf]
      %v1990 = vld [vmem:[%s405 + $0x3c] sm:$0xf]
      %v1991 = vld [vmem:[%s422] sm:$0x1]
      %v2008 = vunpack.c.l.b16 %v1975
      %v2009 = vunpack.c.l.b16 %v1976
      %v2010 = vunpack.c.l.b16 %v1977
      %v2011 = vunpack.c.l.b16 %v1978
      %v2012 = vunpack.c.l.b16 %v1979
      %v2013 = vunpack.c.l.b16 %v1980
      %v2014 = vunpack.c.l.b16 %v1981
      %v2015 = vunpack.c.l.b16 %v1982
      %v2016 = vunpack.c.l.b16 %v1983
      %v2017 = vunpack.c.l.b16 %v1984
      %v2018 = vunpack.c.l.b16 %v1985
      %v2019 = vunpack.c.l.b16 %v1986
      %v2020 = vunpack.c.l.b16 %v1987
      %v2021 = vunpack.c.l.b16 %v1988
      %v2022 = vunpack.c.l.b16 %v1989
      %v2023 = vunpack.c.l.b16 %v1990
      %v2024 = vpack.c.b16 %v2009, %v2008
      %v2025 = vpack.c.b16 %v2011, %v2010
      %v2026 = vpack.c.b16 %v2013, %v2012
      %v2027 = vpack.c.b16 %v2015, %v2014
      %v2028 = vpack.c.b16 %v2017, %v2016
      %v2029 = vpack.c.b16 %v2019, %v2018
      %v2030 = vpack.c.b16 %v2021, %v2020
      %v2031 = vpack.c.b16 %v2023, %v2022
      %2040 = vmatprep.subr.bf16.mxu0 0
      %2041 = vmatpush1.bf16.msra.mxu0 %v2031
      %2042 = vmatprep.subr.bf16.mxu0 0
      %2043 = vmatpush1.bf16.msra.mxu0 %v2030
      %2044 = vmatprep.subr.bf16.mxu0 0
      %2045 = vmatpush1.bf16.msra.mxu0 %v2029
      %2046 = vmatprep.subr.bf16.mxu0 0
      %2047 = vmatpush1.bf16.msra.mxu0 %v2028
      %2048 = vmatprep.subr.bf16.mxu0 0
      %2049 = vmatpush1.bf16.msra.mxu0 %v2027
      %2050 = vmatprep.subr.bf16.mxu0 0
      %2051 = vmatpush1.bf16.msra.mxu0 %v2026
      %2052 = vmatprep.subr.bf16.mxu0 0
      %2053 = vmatpush1.bf16.msra.mxu0 %v2025
      %2054 = vmatprep.subr.bf16.mxu0 0
      %2055 = vmatpush1.bf16.msra.mxu0 %v2024
      %2056 = vmatprep.subr.bf16.mxu0 0
      %2057 = vmatpush2.bf16.msra.mxu0 0
      %2058 = vmatprep.subr.bf16.mxu0 0
      %2059 = vmatpush2.bf16.msra.mxu0 0
      %2060 = vmatprep.subr.bf16.mxu0 0
      %2061 = vmatpush2.bf16.msra.mxu0 0
      %2062 = vmatprep.subr.bf16.mxu0 0
      %2063 = vmatpush2.bf16.msra.mxu0 0
      %2064 = vmatprep.subr.bf16.mxu0 0
      %2065 = vmatpush2.bf16.msra.mxu0 0
      %2066 = vmatprep.subr.bf16.mxu0 0
      %2067 = vmatpush2.bf16.msra.mxu0 0
      %2068 = vmatprep.subr.bf16.mxu0 0
      %2069 = vmatpush2.bf16.msra.mxu0 0
      %2070 = vmatprep.subr.bf16.mxu0 0
      %2071 = vmatpush2.bf16.msra.mxu0 0
      %2072 = vmatprep.mubr.bf16.mxu0 0
      %2073 = vmatmul.mubr.bf16.gmra.mxu0 %v1860
      %v2074 = vpop.f32.mrf.mxu0
      %v2075 = vadd.f32 %v1991, %v2074
      %v2076 = vpop.f32.mrf.mxu0
      %v2077 = vpop.f32.mrf.mxu0
      %v2078 = vpop.f32.mrf.mxu0
      %2079 = vdwg.mxu0
      %v2080 = vpack.c.bf16 %v1418, %v1418
      %v2081 = vld [vmem:[%s513] sm:$0xf]
      %v2082 = vld [vmem:[%s513 + $0x4] sm:$0xf]
      %v2083 = vld [vmem:[%s513 + $0x8] sm:$0xf]
      %v2084 = vld [vmem:[%s513 + $0xc] sm:$0xf]
      %v2085 = vld [vmem:[%s513 + $0x10] sm:$0xf]
      %v2086 = vld [vmem:[%s513 + $0x14] sm:$0xf]
      %v2087 = vld [vmem:[%s513 + $0x18] sm:$0xf]
      %v2088 = vld [vmem:[%s513 + $0x1c] sm:$0xf]
      %v2089 = vld [vmem:[%s513 + $0x20] sm:$0xf]
      %v2090 = vld [vmem:[%s513 + $0x24] sm:$0xf]
      %v2091 = vld [vmem:[%s513 + $0x28] sm:$0xf]
      %v2092 = vld [vmem:[%s513 + $0x2c] sm:$0xf]
      %v2093 = vld [vmem:[%s513 + $0x30] sm:$0xf]
      %v2094 = vld [vmem:[%s513 + $0x34] sm:$0xf]
      %v2095 = vld [vmem:[%s513 + $0x38] sm:$0xf]
      %v2096 = vld [vmem:[%s513 + $0x3c] sm:$0xf]
      %v2113 = vunpack.c.l.b16 %v2081
      %v2114 = vunpack.c.l.b16 %v2082
      %v2115 = vunpack.c.l.b16 %v2083
      %v2116 = vunpack.c.l.b16 %v2084
      %v2117 = vunpack.c.l.b16 %v2085
      %v2118 = vunpack.c.l.b16 %v2086
      %v2119 = vunpack.c.l.b16 %v2087
      %v2120 = vunpack.c.l.b16 %v2088
      %v2121 = vunpack.c.l.b16 %v2089
      %v2122 = vunpack.c.l.b16 %v2090
      %v2123 = vunpack.c.l.b16 %v2091
      %v2124 = vunpack.c.l.b16 %v2092
      %v2125 = vunpack.c.l.b16 %v2093
      %v2126 = vunpack.c.l.b16 %v2094
      %v2127 = vunpack.c.l.b16 %v2095
      %v2128 = vunpack.c.l.b16 %v2096
      %v2129 = vpack.c.b16 %v2114, %v2113
      %v2130 = vpack.c.b16 %v2116, %v2115
      %v2131 = vpack.c.b16 %v2118, %v2117
      %v2132 = vpack.c.b16 %v2120, %v2119
      %v2133 = vpack.c.b16 %v2122, %v2121
      %v2134 = vpack.c.b16 %v2124, %v2123
      %v2135 = vpack.c.b16 %v2126, %v2125
      %v2136 = vpack.c.b16 %v2128, %v2127
      %2145 = vmatprep.subr.bf16.mxu0 0
      %2146 = vmatpush1.bf16.msra.mxu0 %v2136
      %2147 = vmatprep.subr.bf16.mxu0 0
      %2148 = vmatpush1.bf16.msra.mxu0 %v2135
      %2149 = vmatprep.subr.bf16.mxu0 0
      %2150 = vmatpush1.bf16.msra.mxu0 %v2134
      %2151 = vmatprep.subr.bf16.mxu0 0
      %2152 = vmatpush1.bf16.msra.mxu0 %v2133
      %2153 = vmatprep.subr.bf16.mxu0 0
      %2154 = vmatpush1.bf16.msra.mxu0 %v2132
      %2155 = vmatprep.subr.bf16.mxu0 0
      %2156 = vmatpush1.bf16.msra.mxu0 %v2131
      %2157 = vmatprep.subr.bf16.mxu0 0
      %2158 = vmatpush1.bf16.msra.mxu0 %v2130
      %2159 = vmatprep.subr.bf16.mxu0 0
      %2160 = vmatpush1.bf16.msra.mxu0 %v2129
      %2161 = vmatprep.subr.bf16.mxu0 0
      %2162 = vmatpush2.bf16.msra.mxu0 0
      %2163 = vmatprep.subr.bf16.mxu0 0
      %2164 = vmatpush2.bf16.msra.mxu0 0
      %2165 = vmatprep.subr.bf16.mxu0 0
      %2166 = vmatpush2.bf16.msra.mxu0 0
      %2167 = vmatprep.subr.bf16.mxu0 0
      %2168 = vmatpush2.bf16.msra.mxu0 0
      %2169 = vmatprep.subr.bf16.mxu0 0
      %2170 = vmatpush2.bf16.msra.mxu0 0
      %2171 = vmatprep.subr.bf16.mxu0 0
      %2172 = vmatpush2.bf16.msra.mxu0 0
      %2173 = vmatprep.subr.bf16.mxu0 0
      %2174 = vmatpush2.bf16.msra.mxu0 0
      %2175 = vmatprep.subr.bf16.mxu0 0
      %2176 = vmatpush2.bf16.msra.mxu0 0
      %2177 = vmatprep.mubr.bf16.mxu0 0
      %2178 = vmatmul.mubr.bf16.gmra.mxu0 %v2080
      %v2179 = vpop.f32.mrf.mxu0
      %v2180 = vadd.f32 0.0, %v2179
      %v2181 = vpop.f32.mrf.mxu0
      %v2182 = vpop.f32.mrf.mxu0
      %v2183 = vpop.f32.mrf.mxu0
      %2184 = vdwg.mxu0
      %v2185 = vadd.f32 %v2075, %v2180
      %v2186 = vtanh.pop %v2185
      %v2187 = vsel %vm1204, %v2186, %v1418
      %v2188 = vld [vmem:[%s629] sm:$0xf]
      %v2189 = vld [vmem:[%s629 + $0x4] sm:$0xf]
      %v2190 = vld [vmem:[%s629 + $0x8] sm:$0xf]
      %v2191 = vld [vmem:[%s629 + $0xc] sm:$0xf]
      %v2192 = vld [vmem:[%s629 + $0x10] sm:$0xf]
      %v2193 = vld [vmem:[%s629 + $0x14] sm:$0xf]
      %v2194 = vld [vmem:[%s629 + $0x18] sm:$0xf]
      %v2195 = vld [vmem:[%s629 + $0x1c] sm:$0xf]
      %v2196 = vld [vmem:[%s629 + $0x20] sm:$0xf]
      %v2197 = vld [vmem:[%s629 + $0x24] sm:$0xf]
      %v2198 = vld [vmem:[%s629 + $0x28] sm:$0xf]
      %v2199 = vld [vmem:[%s629 + $0x2c] sm:$0xf]
      %v2200 = vld [vmem:[%s629 + $0x30] sm:$0xf]
      %v2201 = vld [vmem:[%s629 + $0x34] sm:$0xf]
      %v2202 = vld [vmem:[%s629 + $0x38] sm:$0xf]
      %v2203 = vld [vmem:[%s629 + $0x3c] sm:$0xf]
      %v2204 = vld [vmem:[%s646] sm:$0x1]
      %v2221 = vunpack.c.l.b16 %v2188
      %v2222 = vunpack.c.l.b16 %v2189
      %v2223 = vunpack.c.l.b16 %v2190
      %v2224 = vunpack.c.l.b16 %v2191
      %v2225 = vunpack.c.l.b16 %v2192
      %v2226 = vunpack.c.l.b16 %v2193
      %v2227 = vunpack.c.l.b16 %v2194
      %v2228 = vunpack.c.l.b16 %v2195
      %v2229 = vunpack.c.l.b16 %v2196
      %v2230 = vunpack.c.l.b16 %v2197
      %v2231 = vunpack.c.l.b16 %v2198
      %v2232 = vunpack.c.l.b16 %v2199
      %v2233 = vunpack.c.l.b16 %v2200
      %v2234 = vunpack.c.l.b16 %v2201
      %v2235 = vunpack.c.l.b16 %v2202
      %v2236 = vunpack.c.l.b16 %v2203
      %v2237 = vpack.c.b16 %v2222, %v2221
      %v2238 = vpack.c.b16 %v2224, %v2223
      %v2239 = vpack.c.b16 %v2226, %v2225
      %v2240 = vpack.c.b16 %v2228, %v2227
      %v2241 = vpack.c.b16 %v2230, %v2229
      %v2242 = vpack.c.b16 %v2232, %v2231
      %v2243 = vpack.c.b16 %v2234, %v2233
      %v2244 = vpack.c.b16 %v2236, %v2235
      %2253 = vmatprep.subr.bf16.mxu0 0
      %2254 = vmatpush1.bf16.msra.mxu0 %v2244
      %2255 = vmatprep.subr.bf16.mxu0 0
      %2256 = vmatpush1.bf16.msra.mxu0 %v2243
      %2257 = vmatprep.subr.bf16.mxu0 0
      %2258 = vmatpush1.bf16.msra.mxu0 %v2242
      %2259 = vmatprep.subr.bf16.mxu0 0
      %2260 = vmatpush1.bf16.msra.mxu0 %v2241
      %2261 = vmatprep.subr.bf16.mxu0 0
      %2262 = vmatpush1.bf16.msra.mxu0 %v2240
      %2263 = vmatprep.subr.bf16.mxu0 0
      %2264 = vmatpush1.bf16.msra.mxu0 %v2239
      %2265 = vmatprep.subr.bf16.mxu0 0
      %2266 = vmatpush1.bf16.msra.mxu0 %v2238
      %2267 = vmatprep.subr.bf16.mxu0 0
      %2268 = vmatpush1.bf16.msra.mxu0 %v2237
      %2269 = vmatprep.subr.bf16.mxu0 0
      %2270 = vmatpush2.bf16.msra.mxu0 0
      %2271 = vmatprep.subr.bf16.mxu0 0
      %2272 = vmatpush2.bf16.msra.mxu0 0
      %2273 = vmatprep.subr.bf16.mxu0 0
      %2274 = vmatpush2.bf16.msra.mxu0 0
      %2275 = vmatprep.subr.bf16.mxu0 0
      %2276 = vmatpush2.bf16.msra.mxu0 0
      %2277 = vmatprep.subr.bf16.mxu0 0
      %2278 = vmatpush2.bf16.msra.mxu0 0
      %2279 = vmatprep.subr.bf16.mxu0 0
      %2280 = vmatpush2.bf16.msra.mxu0 0
      %2281 = vmatprep.subr.bf16.mxu0 0
      %2282 = vmatpush2.bf16.msra.mxu0 0
      %2283 = vmatprep.subr.bf16.mxu0 0
      %2284 = vmatpush2.bf16.msra.mxu0 0
      %2285 = vmatprep.mubr.bf16.mxu0 0
      %2286 = vmatmul.mubr.bf16.gmra.mxu0 %v2080
      %v2287 = vpop.f32.mrf.mxu0
      %v2288 = vadd.f32 %v2204, %v2287
      %v2289 = vpop.f32.mrf.mxu0
      %v2290 = vpop.f32.mrf.mxu0
      %v2291 = vpop.f32.mrf.mxu0
      %2292 = vdwg.mxu0
      %v2293 = vpack.c.bf16 %v1631, %v1631
      %v2294 = vld [vmem:[%s737] sm:$0xf]
      %v2295 = vld [vmem:[%s737 + $0x4] sm:$0xf]
      %v2296 = vld [vmem:[%s737 + $0x8] sm:$0xf]
      %v2297 = vld [vmem:[%s737 + $0xc] sm:$0xf]
      %v2298 = vld [vmem:[%s737 + $0x10] sm:$0xf]
      %v2299 = vld [vmem:[%s737 + $0x14] sm:$0xf]
      %v2300 = vld [vmem:[%s737 + $0x18] sm:$0xf]
      %v2301 = vld [vmem:[%s737 + $0x1c] sm:$0xf]
      %v2302 = vld [vmem:[%s737 + $0x20] sm:$0xf]
      %v2303 = vld [vmem:[%s737 + $0x24] sm:$0xf]
      %v2304 = vld [vmem:[%s737 + $0x28] sm:$0xf]
      %v2305 = vld [vmem:[%s737 + $0x2c] sm:$0xf]
      %v2306 = vld [vmem:[%s737 + $0x30] sm:$0xf]
      %v2307 = vld [vmem:[%s737 + $0x34] sm:$0xf]
      %v2308 = vld [vmem:[%s737 + $0x38] sm:$0xf]
      %v2309 = vld [vmem:[%s737 + $0x3c] sm:$0xf]
      %v2326 = vunpack.c.l.b16 %v2294
      %v2327 = vunpack.c.l.b16 %v2295
      %v2328 = vunpack.c.l.b16 %v2296
      %v2329 = vunpack.c.l.b16 %v2297
      %v2330 = vunpack.c.l.b16 %v2298
      %v2331 = vunpack.c.l.b16 %v2299
      %v2332 = vunpack.c.l.b16 %v2300
      %v2333 = vunpack.c.l.b16 %v2301
      %v2334 = vunpack.c.l.b16 %v2302
      %v2335 = vunpack.c.l.b16 %v2303
      %v2336 = vunpack.c.l.b16 %v2304
      %v2337 = vunpack.c.l.b16 %v2305
      %v2338 = vunpack.c.l.b16 %v2306
      %v2339 = vunpack.c.l.b16 %v2307
      %v2340 = vunpack.c.l.b16 %v2308
      %v2341 = vunpack.c.l.b16 %v2309
      %v2342 = vpack.c.b16 %v2327, %v2326
      %v2343 = vpack.c.b16 %v2329, %v2328
      %v2344 = vpack.c.b16 %v2331, %v2330
      %v2345 = vpack.c.b16 %v2333, %v2332
      %v2346 = vpack.c.b16 %v2335, %v2334
      %v2347 = vpack.c.b16 %v2337, %v2336
      %v2348 = vpack.c.b16 %v2339, %v2338
      %v2349 = vpack.c.b16 %v2341, %v2340
      %2358 = vmatprep.subr.bf16.mxu0 0
      %2359 = vmatpush1.bf16.msra.mxu0 %v2349
      %2360 = vmatprep.subr.bf16.mxu0 0
      %2361 = vmatpush1.bf16.msra.mxu0 %v2348
      %2362 = vmatprep.subr.bf16.mxu0 0
      %2363 = vmatpush1.bf16.msra.mxu0 %v2347
      %2364 = vmatprep.subr.bf16.mxu0 0
      %2365 = vmatpush1.bf16.msra.mxu0 %v2346
      %2366 = vmatprep.subr.bf16.mxu0 0
      %2367 = vmatpush1.bf16.msra.mxu0 %v2345
      %2368 = vmatprep.subr.bf16.mxu0 0
      %2369 = vmatpush1.bf16.msra.mxu0 %v2344
      %2370 = vmatprep.subr.bf16.mxu0 0
      %2371 = vmatpush1.bf16.msra.mxu0 %v2343
      %2372 = vmatprep.subr.bf16.mxu0 0
      %2373 = vmatpush1.bf16.msra.mxu0 %v2342
      %2374 = vmatprep.subr.bf16.mxu0 0
      %2375 = vmatpush2.bf16.msra.mxu0 0
      %2376 = vmatprep.subr.bf16.mxu0 0
      %2377 = vmatpush2.bf16.msra.mxu0 0
      %2378 = vmatprep.subr.bf16.mxu0 0
      %2379 = vmatpush2.bf16.msra.mxu0 0
      %2380 = vmatprep.subr.bf16.mxu0 0
      %2381 = vmatpush2.bf16.msra.mxu0 0
      %2382 = vmatprep.subr.bf16.mxu0 0
      %2383 = vmatpush2.bf16.msra.mxu0 0
      %2384 = vmatprep.subr.bf16.mxu0 0
      %2385 = vmatpush2.bf16.msra.mxu0 0
      %2386 = vmatprep.subr.bf16.mxu0 0
      %2387 = vmatpush2.bf16.msra.mxu0 0
      %2388 = vmatprep.subr.bf16.mxu0 0
      %2389 = vmatpush2.bf16.msra.mxu0 0
      %2390 = vmatprep.mubr.bf16.mxu0 0
      %2391 = vmatmul.mubr.bf16.gmra.mxu0 %v2293
      %v2392 = vpop.f32.mrf.mxu0
      %v2393 = vadd.f32 0.0, %v2392
      %v2394 = vpop.f32.mrf.mxu0
      %v2395 = vpop.f32.mrf.mxu0
      %v2396 = vpop.f32.mrf.mxu0
      %2397 = vdwg.mxu0
      %v2398 = vadd.f32 %v2288, %v2393
      %v2399 = vtanh.pop %v2398
      %v2400 = vsel %vm402, %v2399, %v1631
      %v2401 = vld [vmem:[%s853] sm:$0xf]
      %v2402 = vld [vmem:[%s853 + $0x4] sm:$0xf]
      %v2403 = vld [vmem:[%s853 + $0x8] sm:$0xf]
      %v2404 = vld [vmem:[%s853 + $0xc] sm:$0xf]
      %v2405 = vld [vmem:[%s853 + $0x10] sm:$0xf]
      %v2406 = vld [vmem:[%s853 + $0x14] sm:$0xf]
      %v2407 = vld [vmem:[%s853 + $0x18] sm:$0xf]
      %v2408 = vld [vmem:[%s853 + $0x1c] sm:$0xf]
      %v2409 = vld [vmem:[%s853 + $0x20] sm:$0xf]
      %v2410 = vld [vmem:[%s853 + $0x24] sm:$0xf]
      %v2411 = vld [vmem:[%s853 + $0x28] sm:$0xf]
      %v2412 = vld [vmem:[%s853 + $0x2c] sm:$0xf]
      %v2413 = vld [vmem:[%s853 + $0x30] sm:$0xf]
      %v2414 = vld [vmem:[%s853 + $0x34] sm:$0xf]
      %v2415 = vld [vmem:[%s853 + $0x38] sm:$0xf]
      %v2416 = vld [vmem:[%s853 + $0x3c] sm:$0xf]
      %v2417 = vld [vmem:[%s870] sm:$0x1]
      %v2434 = vunpack.c.l.b16 %v2401
      %v2435 = vunpack.c.l.b16 %v2402
      %v2436 = vunpack.c.l.b16 %v2403
      %v2437 = vunpack.c.l.b16 %v2404
      %v2438 = vunpack.c.l.b16 %v2405
      %v2439 = vunpack.c.l.b16 %v2406
      %v2440 = vunpack.c.l.b16 %v2407
      %v2441 = vunpack.c.l.b16 %v2408
      %v2442 = vunpack.c.l.b16 %v2409
      %v2443 = vunpack.c.l.b16 %v2410
      %v2444 = vunpack.c.l.b16 %v2411
      %v2445 = vunpack.c.l.b16 %v2412
      %v2446 = vunpack.c.l.b16 %v2413
      %v2447 = vunpack.c.l.b16 %v2414
      %v2448 = vunpack.c.l.b16 %v2415
      %v2449 = vunpack.c.l.b16 %v2416
      %v2450 = vpack.c.b16 %v2435, %v2434
      %v2451 = vpack.c.b16 %v2437, %v2436
      %v2452 = vpack.c.b16 %v2439, %v2438
      %v2453 = vpack.c.b16 %v2441, %v2440
      %v2454 = vpack.c.b16 %v2443, %v2442
      %v2455 = vpack.c.b16 %v2445, %v2444
      %v2456 = vpack.c.b16 %v2447, %v2446
      %v2457 = vpack.c.b16 %v2449, %v2448
      %2466 = vmatprep.subr.bf16.mxu0 0
      %2467 = vmatpush1.bf16.msra.mxu0 %v2457
      %2468 = vmatprep.subr.bf16.mxu0 0
      %2469 = vmatpush1.bf16.msra.mxu0 %v2456
      %2470 = vmatprep.subr.bf16.mxu0 0
      %2471 = vmatpush1.bf16.msra.mxu0 %v2455
      %2472 = vmatprep.subr.bf16.mxu0 0
      %2473 = vmatpush1.bf16.msra.mxu0 %v2454
      %2474 = vmatprep.subr.bf16.mxu0 0
      %2475 = vmatpush1.bf16.msra.mxu0 %v2453
      %2476 = vmatprep.subr.bf16.mxu0 0
      %2477 = vmatpush1.bf16.msra.mxu0 %v2452
      %2478 = vmatprep.subr.bf16.mxu0 0
      %2479 = vmatpush1.bf16.msra.mxu0 %v2451
      %2480 = vmatprep.subr.bf16.mxu0 0
      %2481 = vmatpush1.bf16.msra.mxu0 %v2450
      %2482 = vmatprep.subr.bf16.mxu0 0
      %2483 = vmatpush2.bf16.msra.mxu0 0
      %2484 = vmatprep.subr.bf16.mxu0 0
      %2485 = vmatpush2.bf16.msra.mxu0 0
      %2486 = vmatprep.subr.bf16.mxu0 0
      %2487 = vmatpush2.bf16.msra.mxu0 0
      %2488 = vmatprep.subr.bf16.mxu0 0
      %2489 = vmatpush2.bf16.msra.mxu0 0
      %2490 = vmatprep.subr.bf16.mxu0 0
      %2491 = vmatpush2.bf16.msra.mxu0 0
      %2492 = vmatprep.subr.bf16.mxu0 0
      %2493 = vmatpush2.bf16.msra.mxu0 0
      %2494 = vmatprep.subr.bf16.mxu0 0
      %2495 = vmatpush2.bf16.msra.mxu0 0
      %2496 = vmatprep.subr.bf16.mxu0 0
      %2497 = vmatpush2.bf16.msra.mxu0 0
      %2498 = vmatprep.mubr.bf16.mxu0 0
      %2499 = vmatmul.mubr.bf16.gmra.mxu0 %v2293
      %v2500 = vpop.f32.mrf.mxu0
      %v2501 = vadd.f32 %v2417, %v2500
      %v2502 = vpop.f32.mrf.mxu0
      %v2503 = vpop.f32.mrf.mxu0
      %v2504 = vpop.f32.mrf.mxu0
      %2505 = vdwg.mxu0
      %v2506 = vpack.c.bf16 %v1844, %v1844
      %v2507 = vld [vmem:[%s961] sm:$0xf]
      %v2508 = vld [vmem:[%s961 + $0x4] sm:$0xf]
      %v2509 = vld [vmem:[%s961 + $0x8] sm:$0xf]
      %v2510 = vld [vmem:[%s961 + $0xc] sm:$0xf]
      %v2511 = vld [vmem:[%s961 + $0x10] sm:$0xf]
      %v2512 = vld [vmem:[%s961 + $0x14] sm:$0xf]
      %v2513 = vld [vmem:[%s961 + $0x18] sm:$0xf]
      %v2514 = vld [vmem:[%s961 + $0x1c] sm:$0xf]
      %v2515 = vld [vmem:[%s961 + $0x20] sm:$0xf]
      %v2516 = vld [vmem:[%s961 + $0x24] sm:$0xf]
      %v2517 = vld [vmem:[%s961 + $0x28] sm:$0xf]
      %v2518 = vld [vmem:[%s961 + $0x2c] sm:$0xf]
      %v2519 = vld [vmem:[%s961 + $0x30] sm:$0xf]
      %v2520 = vld [vmem:[%s961 + $0x34] sm:$0xf]
      %v2521 = vld [vmem:[%s961 + $0x38] sm:$0xf]
      %v2522 = vld [vmem:[%s961 + $0x3c] sm:$0xf]
      %v2539 = vunpack.c.l.b16 %v2507
      %v2540 = vunpack.c.l.b16 %v2508
      %v2541 = vunpack.c.l.b16 %v2509
      %v2542 = vunpack.c.l.b16 %v2510
      %v2543 = vunpack.c.l.b16 %v2511
      %v2544 = vunpack.c.l.b16 %v2512
      %v2545 = vunpack.c.l.b16 %v2513
      %v2546 = vunpack.c.l.b16 %v2514
      %v2547 = vunpack.c.l.b16 %v2515
      %v2548 = vunpack.c.l.b16 %v2516
      %v2549 = vunpack.c.l.b16 %v2517
      %v2550 = vunpack.c.l.b16 %v2518
      %v2551 = vunpack.c.l.b16 %v2519
      %v2552 = vunpack.c.l.b16 %v2520
      %v2553 = vunpack.c.l.b16 %v2521
      %v2554 = vunpack.c.l.b16 %v2522
      %v2555 = vpack.c.b16 %v2540, %v2539
      %v2556 = vpack.c.b16 %v2542, %v2541
      %v2557 = vpack.c.b16 %v2544, %v2543
      %v2558 = vpack.c.b16 %v2546, %v2545
      %v2559 = vpack.c.b16 %v2548, %v2547
      %v2560 = vpack.c.b16 %v2550, %v2549
      %v2561 = vpack.c.b16 %v2552, %v2551
      %v2562 = vpack.c.b16 %v2554, %v2553
      %2571 = vmatprep.subr.bf16.mxu0 0
      %2572 = vmatpush1.bf16.msra.mxu0 %v2562
      %2573 = vmatprep.subr.bf16.mxu0 0
      %2574 = vmatpush1.bf16.msra.mxu0 %v2561
      %2575 = vmatprep.subr.bf16.mxu0 0
      %2576 = vmatpush1.bf16.msra.mxu0 %v2560
      %2577 = vmatprep.subr.bf16.mxu0 0
      %2578 = vmatpush1.bf16.msra.mxu0 %v2559
      %2579 = vmatprep.subr.bf16.mxu0 0
      %2580 = vmatpush1.bf16.msra.mxu0 %v2558
      %2581 = vmatprep.subr.bf16.mxu0 0
      %2582 = vmatpush1.bf16.msra.mxu0 %v2557
      %2583 = vmatprep.subr.bf16.mxu0 0
      %2584 = vmatpush1.bf16.msra.mxu0 %v2556
      %2585 = vmatprep.subr.bf16.mxu0 0
      %2586 = vmatpush1.bf16.msra.mxu0 %v2555
      %2587 = vmatprep.subr.bf16.mxu0 0
      %2588 = vmatpush2.bf16.msra.mxu0 0
      %2589 = vmatprep.subr.bf16.mxu0 0
      %2590 = vmatpush2.bf16.msra.mxu0 0
      %2591 = vmatprep.subr.bf16.mxu0 0
      %2592 = vmatpush2.bf16.msra.mxu0 0
      %2593 = vmatprep.subr.bf16.mxu0 0
      %2594 = vmatpush2.bf16.msra.mxu0 0
      %2595 = vmatprep.subr.bf16.mxu0 0
      %2596 = vmatpush2.bf16.msra.mxu0 0
      %2597 = vmatprep.subr.bf16.mxu0 0
      %2598 = vmatpush2.bf16.msra.mxu0 0
      %2599 = vmatprep.subr.bf16.mxu0 0
      %2600 = vmatpush2.bf16.msra.mxu0 0
      %2601 = vmatprep.subr.bf16.mxu0 0
      %2602 = vmatpush2.bf16.msra.mxu0 0
      %2603 = vmatprep.mubr.bf16.mxu0 0
      %2604 = vmatmul.mubr.bf16.gmra.mxu0 %v2506
      %v2605 = vpop.f32.mrf.mxu0
      %v2606 = vadd.f32 0.0, %v2605
      %v2607 = vpop.f32.mrf.mxu0
      %v2608 = vpop.f32.mrf.mxu0
      %v2609 = vpop.f32.mrf.mxu0
      %2610 = vdwg.mxu0
      %v2611 = vadd.f32 %v2501, %v2606
      %v2612 = vtanh.pop %v2611
      %v2613 = vsel %vm626, %v2612, %v1844
      %p2614 = scmp.gt.s32.totalorder %s404, 0
      %s2615 = scalar_select %p2614, %s404, 0
      %p2616 = scmp.lt.s32.totalorder %s2615, 99
      %s2617 = scalar_select %p2616, %s2615, 99
      // Predicated region
      $region57: #{tpu_custom_call.1} parent=45 // pred_check
        _
      $region58: #{tpu_custom_call.1} parent=45 // pred_check_branch
        %2619 = sbr.rel (%p622) target = $region60
      $region59: #{tpu_custom_call.1} parent=45 // pred_region
        %s2620 = scalar_lea.vmem [#allocation2], %s2617
        %2621 = vst [vmem:[%s2620] sm:$0x1] %v2613
      $region60: #{tpu_custom_call.1} parent=45 // pred_fallthru
        _
      %s2622 = sadd.s32 %s282, 3
      %p2623 = scmp.gt.s32.totalorder %s2622, 0
      %s2624 = scalar_select %p2623, %s2622, 0
      %p2625 = scmp.lt.s32.totalorder %s2624, 99
      %s2626 = scalar_select %p2625, %s2624, 99
      %s2627 = scalar_lea.vmem [#allocation3], %s2626
      %v2628 = vld [vmem:[%s2627] sm:$0x1]
      %v2629 = vpack.c.bf16 %v1974, %v1974
      %v2630 = vld [vmem:[#allocation9] sm:$0xf]
      %v2631 = vld [vmem:[#allocation9 + $0x4] sm:$0xf]
      %v2632 = vld [vmem:[#allocation9 + $0x8] sm:$0xf]
      %v2633 = vld [vmem:[#allocation9 + $0xc] sm:$0xf]
      %v2634 = vld [vmem:[#allocation9 + $0x10] sm:$0xf]
      %v2635 = vld [vmem:[#allocation9 + $0x14] sm:$0xf]
      %v2636 = vld [vmem:[#allocation9 + $0x18] sm:$0xf]
      %v2637 = vld [vmem:[#allocation9 + $0x1c] sm:$0xf]
      %v2638 = vld [vmem:[#allocation9 + $0x20] sm:$0xf]
      %v2639 = vld [vmem:[#allocation9 + $0x24] sm:$0xf]
      %v2640 = vld [vmem:[#allocation9 + $0x28] sm:$0xf]
      %v2641 = vld [vmem:[#allocation9 + $0x2c] sm:$0xf]
      %v2642 = vld [vmem:[#allocation9 + $0x30] sm:$0xf]
      %v2643 = vld [vmem:[#allocation9 + $0x34] sm:$0xf]
      %v2644 = vld [vmem:[#allocation9 + $0x38] sm:$0xf]
      %v2645 = vld [vmem:[#allocation9 + $0x3c] sm:$0xf]
      %v2662 = vunpack.c.l.b16 %v2630
      %v2663 = vunpack.c.l.b16 %v2631
      %v2664 = vunpack.c.l.b16 %v2632
      %v2665 = vunpack.c.l.b16 %v2633
      %v2666 = vunpack.c.l.b16 %v2634
      %v2667 = vunpack.c.l.b16 %v2635
      %v2668 = vunpack.c.l.b16 %v2636
      %v2669 = vunpack.c.l.b16 %v2637
      %v2670 = vunpack.c.l.b16 %v2638
      %v2671 = vunpack.c.l.b16 %v2639
      %v2672 = vunpack.c.l.b16 %v2640
      %v2673 = vunpack.c.l.b16 %v2641
      %v2674 = vunpack.c.l.b16 %v2642
      %v2675 = vunpack.c.l.b16 %v2643
      %v2676 = vunpack.c.l.b16 %v2644
      %v2677 = vunpack.c.l.b16 %v2645
      %v2678 = vpack.c.b16 %v2663, %v2662
      %v2679 = vpack.c.b16 %v2665, %v2664
      %v2680 = vpack.c.b16 %v2667, %v2666
      %v2681 = vpack.c.b16 %v2669, %v2668
      %v2682 = vpack.c.b16 %v2671, %v2670
      %v2683 = vpack.c.b16 %v2673, %v2672
      %v2684 = vpack.c.b16 %v2675, %v2674
      %v2685 = vpack.c.b16 %v2677, %v2676
      %2694 = vmatprep.subr.bf16.mxu0 0
      %2695 = vmatpush1.bf16.msra.mxu0 %v2685
      %2696 = vmatprep.subr.bf16.mxu0 0
      %2697 = vmatpush1.bf16.msra.mxu0 %v2684
      %2698 = vmatprep.subr.bf16.mxu0 0
      %2699 = vmatpush1.bf16.msra.mxu0 %v2683
      %2700 = vmatprep.subr.bf16.mxu0 0
      %2701 = vmatpush1.bf16.msra.mxu0 %v2682
      %2702 = vmatprep.subr.bf16.mxu0 0
      %2703 = vmatpush1.bf16.msra.mxu0 %v2681
      %2704 = vmatprep.subr.bf16.mxu0 0
      %2705 = vmatpush1.bf16.msra.mxu0 %v2680
      %2706 = vmatprep.subr.bf16.mxu0 0
      %2707 = vmatpush1.bf16.msra.mxu0 %v2679
      %2708 = vmatprep.subr.bf16.mxu0 0
      %2709 = vmatpush1.bf16.msra.mxu0 %v2678
      %2710 = vmatprep.subr.bf16.mxu0 0
      %2711 = vmatpush2.bf16.msra.mxu0 0
      %2712 = vmatprep.subr.bf16.mxu0 0
      %2713 = vmatpush2.bf16.msra.mxu0 0
      %2714 = vmatprep.subr.bf16.mxu0 0
      %2715 = vmatpush2.bf16.msra.mxu0 0
      %2716 = vmatprep.subr.bf16.mxu0 0
      %2717 = vmatpush2.bf16.msra.mxu0 0
      %2718 = vmatprep.subr.bf16.mxu0 0
      %2719 = vmatpush2.bf16.msra.mxu0 0
      %2720 = vmatprep.subr.bf16.mxu0 0
      %2721 = vmatpush2.bf16.msra.mxu0 0
      %2722 = vmatprep.subr.bf16.mxu0 0
      %2723 = vmatpush2.bf16.msra.mxu0 0
      %2724 = vmatprep.subr.bf16.mxu0 0
      %2725 = vmatpush2.bf16.msra.mxu0 0
      %2726 = vmatprep.mubr.bf16.mxu0 0
      %2727 = vmatmul.mubr.bf16.gmra.mxu0 %v2629
      %v2728 = vpop.f32.mrf.mxu0
      %v2729 = vadd.f32 0.0, %v2728
      %v2730 = vpop.f32.mrf.mxu0
      %v2731 = vpop.f32.mrf.mxu0
      %v2732 = vpop.f32.mrf.mxu0
      %2733 = vdwg.mxu0
      %v2734 = vadd.f32 %v2628, %v2729
      %v2735 = vtanh.pop %v2734
      %p2736 = scmp.ge.s32.totalorder %s2622, 0
      %p2737 = scmp.lt.s32.totalorder %s2622, 100
      %p2738 = pnand %p2736, %p2737
      %p2739 = pneg %p2738
      %s2740 = scalar_select %p2739, 1, 0
      %v2741 = vstv %s2740
      %vm2742 = vcmp.eq.s32.totalorder %v2741, 1
      %v2743 = vsel %vm2742, %v2735, %v1974
      %v2744 = vld [vmem:[%s405] sm:$0xf]
      %v2745 = vld [vmem:[%s405 + $0x4] sm:$0xf]
      %v2746 = vld [vmem:[%s405 + $0x8] sm:$0xf]
      %v2747 = vld [vmem:[%s405 + $0xc] sm:$0xf]
      %v2748 = vld [vmem:[%s405 + $0x10] sm:$0xf]
      %v2749 = vld [vmem:[%s405 + $0x14] sm:$0xf]
      %v2750 = vld [vmem:[%s405 + $0x18] sm:$0xf]
      %v2751 = vld [vmem:[%s405 + $0x1c] sm:$0xf]
      %v2752 = vld [vmem:[%s405 + $0x20] sm:$0xf]
      %v2753 = vld [vmem:[%s405 + $0x24] sm:$0xf]
      %v2754 = vld [vmem:[%s405 + $0x28] sm:$0xf]
      %v2755 = vld [vmem:[%s405 + $0x2c] sm:$0xf]
      %v2756 = vld [vmem:[%s405 + $0x30] sm:$0xf]
      %v2757 = vld [vmem:[%s405 + $0x34] sm:$0xf]
      %v2758 = vld [vmem:[%s405 + $0x38] sm:$0xf]
      %v2759 = vld [vmem:[%s405 + $0x3c] sm:$0xf]
      %v2760 = vld [vmem:[%s422] sm:$0x1]
      %v2777 = vunpack.c.l.b16 %v2744
      %v2778 = vunpack.c.l.b16 %v2745
      %v2779 = vunpack.c.l.b16 %v2746
      %v2780 = vunpack.c.l.b16 %v2747
      %v2781 = vunpack.c.l.b16 %v2748
      %v2782 = vunpack.c.l.b16 %v2749
      %v2783 = vunpack.c.l.b16 %v2750
      %v2784 = vunpack.c.l.b16 %v2751
      %v2785 = vunpack.c.l.b16 %v2752
      %v2786 = vunpack.c.l.b16 %v2753
      %v2787 = vunpack.c.l.b16 %v2754
      %v2788 = vunpack.c.l.b16 %v2755
      %v2789 = vunpack.c.l.b16 %v2756
      %v2790 = vunpack.c.l.b16 %v2757
      %v2791 = vunpack.c.l.b16 %v2758
      %v2792 = vunpack.c.l.b16 %v2759
      %v2793 = vpack.c.b16 %v2778, %v2777
      %v2794 = vpack.c.b16 %v2780, %v2779
      %v2795 = vpack.c.b16 %v2782, %v2781
      %v2796 = vpack.c.b16 %v2784, %v2783
      %v2797 = vpack.c.b16 %v2786, %v2785
      %v2798 = vpack.c.b16 %v2788, %v2787
      %v2799 = vpack.c.b16 %v2790, %v2789
      %v2800 = vpack.c.b16 %v2792, %v2791
      %2809 = vmatprep.subr.bf16.mxu0 0
      %2810 = vmatpush1.bf16.msra.mxu0 %v2800
      %2811 = vmatprep.subr.bf16.mxu0 0
      %2812 = vmatpush1.bf16.msra.mxu0 %v2799
      %2813 = vmatprep.subr.bf16.mxu0 0
      %2814 = vmatpush1.bf16.msra.mxu0 %v2798
      %2815 = vmatprep.subr.bf16.mxu0 0
      %2816 = vmatpush1.bf16.msra.mxu0 %v2797
      %2817 = vmatprep.subr.bf16.mxu0 0
      %2818 = vmatpush1.bf16.msra.mxu0 %v2796
      %2819 = vmatprep.subr.bf16.mxu0 0
      %2820 = vmatpush1.bf16.msra.mxu0 %v2795
      %2821 = vmatprep.subr.bf16.mxu0 0
      %2822 = vmatpush1.bf16.msra.mxu0 %v2794
      %2823 = vmatprep.subr.bf16.mxu0 0
      %2824 = vmatpush1.bf16.msra.mxu0 %v2793
      %2825 = vmatprep.subr.bf16.mxu0 0
      %2826 = vmatpush2.bf16.msra.mxu0 0
      %2827 = vmatprep.subr.bf16.mxu0 0
      %2828 = vmatpush2.bf16.msra.mxu0 0
      %2829 = vmatprep.subr.bf16.mxu0 0
      %2830 = vmatpush2.bf16.msra.mxu0 0
      %2831 = vmatprep.subr.bf16.mxu0 0
      %2832 = vmatpush2.bf16.msra.mxu0 0
      %2833 = vmatprep.subr.bf16.mxu0 0
      %2834 = vmatpush2.bf16.msra.mxu0 0
      %2835 = vmatprep.subr.bf16.mxu0 0
      %2836 = vmatpush2.bf16.msra.mxu0 0
      %2837 = vmatprep.subr.bf16.mxu0 0
      %2838 = vmatpush2.bf16.msra.mxu0 0
      %2839 = vmatprep.subr.bf16.mxu0 0
      %2840 = vmatpush2.bf16.msra.mxu0 0
      %2841 = vmatprep.mubr.bf16.mxu0 0
      %2842 = vmatmul.mubr.bf16.gmra.mxu0 %v2629
      %v2843 = vpop.f32.mrf.mxu0
      %v2844 = vadd.f32 %v2760, %v2843
      %v2845 = vpop.f32.mrf.mxu0
      %v2846 = vpop.f32.mrf.mxu0
      %v2847 = vpop.f32.mrf.mxu0
      %2848 = vdwg.mxu0
      %v2849 = vpack.c.bf16 %v2187, %v2187
      %v2850 = vld [vmem:[%s513] sm:$0xf]
      %v2851 = vld [vmem:[%s513 + $0x4] sm:$0xf]
      %v2852 = vld [vmem:[%s513 + $0x8] sm:$0xf]
      %v2853 = vld [vmem:[%s513 + $0xc] sm:$0xf]
      %v2854 = vld [vmem:[%s513 + $0x10] sm:$0xf]
      %v2855 = vld [vmem:[%s513 + $0x14] sm:$0xf]
      %v2856 = vld [vmem:[%s513 + $0x18] sm:$0xf]
      %v2857 = vld [vmem:[%s513 + $0x1c] sm:$0xf]
      %v2858 = vld [vmem:[%s513 + $0x20] sm:$0xf]
      %v2859 = vld [vmem:[%s513 + $0x24] sm:$0xf]
      %v2860 = vld [vmem:[%s513 + $0x28] sm:$0xf]
      %v2861 = vld [vmem:[%s513 + $0x2c] sm:$0xf]
      %v2862 = vld [vmem:[%s513 + $0x30] sm:$0xf]
      %v2863 = vld [vmem:[%s513 + $0x34] sm:$0xf]
      %v2864 = vld [vmem:[%s513 + $0x38] sm:$0xf]
      %v2865 = vld [vmem:[%s513 + $0x3c] sm:$0xf]
      %v2882 = vunpack.c.l.b16 %v2850
      %v2883 = vunpack.c.l.b16 %v2851
      %v2884 = vunpack.c.l.b16 %v2852
      %v2885 = vunpack.c.l.b16 %v2853
      %v2886 = vunpack.c.l.b16 %v2854
      %v2887 = vunpack.c.l.b16 %v2855
      %v2888 = vunpack.c.l.b16 %v2856
      %v2889 = vunpack.c.l.b16 %v2857
      %v2890 = vunpack.c.l.b16 %v2858
      %v2891 = vunpack.c.l.b16 %v2859
      %v2892 = vunpack.c.l.b16 %v2860
      %v2893 = vunpack.c.l.b16 %v2861
      %v2894 = vunpack.c.l.b16 %v2862
      %v2895 = vunpack.c.l.b16 %v2863
      %v2896 = vunpack.c.l.b16 %v2864
      %v2897 = vunpack.c.l.b16 %v2865
      %v2898 = vpack.c.b16 %v2883, %v2882
      %v2899 = vpack.c.b16 %v2885, %v2884
      %v2900 = vpack.c.b16 %v2887, %v2886
      %v2901 = vpack.c.b16 %v2889, %v2888
      %v2902 = vpack.c.b16 %v2891, %v2890
      %v2903 = vpack.c.b16 %v2893, %v2892
      %v2904 = vpack.c.b16 %v2895, %v2894
      %v2905 = vpack.c.b16 %v2897, %v2896
      %2914 = vmatprep.subr.bf16.mxu0 0
      %2915 = vmatpush1.bf16.msra.mxu0 %v2905
      %2916 = vmatprep.subr.bf16.mxu0 0
      %2917 = vmatpush1.bf16.msra.mxu0 %v2904
      %2918 = vmatprep.subr.bf16.mxu0 0
      %2919 = vmatpush1.bf16.msra.mxu0 %v2903
      %2920 = vmatprep.subr.bf16.mxu0 0
      %2921 = vmatpush1.bf16.msra.mxu0 %v2902
      %2922 = vmatprep.subr.bf16.mxu0 0
      %2923 = vmatpush1.bf16.msra.mxu0 %v2901
      %2924 = vmatprep.subr.bf16.mxu0 0
      %2925 = vmatpush1.bf16.msra.mxu0 %v2900
      %2926 = vmatprep.subr.bf16.mxu0 0
      %2927 = vmatpush1.bf16.msra.mxu0 %v2899
      %2928 = vmatprep.subr.bf16.mxu0 0
      %2929 = vmatpush1.bf16.msra.mxu0 %v2898
      %2930 = vmatprep.subr.bf16.mxu0 0
      %2931 = vmatpush2.bf16.msra.mxu0 0
      %2932 = vmatprep.subr.bf16.mxu0 0
      %2933 = vmatpush2.bf16.msra.mxu0 0
      %2934 = vmatprep.subr.bf16.mxu0 0
      %2935 = vmatpush2.bf16.msra.mxu0 0
      %2936 = vmatprep.subr.bf16.mxu0 0
      %2937 = vmatpush2.bf16.msra.mxu0 0
      %2938 = vmatprep.subr.bf16.mxu0 0
      %2939 = vmatpush2.bf16.msra.mxu0 0
      %2940 = vmatprep.subr.bf16.mxu0 0
      %2941 = vmatpush2.bf16.msra.mxu0 0
      %2942 = vmatprep.subr.bf16.mxu0 0
      %2943 = vmatpush2.bf16.msra.mxu0 0
      %2944 = vmatprep.subr.bf16.mxu0 0
      %2945 = vmatpush2.bf16.msra.mxu0 0
      %2946 = vmatprep.mubr.bf16.mxu0 0
      %2947 = vmatmul.mubr.bf16.gmra.mxu0 %v2849
      %v2948 = vpop.f32.mrf.mxu0
      %v2949 = vadd.f32 0.0, %v2948
      %v2950 = vpop.f32.mrf.mxu0
      %v2951 = vpop.f32.mrf.mxu0
      %v2952 = vpop.f32.mrf.mxu0
      %2953 = vdwg.mxu0
      %v2954 = vadd.f32 %v2844, %v2949
      %v2955 = vtanh.pop %v2954
      %v2956 = vsel %vm1973, %v2955, %v2187
      %v2957 = vld [vmem:[%s629] sm:$0xf]
      %v2958 = vld [vmem:[%s629 + $0x4] sm:$0xf]
      %v2959 = vld [vmem:[%s629 + $0x8] sm:$0xf]
      %v2960 = vld [vmem:[%s629 + $0xc] sm:$0xf]
      %v2961 = vld [vmem:[%s629 + $0x10] sm:$0xf]
      %v2962 = vld [vmem:[%s629 + $0x14] sm:$0xf]
      %v2963 = vld [vmem:[%s629 + $0x18] sm:$0xf]
      %v2964 = vld [vmem:[%s629 + $0x1c] sm:$0xf]
      %v2965 = vld [vmem:[%s629 + $0x20] sm:$0xf]
      %v2966 = vld [vmem:[%s629 + $0x24] sm:$0xf]
      %v2967 = vld [vmem:[%s629 + $0x28] sm:$0xf]
      %v2968 = vld [vmem:[%s629 + $0x2c] sm:$0xf]
      %v2969 = vld [vmem:[%s629 + $0x30] sm:$0xf]
      %v2970 = vld [vmem:[%s629 + $0x34] sm:$0xf]
      %v2971 = vld [vmem:[%s629 + $0x38] sm:$0xf]
      %v2972 = vld [vmem:[%s629 + $0x3c] sm:$0xf]
      %v2973 = vld [vmem:[%s646] sm:$0x1]
      %v2990 = vunpack.c.l.b16 %v2957
      %v2991 = vunpack.c.l.b16 %v2958
      %v2992 = vunpack.c.l.b16 %v2959
      %v2993 = vunpack.c.l.b16 %v2960
      %v2994 = vunpack.c.l.b16 %v2961
      %v2995 = vunpack.c.l.b16 %v2962
      %v2996 = vunpack.c.l.b16 %v2963
      %v2997 = vunpack.c.l.b16 %v2964
      %v2998 = vunpack.c.l.b16 %v2965
      %v2999 = vunpack.c.l.b16 %v2966
      %v3000 = vunpack.c.l.b16 %v2967
      %v3001 = vunpack.c.l.b16 %v2968
      %v3002 = vunpack.c.l.b16 %v2969
      %v3003 = vunpack.c.l.b16 %v2970
      %v3004 = vunpack.c.l.b16 %v2971
      %v3005 = vunpack.c.l.b16 %v2972
      %v3006 = vpack.c.b16 %v2991, %v2990
      %v3007 = vpack.c.b16 %v2993, %v2992
      %v3008 = vpack.c.b16 %v2995, %v2994
      %v3009 = vpack.c.b16 %v2997, %v2996
      %v3010 = vpack.c.b16 %v2999, %v2998
      %v3011 = vpack.c.b16 %v3001, %v3000
      %v3012 = vpack.c.b16 %v3003, %v3002
      %v3013 = vpack.c.b16 %v3005, %v3004
      %3022 = vmatprep.subr.bf16.mxu0 0
      %3023 = vmatpush1.bf16.msra.mxu0 %v3013
      %3024 = vmatprep.subr.bf16.mxu0 0
      %3025 = vmatpush1.bf16.msra.mxu0 %v3012
      %3026 = vmatprep.subr.bf16.mxu0 0
      %3027 = vmatpush1.bf16.msra.mxu0 %v3011
      %3028 = vmatprep.subr.bf16.mxu0 0
      %3029 = vmatpush1.bf16.msra.mxu0 %v3010
      %3030 = vmatprep.subr.bf16.mxu0 0
      %3031 = vmatpush1.bf16.msra.mxu0 %v3009
      %3032 = vmatprep.subr.bf16.mxu0 0
      %3033 = vmatpush1.bf16.msra.mxu0 %v3008
      %3034 = vmatprep.subr.bf16.mxu0 0
      %3035 = vmatpush1.bf16.msra.mxu0 %v3007
      %3036 = vmatprep.subr.bf16.mxu0 0
      %3037 = vmatpush1.bf16.msra.mxu0 %v3006
      %3038 = vmatprep.subr.bf16.mxu0 0
      %3039 = vmatpush2.bf16.msra.mxu0 0
      %3040 = vmatprep.subr.bf16.mxu0 0
      %3041 = vmatpush2.bf16.msra.mxu0 0
      %3042 = vmatprep.subr.bf16.mxu0 0
      %3043 = vmatpush2.bf16.msra.mxu0 0
      %3044 = vmatprep.subr.bf16.mxu0 0
      %3045 = vmatpush2.bf16.msra.mxu0 0
      %3046 = vmatprep.subr.bf16.mxu0 0
      %3047 = vmatpush2.bf16.msra.mxu0 0
      %3048 = vmatprep.subr.bf16.mxu0 0
      %3049 = vmatpush2.bf16.msra.mxu0 0
      %3050 = vmatprep.subr.bf16.mxu0 0
      %3051 = vmatpush2.bf16.msra.mxu0 0
      %3052 = vmatprep.subr.bf16.mxu0 0
      %3053 = vmatpush2.bf16.msra.mxu0 0
      %3054 = vmatprep.mubr.bf16.mxu0 0
      %3055 = vmatmul.mubr.bf16.gmra.mxu0 %v2849
      %v3056 = vpop.f32.mrf.mxu0
      %v3057 = vadd.f32 %v2973, %v3056
      %v3058 = vpop.f32.mrf.mxu0
      %v3059 = vpop.f32.mrf.mxu0
      %v3060 = vpop.f32.mrf.mxu0
      %3061 = vdwg.mxu0
      %v3062 = vpack.c.bf16 %v2400, %v2400
      %v3063 = vld [vmem:[%s737] sm:$0xf]
      %v3064 = vld [vmem:[%s737 + $0x4] sm:$0xf]
      %v3065 = vld [vmem:[%s737 + $0x8] sm:$0xf]
      %v3066 = vld [vmem:[%s737 + $0xc] sm:$0xf]
      %v3067 = vld [vmem:[%s737 + $0x10] sm:$0xf]
      %v3068 = vld [vmem:[%s737 + $0x14] sm:$0xf]
      %v3069 = vld [vmem:[%s737 + $0x18] sm:$0xf]
      %v3070 = vld [vmem:[%s737 + $0x1c] sm:$0xf]
      %v3071 = vld [vmem:[%s737 + $0x20] sm:$0xf]
      %v3072 = vld [vmem:[%s737 + $0x24] sm:$0xf]
      %v3073 = vld [vmem:[%s737 + $0x28] sm:$0xf]
      %v3074 = vld [vmem:[%s737 + $0x2c] sm:$0xf]
      %v3075 = vld [vmem:[%s737 + $0x30] sm:$0xf]
      %v3076 = vld [vmem:[%s737 + $0x34] sm:$0xf]
      %v3077 = vld [vmem:[%s737 + $0x38] sm:$0xf]
      %v3078 = vld [vmem:[%s737 + $0x3c] sm:$0xf]
      %v3095 = vunpack.c.l.b16 %v3063
      %v3096 = vunpack.c.l.b16 %v3064
      %v3097 = vunpack.c.l.b16 %v3065
      %v3098 = vunpack.c.l.b16 %v3066
      %v3099 = vunpack.c.l.b16 %v3067
      %v3100 = vunpack.c.l.b16 %v3068
      %v3101 = vunpack.c.l.b16 %v3069
      %v3102 = vunpack.c.l.b16 %v3070
      %v3103 = vunpack.c.l.b16 %v3071
      %v3104 = vunpack.c.l.b16 %v3072
      %v3105 = vunpack.c.l.b16 %v3073
      %v3106 = vunpack.c.l.b16 %v3074
      %v3107 = vunpack.c.l.b16 %v3075
      %v3108 = vunpack.c.l.b16 %v3076
      %v3109 = vunpack.c.l.b16 %v3077
      %v3110 = vunpack.c.l.b16 %v3078
      %v3111 = vpack.c.b16 %v3096, %v3095
      %v3112 = vpack.c.b16 %v3098, %v3097
      %v3113 = vpack.c.b16 %v3100, %v3099
      %v3114 = vpack.c.b16 %v3102, %v3101
      %v3115 = vpack.c.b16 %v3104, %v3103
      %v3116 = vpack.c.b16 %v3106, %v3105
      %v3117 = vpack.c.b16 %v3108, %v3107
      %v3118 = vpack.c.b16 %v3110, %v3109
      %3127 = vmatprep.subr.bf16.mxu0 0
      %3128 = vmatpush1.bf16.msra.mxu0 %v3118
      %3129 = vmatprep.subr.bf16.mxu0 0
      %3130 = vmatpush1.bf16.msra.mxu0 %v3117
      %3131 = vmatprep.subr.bf16.mxu0 0
      %3132 = vmatpush1.bf16.msra.mxu0 %v3116
      %3133 = vmatprep.subr.bf16.mxu0 0
      %3134 = vmatpush1.bf16.msra.mxu0 %v3115
      %3135 = vmatprep.subr.bf16.mxu0 0
      %3136 = vmatpush1.bf16.msra.mxu0 %v3114
      %3137 = vmatprep.subr.bf16.mxu0 0
      %3138 = vmatpush1.bf16.msra.mxu0 %v3113
      %3139 = vmatprep.subr.bf16.mxu0 0
      %3140 = vmatpush1.bf16.msra.mxu0 %v3112
      %3141 = vmatprep.subr.bf16.mxu0 0
      %3142 = vmatpush1.bf16.msra.mxu0 %v3111
      %3143 = vmatprep.subr.bf16.mxu0 0
      %3144 = vmatpush2.bf16.msra.mxu0 0
      %3145 = vmatprep.subr.bf16.mxu0 0
      %3146 = vmatpush2.bf16.msra.mxu0 0
      %3147 = vmatprep.subr.bf16.mxu0 0
      %3148 = vmatpush2.bf16.msra.mxu0 0
      %3149 = vmatprep.subr.bf16.mxu0 0
      %3150 = vmatpush2.bf16.msra.mxu0 0
      %3151 = vmatprep.subr.bf16.mxu0 0
      %3152 = vmatpush2.bf16.msra.mxu0 0
      %3153 = vmatprep.subr.bf16.mxu0 0
      %3154 = vmatpush2.bf16.msra.mxu0 0
      %3155 = vmatprep.subr.bf16.mxu0 0
      %3156 = vmatpush2.bf16.msra.mxu0 0
      %3157 = vmatprep.subr.bf16.mxu0 0
      %3158 = vmatpush2.bf16.msra.mxu0 0
      %3159 = vmatprep.mubr.bf16.mxu0 0
      %3160 = vmatmul.mubr.bf16.gmra.mxu0 %v3062
      %v3161 = vpop.f32.mrf.mxu0
      %v3162 = vadd.f32 0.0, %v3161
      %v3163 = vpop.f32.mrf.mxu0
      %v3164 = vpop.f32.mrf.mxu0
      %v3165 = vpop.f32.mrf.mxu0
      %3166 = vdwg.mxu0
      %v3167 = vadd.f32 %v3057, %v3162
      %v3168 = vtanh.pop %v3167
      %v3169 = vsel %vm1204, %v3168, %v2400
      %v3170 = vld [vmem:[%s853] sm:$0xf]
      %v3171 = vld [vmem:[%s853 + $0x4] sm:$0xf]
      %v3172 = vld [vmem:[%s853 + $0x8] sm:$0xf]
      %v3173 = vld [vmem:[%s853 + $0xc] sm:$0xf]
      %v3174 = vld [vmem:[%s853 + $0x10] sm:$0xf]
      %v3175 = vld [vmem:[%s853 + $0x14] sm:$0xf]
      %v3176 = vld [vmem:[%s853 + $0x18] sm:$0xf]
      %v3177 = vld [vmem:[%s853 + $0x1c] sm:$0xf]
      %v3178 = vld [vmem:[%s853 + $0x20] sm:$0xf]
      %v3179 = vld [vmem:[%s853 + $0x24] sm:$0xf]
      %v3180 = vld [vmem:[%s853 + $0x28] sm:$0xf]
      %v3181 = vld [vmem:[%s853 + $0x2c] sm:$0xf]
      %v3182 = vld [vmem:[%s853 + $0x30] sm:$0xf]
      %v3183 = vld [vmem:[%s853 + $0x34] sm:$0xf]
      %v3184 = vld [vmem:[%s853 + $0x38] sm:$0xf]
      %v3185 = vld [vmem:[%s853 + $0x3c] sm:$0xf]
      %v3186 = vld [vmem:[%s870] sm:$0x1]
      %v3203 = vunpack.c.l.b16 %v3170
      %v3204 = vunpack.c.l.b16 %v3171
      %v3205 = vunpack.c.l.b16 %v3172
      %v3206 = vunpack.c.l.b16 %v3173
      %v3207 = vunpack.c.l.b16 %v3174
      %v3208 = vunpack.c.l.b16 %v3175
      %v3209 = vunpack.c.l.b16 %v3176
      %v3210 = vunpack.c.l.b16 %v3177
      %v3211 = vunpack.c.l.b16 %v3178
      %v3212 = vunpack.c.l.b16 %v3179
      %v3213 = vunpack.c.l.b16 %v3180
      %v3214 = vunpack.c.l.b16 %v3181
      %v3215 = vunpack.c.l.b16 %v3182
      %v3216 = vunpack.c.l.b16 %v3183
      %v3217 = vunpack.c.l.b16 %v3184
      %v3218 = vunpack.c.l.b16 %v3185
      %v3219 = vpack.c.b16 %v3204, %v3203
      %v3220 = vpack.c.b16 %v3206, %v3205
      %v3221 = vpack.c.b16 %v3208, %v3207
      %v3222 = vpack.c.b16 %v3210, %v3209
      %v3223 = vpack.c.b16 %v3212, %v3211
      %v3224 = vpack.c.b16 %v3214, %v3213
      %v3225 = vpack.c.b16 %v3216, %v3215
      %v3226 = vpack.c.b16 %v3218, %v3217
      %3235 = vmatprep.subr.bf16.mxu0 0
      %3236 = vmatpush1.bf16.msra.mxu0 %v3226
      %3237 = vmatprep.subr.bf16.mxu0 0
      %3238 = vmatpush1.bf16.msra.mxu0 %v3225
      %3239 = vmatprep.subr.bf16.mxu0 0
      %3240 = vmatpush1.bf16.msra.mxu0 %v3224
      %3241 = vmatprep.subr.bf16.mxu0 0
      %3242 = vmatpush1.bf16.msra.mxu0 %v3223
      %3243 = vmatprep.subr.bf16.mxu0 0
      %3244 = vmatpush1.bf16.msra.mxu0 %v3222
      %3245 = vmatprep.subr.bf16.mxu0 0
      %3246 = vmatpush1.bf16.msra.mxu0 %v3221
      %3247 = vmatprep.subr.bf16.mxu0 0
      %3248 = vmatpush1.bf16.msra.mxu0 %v3220
      %3249 = vmatprep.subr.bf16.mxu0 0
      %3250 = vmatpush1.bf16.msra.mxu0 %v3219
      %3251 = vmatprep.subr.bf16.mxu0 0
      %3252 = vmatpush2.bf16.msra.mxu0 0
      %3253 = vmatprep.subr.bf16.mxu0 0
      %3254 = vmatpush2.bf16.msra.mxu0 0
      %3255 = vmatprep.subr.bf16.mxu0 0
      %3256 = vmatpush2.bf16.msra.mxu0 0
      %3257 = vmatprep.subr.bf16.mxu0 0
      %3258 = vmatpush2.bf16.msra.mxu0 0
      %3259 = vmatprep.subr.bf16.mxu0 0
      %3260 = vmatpush2.bf16.msra.mxu0 0
      %3261 = vmatprep.subr.bf16.mxu0 0
      %3262 = vmatpush2.bf16.msra.mxu0 0
      %3263 = vmatprep.subr.bf16.mxu0 0
      %3264 = vmatpush2.bf16.msra.mxu0 0
      %3265 = vmatprep.subr.bf16.mxu0 0
      %3266 = vmatpush2.bf16.msra.mxu0 0
      %3267 = vmatprep.mubr.bf16.mxu0 0
      %3268 = vmatmul.mubr.bf16.gmra.mxu0 %v3062
      %v3269 = vpop.f32.mrf.mxu0
      %v3270 = vadd.f32 %v3186, %v3269
      %v3271 = vpop.f32.mrf.mxu0
      %v3272 = vpop.f32.mrf.mxu0
      %v3273 = vpop.f32.mrf.mxu0
      %3274 = vdwg.mxu0
      %v3275 = vpack.c.bf16 %v2613, %v2613
      %v3276 = vld [vmem:[%s961] sm:$0xf]
      %v3277 = vld [vmem:[%s961 + $0x4] sm:$0xf]
      %v3278 = vld [vmem:[%s961 + $0x8] sm:$0xf]
      %v3279 = vld [vmem:[%s961 + $0xc] sm:$0xf]
      %v3280 = vld [vmem:[%s961 + $0x10] sm:$0xf]
      %v3281 = vld [vmem:[%s961 + $0x14] sm:$0xf]
      %v3282 = vld [vmem:[%s961 + $0x18] sm:$0xf]
      %v3283 = vld [vmem:[%s961 + $0x1c] sm:$0xf]
      %v3284 = vld [vmem:[%s961 + $0x20] sm:$0xf]
      %v3285 = vld [vmem:[%s961 + $0x24] sm:$0xf]
      %v3286 = vld [vmem:[%s961 + $0x28] sm:$0xf]
      %v3287 = vld [vmem:[%s961 + $0x2c] sm:$0xf]
      %v3288 = vld [vmem:[%s961 + $0x30] sm:$0xf]
      %v3289 = vld [vmem:[%s961 + $0x34] sm:$0xf]
      %v3290 = vld [vmem:[%s961 + $0x38] sm:$0xf]
      %v3291 = vld [vmem:[%s961 + $0x3c] sm:$0xf]
      %v3308 = vunpack.c.l.b16 %v3276
      %v3309 = vunpack.c.l.b16 %v3277
      %v3310 = vunpack.c.l.b16 %v3278
      %v3311 = vunpack.c.l.b16 %v3279
      %v3312 = vunpack.c.l.b16 %v3280
      %v3313 = vunpack.c.l.b16 %v3281
      %v3314 = vunpack.c.l.b16 %v3282
      %v3315 = vunpack.c.l.b16 %v3283
      %v3316 = vunpack.c.l.b16 %v3284
      %v3317 = vunpack.c.l.b16 %v3285
      %v3318 = vunpack.c.l.b16 %v3286
      %v3319 = vunpack.c.l.b16 %v3287
      %v3320 = vunpack.c.l.b16 %v3288
      %v3321 = vunpack.c.l.b16 %v3289
      %v3322 = vunpack.c.l.b16 %v3290
      %v3323 = vunpack.c.l.b16 %v3291
      %v3324 = vpack.c.b16 %v3309, %v3308
      %v3325 = vpack.c.b16 %v3311, %v3310
      %v3326 = vpack.c.b16 %v3313, %v3312
      %v3327 = vpack.c.b16 %v3315, %v3314
      %v3328 = vpack.c.b16 %v3317, %v3316
      %v3329 = vpack.c.b16 %v3319, %v3318
      %v3330 = vpack.c.b16 %v3321, %v3320
      %v3331 = vpack.c.b16 %v3323, %v3322
      %3340 = vmatprep.subr.bf16.mxu0 0
      %3341 = vmatpush1.bf16.msra.mxu0 %v3331
      %3342 = vmatprep.subr.bf16.mxu0 0
      %3343 = vmatpush1.bf16.msra.mxu0 %v3330
      %3344 = vmatprep.subr.bf16.mxu0 0
      %3345 = vmatpush1.bf16.msra.mxu0 %v3329
      %3346 = vmatprep.subr.bf16.mxu0 0
      %3347 = vmatpush1.bf16.msra.mxu0 %v3328
      %3348 = vmatprep.subr.bf16.mxu0 0
      %3349 = vmatpush1.bf16.msra.mxu0 %v3327
      %3350 = vmatprep.subr.bf16.mxu0 0
      %3351 = vmatpush1.bf16.msra.mxu0 %v3326
      %3352 = vmatprep.subr.bf16.mxu0 0
      %3353 = vmatpush1.bf16.msra.mxu0 %v3325
      %3354 = vmatprep.subr.bf16.mxu0 0
      %3355 = vmatpush1.bf16.msra.mxu0 %v3324
      %3356 = vmatprep.subr.bf16.mxu0 0
      %3357 = vmatpush2.bf16.msra.mxu0 0
      %3358 = vmatprep.subr.bf16.mxu0 0
      %3359 = vmatpush2.bf16.msra.mxu0 0
      %3360 = vmatprep.subr.bf16.mxu0 0
      %3361 = vmatpush2.bf16.msra.mxu0 0
      %3362 = vmatprep.subr.bf16.mxu0 0
      %3363 = vmatpush2.bf16.msra.mxu0 0
      %3364 = vmatprep.subr.bf16.mxu0 0
      %3365 = vmatpush2.bf16.msra.mxu0 0
      %3366 = vmatprep.subr.bf16.mxu0 0
      %3367 = vmatpush2.bf16.msra.mxu0 0
      %3368 = vmatprep.subr.bf16.mxu0 0
      %3369 = vmatpush2.bf16.msra.mxu0 0
      %3370 = vmatprep.subr.bf16.mxu0 0
      %3371 = vmatpush2.bf16.msra.mxu0 0
      %3372 = vmatprep.mubr.bf16.mxu0 0
      %3373 = vmatmul.mubr.bf16.gmra.mxu0 %v3275
      %v3374 = vpop.f32.mrf.mxu0
      %v3375 = vadd.f32 0.0, %v3374
      %v3376 = vpop.f32.mrf.mxu0
      %v3377 = vpop.f32.mrf.mxu0
      %v3378 = vpop.f32.mrf.mxu0
      %3379 = vdwg.mxu0
      %v3380 = vadd.f32 %v3270, %v3375
      %v3381 = vtanh.pop %v3380
      %v3382 = vsel %vm402, %v3381, %v2613
      // Predicated region
      $region61: #{tpu_custom_call.1} parent=45 // pred_check
        _
      $region62: #{tpu_custom_call.1} parent=45 // pred_check_branch
        %3384 = sbr.rel (%p398) target = $region64
      $region63: #{tpu_custom_call.1} parent=45 // pred_region
        %s3385 = scalar_lea.vmem [#allocation2], %s286
        %3386 = vst [vmem:[%s3385] sm:$0x1] %v3382
      $region64: #{tpu_custom_call.1} parent=45 // pred_fallthru
        _
    $region46: #{tpu_custom_call.1} parent=1 // loop_footer
      %s277 = sadd.s32 1, %s273
    $region47: #{tpu_custom_call.1} parent=1 // loop_footer_branch
      %272 = sbr.rel target = $region43
    $region48: #{tpu_custom_call.1} parent=1 // loop_exit
      _
    %v3387 = vld [vmem:[#allocation2] sm:$0xff]
    %v3388 = vld [vmem:[#allocation2 + $0x8] sm:$0xff]
    %v3389 = vld [vmem:[#allocation2 + $0x10] sm:$0xff]
    %v3390 = vld [vmem:[#allocation2 + $0x18] sm:$0xff]
    %v3391 = vld [vmem:[#allocation2 + $0x20] sm:$0xff]
    %v3392 = vld [vmem:[#allocation2 + $0x28] sm:$0xff]
    %v3393 = vld [vmem:[#allocation2 + $0x30] sm:$0xff]
    %v3394 = vld [vmem:[#allocation2 + $0x38] sm:$0xff]
    %v3395 = vld [vmem:[#allocation2 + $0x40] sm:$0xff]
    %v3396 = vld [vmem:[#allocation2 + $0x48] sm:$0xff]
    %v3397 = vld [vmem:[#allocation2 + $0x50] sm:$0xff]
    %v3398 = vld [vmem:[#allocation2 + $0x58] sm:$0xff]
    %v3399 = vld [vmem:[#allocation2 + $0x60] sm:$0xf]
    %v3400 = vpack.c.bf16 %v3388, %v3387
    %v3401 = vpack.c.bf16 %v3390, %v3389
    %v3402 = vpack.c.bf16 %v3392, %v3391
    %v3403 = vpack.c.bf16 %v3394, %v3393
    %v3404 = vpack.c.bf16 %v3396, %v3395
    %v3405 = vpack.c.bf16 %v3398, %v3397
    %v3406 = vpack.c.bf16 %v3399, %v3399
    %v3407 = vld [vmem:[#allocation10] sm:$0xf]
    %v3408 = vld [vmem:[#allocation10 + $0x4] sm:$0xf]
    %v3409 = vld [vmem:[#allocation10 + $0x8] sm:$0xf]
    %v3410 = vld [vmem:[#allocation10 + $0xc] sm:$0xf]
    %v3411 = vld [vmem:[#allocation10 + $0x10] sm:$0xf]
    %v3412 = vld [vmem:[#allocation10 + $0x14] sm:$0xf]
    %v3413 = vld [vmem:[#allocation10 + $0x18] sm:$0xf]
    %v3414 = vld [vmem:[#allocation10 + $0x1c] sm:$0xf]
    %v3415 = vld [vmem:[#allocation10 + $0x20] sm:$0xf]
    %v3416 = vld [vmem:[#allocation10 + $0x24] sm:$0xf]
    %v3417 = vld [vmem:[#allocation10 + $0x28] sm:$0xf]
    %v3418 = vld [vmem:[#allocation10 + $0x2c] sm:$0xf]
    %v3419 = vld [vmem:[#allocation10 + $0x30] sm:$0xf]
    %v3420 = vld [vmem:[#allocation10 + $0x34] sm:$0xf]
    %v3421 = vld [vmem:[#allocation10 + $0x38] sm:$0xf]
    %v3422 = vld [vmem:[#allocation10 + $0x3c] sm:$0xf]
    %v3423 = vld [vmem:[%s5] sm:$0x1]
    %v3425 = vlaneseq
    %v3426 = vshrl.u32 %v3425, 7
    %v3427 = vsub.s32 0, %v3426
    %v3428 = vrot.slane %v3423, %v3427
    %v3446 = vunpack.c.l.b16 %v3407
    %v3447 = vunpack.c.l.b16 %v3408
    %v3448 = vunpack.c.l.b16 %v3409
    %v3449 = vunpack.c.l.b16 %v3410
    %v3450 = vunpack.c.l.b16 %v3411
    %v3451 = vunpack.c.l.b16 %v3412
    %v3452 = vunpack.c.l.b16 %v3413
    %v3453 = vunpack.c.l.b16 %v3414
    %v3454 = vunpack.c.l.b16 %v3415
    %v3455 = vunpack.c.l.b16 %v3416
    %v3456 = vunpack.c.l.b16 %v3417
    %v3457 = vunpack.c.l.b16 %v3418
    %v3458 = vunpack.c.l.b16 %v3419
    %v3459 = vunpack.c.l.b16 %v3420
    %v3460 = vunpack.c.l.b16 %v3421
    %v3461 = vunpack.c.l.b16 %v3422
    %v3462 = vpack.c.b16 %v3447, %v3446
    %v3463 = vpack.c.b16 %v3449, %v3448
    %v3464 = vpack.c.b16 %v3451, %v3450
    %v3465 = vpack.c.b16 %v3453, %v3452
    %v3466 = vpack.c.b16 %v3455, %v3454
    %v3467 = vpack.c.b16 %v3457, %v3456
    %v3468 = vpack.c.b16 %v3459, %v3458
    %v3469 = vpack.c.b16 %v3461, %v3460
    %3478 = vmatprep.subr.bf16.mxu0 0
    %3479 = vmatpush1.bf16.msra.mxu0 %v3469
    %3480 = vmatprep.subr.bf16.mxu0 0
    %3481 = vmatpush1.bf16.msra.mxu0 %v3468
    %3482 = vmatprep.subr.bf16.mxu0 0
    %3483 = vmatpush1.bf16.msra.mxu0 %v3467
    %3484 = vmatprep.subr.bf16.mxu0 0
    %3485 = vmatpush1.bf16.msra.mxu0 %v3466
    %3486 = vmatprep.subr.bf16.mxu0 0
    %3487 = vmatpush1.bf16.msra.mxu0 %v3465
    %3488 = vmatprep.subr.bf16.mxu0 0
    %3489 = vmatpush1.bf16.msra.mxu0 %v3464
    %3490 = vmatprep.subr.bf16.mxu0 0
    %3491 = vmatpush1.bf16.msra.mxu0 %v3463
    %3492 = vmatprep.subr.bf16.mxu0 0
    %3493 = vmatpush1.bf16.msra.mxu0 %v3462
    %3494 = vmatprep.subr.bf16.mxu0 0
    %3495 = vmatpush2.bf16.msra.mxu0 0
    %3496 = vmatprep.subr.bf16.mxu0 0
    %3497 = vmatpush2.bf16.msra.mxu0 0
    %3498 = vmatprep.subr.bf16.mxu0 0
    %3499 = vmatpush2.bf16.msra.mxu0 0
    %3500 = vmatprep.subr.bf16.mxu0 0
    %3501 = vmatpush2.bf16.msra.mxu0 0
    %3502 = vmatprep.subr.bf16.mxu0 0
    %3503 = vmatpush2.bf16.msra.mxu0 0
    %3504 = vmatprep.subr.bf16.mxu0 0
    %3505 = vmatpush2.bf16.msra.mxu0 0
    %3506 = vmatprep.subr.bf16.mxu0 0
    %3507 = vmatpush2.bf16.msra.mxu0 0
    %3508 = vmatprep.subr.bf16.mxu0 0
    %3509 = vmatpush2.bf16.msra.mxu0 0
    %3510 = vmatprep.mubr.bf16.mxu0 0
    %3511 = vmatmul.mubr.bf16.gmra.mxu0 %v3400
    %v3512 = vpop.f32.mrf.mxu0
    %v3513 = vadd.f32 %v3428, %v3512
    %v3514 = vpop.f32.mrf.mxu0
    %v3515 = vpop.f32.mrf.mxu0
    %v3516 = vadd.f32 %v3428, %v3515
    %v3517 = vpop.f32.mrf.mxu0
    %3518 = vmatprep.mubr.bf16.mxu0 0
    %3519 = vmatmul.mubr.bf16.gmra.mxu0 %v3401
    %v3520 = vpop.f32.mrf.mxu0
    %v3521 = vadd.f32 %v3428, %v3520
    %v3522 = vpop.f32.mrf.mxu0
    %v3523 = vpop.f32.mrf.mxu0
    %v3524 = vadd.f32 %v3428, %v3523
    %v3525 = vpop.f32.mrf.mxu0
    %3526 = vmatprep.mubr.bf16.mxu0 0
    %3527 = vmatmul.mubr.bf16.gmra.mxu0 %v3402
    %v3528 = vpop.f32.mrf.mxu0
    %v3529 = vadd.f32 %v3428, %v3528
    %v3530 = vpop.f32.mrf.mxu0
    %v3531 = vpop.f32.mrf.mxu0
    %v3532 = vadd.f32 %v3428, %v3531
    %v3533 = vpop.f32.mrf.mxu0
    %3534 = vmatprep.mubr.bf16.mxu0 0
    %3535 = vmatmul.mubr.bf16.gmra.mxu0 %v3403
    %v3536 = vpop.f32.mrf.mxu0
    %v3537 = vadd.f32 %v3428, %v3536
    %v3538 = vpop.f32.mrf.mxu0
    %v3539 = vpop.f32.mrf.mxu0
    %v3540 = vadd.f32 %v3428, %v3539
    %v3541 = vpop.f32.mrf.mxu0
    %3542 = vmatprep.mubr.bf16.mxu0 0
    %3543 = vmatmul.mubr.bf16.gmra.mxu0 %v3404
    %v3544 = vpop.f32.mrf.mxu0
    %v3545 = vadd.f32 %v3428, %v3544
    %v3546 = vpop.f32.mrf.mxu0
    %v3547 = vpop.f32.mrf.mxu0
    %v3548 = vadd.f32 %v3428, %v3547
    %v3549 = vpop.f32.mrf.mxu0
    %3550 = vmatprep.mubr.bf16.mxu0 0
    %3551 = vmatmul.mubr.bf16.gmra.mxu0 %v3405
    %v3552 = vpop.f32.mrf.mxu0
    %v3553 = vadd.f32 %v3428, %v3552
    %v3554 = vpop.f32.mrf.mxu0
    %v3555 = vpop.f32.mrf.mxu0
    %v3556 = vadd.f32 %v3428, %v3555
    %v3557 = vpop.f32.mrf.mxu0
    %3558 = vmatprep.mubr.bf16.mxu0 0
    %3559 = vmatmul.mubr.bf16.gmra.mxu0 %v3406
    %v3560 = vpop.f32.mrf.mxu0
    %v3561 = vadd.f32 %v3428, %v3560
    %v3562 = vpop.f32.mrf.mxu0
    %v3563 = vpop.f32.mrf.mxu0
    %v3564 = vpop.f32.mrf.mxu0
    %3565 = vdwg.mxu0
    %v3566 = vtanh.pop %v3513
    %v3567 = vtanh.pop %v3516
    %v3568 = vtanh.pop %v3521
    %v3569 = vtanh.pop %v3524
    %v3570 = vtanh.pop %v3529
    %v3571 = vtanh.pop %v3532
    %v3572 = vtanh.pop %v3537
    %v3573 = vtanh.pop %v3540
    %v3574 = vtanh.pop %v3545
    %v3575 = vtanh.pop %v3548
    %v3576 = vtanh.pop %v3553
    %v3577 = vtanh.pop %v3556
    %v3578 = vtanh.pop %v3561
    %3579 = vst [vmem:[#allocation12] sm:$0xff] %v3566
    %3580 = vst [vmem:[#allocation12 + $0x8] sm:$0xff] %v3567
    %3581 = vst [vmem:[#allocation12 + $0x10] sm:$0xff] %v3568
    %3582 = vst [vmem:[#allocation12 + $0x18] sm:$0xff] %v3569
    %3583 = vst [vmem:[#allocation12 + $0x20] sm:$0xff] %v3570
    %3584 = vst [vmem:[#allocation12 + $0x28] sm:$0xff] %v3571
    %3585 = vst [vmem:[#allocation12 + $0x30] sm:$0xff] %v3572
    %3586 = vst [vmem:[#allocation12 + $0x38] sm:$0xff] %v3573
    %3587 = vst [vmem:[#allocation12 + $0x40] sm:$0xff] %v3574
    %3588 = vst [vmem:[#allocation12 + $0x48] sm:$0xff] %v3575
    %3589 = vst [vmem:[#allocation12 + $0x50] sm:$0xff] %v3576
    %3590 = vst [vmem:[#allocation12 + $0x58] sm:$0xff] %v3577
    %3591 = vst [vmem:[#allocation12 + $0x60] sm:$0xf] %v3578
    // Predicated region
    $region65: #{tpu_custom_call.1} parent=1 // pred_check
      _
    $region66: #{tpu_custom_call.1} parent=1 // pred_check_branch
      %3593 = sbr.rel (0) target = $region68
    $region67: #{tpu_custom_call.1} parent=1 // pred_region
      %s3595 = ssub.s32 1664, 1664
      %3596 = vsyncadd [#allocation6], %s3595
      %s3597 = sshll.u32 [#allocation12], 4
      %s3598 = int_to_ptr.vmem [resolvable:$true] %s3597
      %3603 = dma.vmem_to_hbm [thread:$0]  %s3598, 1664, %s6, [#allocation6], 128, 128, 8
    $region68: #{tpu_custom_call.1} parent=1 // pred_fallthru
      _
    // Predicated region
    $region69: #{tpu_custom_call.1} parent=1 // pred_check
      _
    $region70: #{tpu_custom_call.1} parent=1 // pred_check_branch
      %3605 = sbr.rel (0) target = $region72
    $region71: #{tpu_custom_call.1} parent=1 // pred_region
      %3606 = dma.done [#allocation6], 1664
    $region72: #{tpu_custom_call.1} parent=1 // pred_fallthru
      _
    %3607 = vsyncpa [#allocation5], 1
    %3608 = vsyncpa [#allocation8], 1
    %3609 = vsyncpa [#allocation11], 1
    %3610 = vsyncpa [#allocation6], 1

</llo_original>
